<compile_context>
chip_gen: v7x
topology: tpu7x:2x2x1
jax: 0.10.0
libtpu: 0.0.40
codegen_flags: <defaults>
</compile_context>

<pallas_src>
import math

import jax
import jax.numpy as jnp
from jax.experimental import pallas as pl
from jax.experimental.pallas import tpu as pltpu


# ----------------------------------------------------------------------------
# Single fused kernel: dual-LSTM recurrence + classification head.
#   xcat_ref:  (T*B, 2I)   [x_hor(t,b,:) ++ x_ver(t,b,:)] rows ordered t-major
#   wih_ref:   (2I, 8H)    block-diag rows (hor/ver), gate-interleaved columns
#   whh_ref:   (2H, 8H)    block-diag rows (hor/ver), gate-interleaved columns
#   b_lstm_ref:(1, 8H)     (b_ih + b_hh) per LSTM, gate-interleaved
#   scale/shift: (1, 2H)   folded eval-mode BatchNorm
#   w1:(2H,D) b1:(1,D)  w2:(D,128 padded) b2:(1,128, pad lanes = -1e30)
#   out_ref:   (B, 128)    lane-dense log-probs (cols >= 10 are ~-1e30)
#   gx_ref:    (T*B, 8H)   VMEM scratch holding the hoisted input projection
# ----------------------------------------------------------------------------
def fused_model_kernel(xcat_ref, wih_ref, whh_ref, b_lstm_ref,
                       scale_ref, shift_ref, w1_ref, b1_ref, w2_ref, b2_ref,
                       out_ref, gx_ref):
    B = out_ref.shape[0]
    TB = gx_ref.shape[0]
    T = TB // B
    H2 = whh_ref.shape[0]          # 2 * lstm_hidden  (hor ++ ver)

    # Hoisted input projection: one matmul for both LSTMs and all timesteps.
    # Column layout (width 8H): [i_h,i_v | f_h,f_v | g_h,g_v | o_h,o_v].
    gx_ref[...] = (jnp.dot(xcat_ref[...], wih_ref[...],
                           preferred_element_type=jnp.float32)
                   + b_lstm_ref[...])

    whh = whh_ref[...]             # (2H, 8H); RHS reused every step

    h0 = jnp.zeros((B, H2), jnp.float32)
    c0 = jnp.zeros((B, H2), jnp.float32)

    def step(t, carry):
        h, c = carry
        start = pl.multiple_of(t * B, B)               # B-aligned row offset
        g = gx_ref[pl.ds(start, B), :] + jnp.dot(
            h, whh, preferred_element_type=jnp.float32)        # (B, 8H)
        sig = jax.nn.sigmoid(g)     # full-width EUP passes, slice afterwards
        th = jnp.tanh(g)
        i_g = sig[:, 0:H2]
        f_g = sig[:, H2:2 * H2]
        g_g = th[:, 2 * H2:3 * H2]
        o_g = sig[:, 3 * H2:4 * H2]
        c_new = f_g * c + i_g * g_g
        h_new = o_g * jnp.tanh(c_new)
        return (h_new, c_new)

    # T = 28 is tiny and fixed: fully unroll the serial recurrence.
    h_T, _ = jax.lax.fori_loop(0, T, step, (h0, c0), unroll=True)

    # Fused head. h_T is already [h_hor, h_ver] -> the concat is free.
    feat = h_T * scale_ref[...] + shift_ref[...]       # BatchNorm (eval); dropout_1 = id
    h1 = jnp.dot(feat, w1_ref[...], preferred_element_type=jnp.float32) + b1_ref[...]
    h1 = 0.5 * h1 * (1.0 + jax.lax.erf(h1 * (1.0 / math.sqrt(2.0))))  # exact GELU
    # dropout_2: identity in eval mode
    logits = (jnp.dot(h1, w2_ref[...], preferred_element_type=jnp.float32)
              + b2_ref[...])                           # (B, 128), pad lanes ~ -1e30
    m = jnp.max(logits, axis=1, keepdims=True)
    lse = m + jnp.log(jnp.sum(jnp.exp(logits - m), axis=1, keepdims=True))
    out_ref[...] = logits - lse                        # log_softmax, lane-dense store


def fused_forward(xcat, p, *, B, T):
    H2 = p["whh"].shape[0]
    n_pad = p["w2"].shape[1]
    vmem = pl.BlockSpec(memory_space=pltpu.MemorySpace.VMEM)
    return pl.pallas_call(
        fused_model_kernel,
        out_shape=jax.ShapeDtypeStruct((B, n_pad), jnp.float32),
        in_specs=[vmem] * 10,
        out_specs=vmem,
        scratch_shapes=[pltpu.VMEM((T * B, 4 * H2), jnp.float32)],
    )(xcat, p["wih"], p["whh"], p["b_lstm"], p["scale"], p["shift"],
      p["w1"], p["b1"], p["w2"], p["b2"])


def model_forward(x, params, n_cls=10):
    # x: (B, 28, 28); hor pass consumes rows as timesteps, ver pass consumes
    # columns (torch.einsum('...ij->...ji', x)).  Layout prep is tiny wrapper glue.
    B, T, I = x.shape
    x_hor = jnp.transpose(x, (1, 0, 2)).reshape(T * B, I)   # (T*B, I), t-major
    x_ver = jnp.transpose(x, (2, 0, 1)).reshape(T * B, I)   # (T*B, I), t-major
    xcat = jnp.concatenate([x_hor, x_ver], axis=1)          # (T*B, 2I)
    out_pad = fused_forward(xcat, params, B=B, T=T)         # (B, 128)
    return out_pad[:, :n_cls]


# ----------------------------------------------------------------------------
# Parameter construction (deterministic, PyTorch-like uniform init) + fusion
# into the block-diagonal / gate-interleaved layout used by the kernel.
# ----------------------------------------------------------------------------
def uniform(key, shape, bound):
    return jax.random.uniform(key, shape, jnp.float32, -bound, bound)


def _fuse_gate_blockdiag(m_hor, m_ver, H):
    """(Rh,4H),(Rv,4H) -> (Rh+Rv, 8H): rows block-diagonal (hor on top),
    columns gate-interleaved [i_h,i_v | f_h,f_v | g_h,g_v | o_h,o_v]."""
    Rh = m_hor.shape[0]
    out = jnp.zeros((Rh + m_ver.shape[0], 8 * H), jnp.float32)
    for k in range(4):
        out = out.at[:Rh, 2 * k * H:(2 * k + 1) * H].set(m_hor[:, k * H:(k + 1) * H])
        out = out.at[Rh:, (2 * k + 1) * H:(2 * k + 2) * H].set(m_ver[:, k * H:(k + 1) * H])
    return out


def _fuse_gate_bias(b_hor, b_ver, H):
    out = jnp.zeros((1, 8 * H), jnp.float32)
    for k in range(4):
        out = out.at[:, 2 * k * H:(2 * k + 1) * H].set(b_hor[:, k * H:(k + 1) * H])
        out = out.at[:, (2 * k + 1) * H:(2 * k + 2) * H].set(b_ver[:, k * H:(k + 1) * H])
    return out


def make_params(key, lstm_hidden, dense, input_size=28, n_cls=10, n_cls_pad=128):
    ks = jax.random.split(key, 12)
    H = lstm_hidden
    sb = 1.0 / math.sqrt(H)
    per = {}
    for name, koff in (("hor", 0), ("ver", 4)):
        w_ih = uniform(ks[koff + 0], (4 * H, input_size), sb)   # PyTorch layout
        w_hh = uniform(ks[koff + 1], (4 * H, H), sb)
        b_ih = uniform(ks[koff + 2], (4 * H,), sb)
        b_hh = uniform(ks[koff + 3], (4 * H,), sb)
        per[name] = dict(wih=jnp.transpose(w_ih),               # (I, 4H)
                         whh=jnp.transpose(w_hh),               # (H, 4H)
                         b=(b_ih + b_hh).reshape(1, 4 * H))
    wih_fused = _fuse_gate_blockdiag(per["hor"]["wih"], per["ver"]["wih"], H)  # (2I, 8H)
    whh_fused = _fuse_gate_blockdiag(per["hor"]["whh"], per["ver"]["whh"], H)  # (2H, 8H)
    b_fused = _fuse_gate_bias(per["hor"]["b"], per["ver"]["b"], H)             # (1, 8H)

    # BatchNorm1d(2H) eval-mode fold (defaults: gamma=1, beta=0, mean=0, var=1)
    eps = 1e-5
    gamma = jnp.ones((2 * H,), jnp.float32)
    beta = jnp.zeros((2 * H,), jnp.float32)
    r_mean = jnp.zeros((2 * H,), jnp.float32)
    r_var = jnp.ones((2 * H,), jnp.float32)
    scale = gamma / jnp.sqrt(r_var + eps)
    shift = beta - r_mean * scale

    bnd1 = 1.0 / math.sqrt(2 * H)
    bnd2 = 1.0 / math.sqrt(dense)
    w1 = jnp.transpose(uniform(ks[8], (dense, 2 * H), bnd1))     # (2H, D)
    b1v = uniform(ks[9], (dense,), bnd1).reshape(1, dense)
    w2 = jnp.transpose(uniform(ks[10], (n_cls, dense), bnd2))    # (D, 10)
    b2v = uniform(ks[11], (n_cls,), bnd2)
    # Lane-dense fc2: zero weight cols + -1e30 bias pad keeps log_softmax identical.
    w2_pad = jnp.zeros((dense, n_cls_pad), jnp.float32).at[:, :n_cls].set(w2)
    b2_pad = jnp.full((1, n_cls_pad), -1e30, jnp.float32).at[0, :n_cls].set(b2v)

    return dict(wih=wih_fused, whh=whh_fused, b_lstm=b_fused,
                scale=scale.reshape(1, 2 * H), shift=shift.reshape(1, 2 * H),
                w1=w1, b1=b1v, w2=w2_pad, b2=b2_pad)


if __name__ == "__main__":
    B = 8
    LSTM_HIDDEN = 32
    DENSE = 64

    key = jax.random.PRNGKey(0)
    k_x, k_p = jax.random.split(key)
    x = jax.random.normal(k_x, (B, 28, 28), jnp.float32)
    params = make_params(k_p, LSTM_HIDDEN, DENSE)

    out = jax.jit(model_forward)(x, params)
    out = jax.block_until_ready(out)
    assert out.shape == (B, 10)
    # log_softmax rows should (log-)sum to ~0
    assert jnp.allclose(jnp.sum(jnp.exp(out), axis=1), 1.0, atol=1e-4)
    print("KERNEL_OK")
</pallas_src>

<mosaic_0001>
module attributes {stable_mosaic.version = 11 : i64} {
  func.func @fused_model_kernel(%arg0: memref<224x56xf32, #tpu.memory_space<vmem>>, %arg1: memref<56x256xf32, #tpu.memory_space<vmem>>, %arg2: memref<64x256xf32, #tpu.memory_space<vmem>>, %arg3: memref<1x256xf32, #tpu.memory_space<vmem>>, %arg4: memref<1x64xf32, #tpu.memory_space<vmem>>, %arg5: memref<1x64xf32, #tpu.memory_space<vmem>>, %arg6: memref<64x64xf32, #tpu.memory_space<vmem>>, %arg7: memref<1x64xf32, #tpu.memory_space<vmem>>, %arg8: memref<64x128xf32, #tpu.memory_space<vmem>>, %arg9: memref<1x128xf32, #tpu.memory_space<vmem>>, %arg10: memref<8x128xf32, #tpu.memory_space<vmem>>, %arg11: memref<224x256xf32, #tpu.memory_space<vmem>>) attributes {dimension_semantics = [], scalar_prefetch = 0 : i64, scratch_operands = 1 : i64, tpu.core_type = #tpu.core_type<tc>} {
    %c0 = arith.constant 0 : index
    %c0_0 = arith.constant 0 : index
    %0 = vector.load %arg0[%c0, %c0_0] : memref<224x56xf32, #tpu.memory_space<vmem>>, vector<224x56xf32>
    %c0_1 = arith.constant 0 : index
    %c0_2 = arith.constant 0 : index
    %1 = vector.load %arg1[%c0_1, %c0_2] : memref<56x256xf32, #tpu.memory_space<vmem>>, vector<56x256xf32>
    %cst = arith.constant dense<0.000000e+00> : vector<224x256xf32>
    %2 = tpu.matmul %0, %1, %cst {dimension_numbers = #tpu.dot_dimension_numbers<[1], [0], [0], [1], [0, 0, 1, 1], [], []>} : vector<224x56xf32>, vector<56x256xf32>, vector<224x256xf32> -> vector<224x256xf32>
    %c0_3 = arith.constant 0 : index
    %c0_4 = arith.constant 0 : index
    %3 = vector.load %arg3[%c0_3, %c0_4] : memref<1x256xf32, #tpu.memory_space<vmem>>, vector<1x256xf32>
    %4 = vector.broadcast %3 : vector<1x256xf32> to vector<224x256xf32>
    %5 = arith.addf %2, %4 : vector<224x256xf32>
    %c0_5 = arith.constant 0 : index
    %c0_6 = arith.constant 0 : index
    %6 = vector.load %arg11[%c0_5, %c0_6] : memref<224x256xf32, #tpu.memory_space<vmem>>, vector<224x256xf32>
    tpu.vector_store %arg11[%c0_5, %c0_6], %5 {strides = array<i32>} : memref<224x256xf32, #tpu.memory_space<vmem>>, vector<224x256xf32>,
    %c0_7 = arith.constant 0 : index
    %c0_8 = arith.constant 0 : index
    %7 = vector.load %arg2[%c0_7, %c0_8] : memref<64x256xf32, #tpu.memory_space<vmem>>, vector<64x256xf32>
    %cst_9 = arith.constant 0.000000e+00 : f32
    %8 = vector.broadcast %cst_9 : f32 to vector<8x64xf32>
    %cst_10 = arith.constant 0.000000e+00 : f32
    %9 = vector.broadcast %cst_10 : f32 to vector<8x64xf32>
    %c0_i32 = arith.constant 0 : i32
    %c8_i32 = arith.constant 8 : i32
    %10 = arith.muli %c0_i32, %c8_i32 : i32
    %11 = tpu.assume_multiple %10, 8 : i32
    %12 = arith.index_cast %11 : i32 to index
    %c0_11 = arith.constant 0 : index
    %13 = vector.load %arg11[%12, %c0_11] : memref<224x256xf32, #tpu.memory_space<vmem>>, vector<8x256xf32>
    %cst_12 = arith.constant dense<0.000000e+00> : vector<8x256xf32>
    %14 = tpu.matmul %8, %7, %cst_12 {dimension_numbers = #tpu.dot_dimension_numbers<[1], [0], [0], [1], [0, 0, 1, 1], [], []>} : vector<8x64xf32>, vector<64x256xf32>, vector<8x256xf32> -> vector<8x256xf32>
    %15 = arith.addf %13, %14 : vector<8x256xf32>
    %16 = arith.negf %15 : vector<8x256xf32>
    %17 = math.exp %16 : vector<8x256xf32>
    %cst_13 = arith.constant 1.000000e+00 : f32
    %18 = vector.broadcast %cst_13 : f32 to vector<8x256xf32>
    %19 = arith.addf %18, %17 : vector<8x256xf32>
    %20 = arith.divf %18, %19 : vector<8x256xf32>
    %21 = math.tanh %15 : vector<8x256xf32>
    %22 = vector.extract_strided_slice %20 {offsets = [0, 0], sizes = [8, 64], strides = [1, 1]} : vector<8x256xf32> to vector<8x64xf32>
    %23 = vector.extract_strided_slice %20 {offsets = [0, 64], sizes = [8, 64], strides = [1, 1]} : vector<8x256xf32> to vector<8x64xf32>
    %24 = vector.extract_strided_slice %21 {offsets = [0, 128], sizes = [8, 64], strides = [1, 1]} : vector<8x256xf32> to vector<8x64xf32>
    %25 = vector.extract_strided_slice %20 {offsets = [0, 192], sizes = [8, 64], strides = [1, 1]} : vector<8x256xf32> to vector<8x64xf32>
    %26 = arith.mulf %23, %9 : vector<8x64xf32>
    %27 = arith.mulf %22, %24 : vector<8x64xf32>
    %28 = arith.addf %26, %27 : vector<8x64xf32>
    %29 = math.tanh %28 : vector<8x64xf32>
    %30 = arith.mulf %25, %29 : vector<8x64xf32>
    %c1_i32 = arith.constant 1 : i32
    %c8_i32_14 = arith.constant 8 : i32
    %31 = arith.muli %c1_i32, %c8_i32_14 : i32
    %32 = tpu.assume_multiple %31, 8 : i32
    %33 = arith.index_cast %32 : i32 to index
    %c0_15 = arith.constant 0 : index
    %34 = vector.load %arg11[%33, %c0_15] : memref<224x256xf32, #tpu.memory_space<vmem>>, vector<8x256xf32>
    %cst_16 = arith.constant dense<0.000000e+00> : vector<8x256xf32>
    %35 = tpu.matmul %30, %7, %cst_16 {dimension_numbers = #tpu.dot_dimension_numbers<[1], [0], [0], [1], [0, 0, 1, 1], [], []>} : vector<8x64xf32>, vector<64x256xf32>, vector<8x256xf32> -> vector<8x256xf32>
    %36 = arith.addf %34, %35 : vector<8x256xf32>
    %37 = arith.negf %36 : vector<8x256xf32>
    %38 = math.exp %37 : vector<8x256xf32>
    %cst_17 = arith.constant 1.000000e+00 : f32
    %39 = vector.broadcast %cst_17 : f32 to vector<8x256xf32>
    %40 = arith.addf %39, %38 : vector<8x256xf32>
    %41 = arith.divf %39, %40 : vector<8x256xf32>
    %42 = math.tanh %36 : vector<8x256xf32>
    %43 = vector.extract_strided_slice %41 {offsets = [0, 0], sizes = [8, 64], strides = [1, 1]} : vector<8x256xf32> to vector<8x64xf32>
    %44 = vector.extract_strided_slice %41 {offsets = [0, 64], sizes = [8, 64], strides = [1, 1]} : vector<8x256xf32> to vector<8x64xf32>
    %45 = vector.extract_strided_slice %42 {offsets = [0, 128], sizes = [8, 64], strides = [1, 1]} : vector<8x256xf32> to vector<8x64xf32>
    %46 = vector.extract_strided_slice %41 {offsets = [0, 192], sizes = [8, 64], strides = [1, 1]} : vector<8x256xf32> to vector<8x64xf32>
    %47 = arith.mulf %44, %28 : vector<8x64xf32>
    %48 = arith.mulf %43, %45 : vector<8x64xf32>
    %49 = arith.addf %47, %48 : vector<8x64xf32>
    %50 = math.tanh %49 : vector<8x64xf32>
    %51 = arith.mulf %46, %50 : vector<8x64xf32>
    %c2_i32 = arith.constant 2 : i32
    %c8_i32_18 = arith.constant 8 : i32
    %52 = arith.muli %c2_i32, %c8_i32_18 : i32
    %53 = tpu.assume_multiple %52, 8 : i32
    %54 = arith.index_cast %53 : i32 to index
    %c0_19 = arith.constant 0 : index
    %55 = vector.load %arg11[%54, %c0_19] : memref<224x256xf32, #tpu.memory_space<vmem>>, vector<8x256xf32>
    %cst_20 = arith.constant dense<0.000000e+00> : vector<8x256xf32>
    %56 = tpu.matmul %51, %7, %cst_20 {dimension_numbers = #tpu.dot_dimension_numbers<[1], [0], [0], [1], [0, 0, 1, 1], [], []>} : vector<8x64xf32>, vector<64x256xf32>, vector<8x256xf32> -> vector<8x256xf32>
    %57 = arith.addf %55, %56 : vector<8x256xf32>
    %58 = arith.negf %57 : vector<8x256xf32>
    %59 = math.exp %58 : vector<8x256xf32>
    %cst_21 = arith.constant 1.000000e+00 : f32
    %60 = vector.broadcast %cst_21 : f32 to vector<8x256xf32>
    %61 = arith.addf %60, %59 : vector<8x256xf32>
    %62 = arith.divf %60, %61 : vector<8x256xf32>
    %63 = math.tanh %57 : vector<8x256xf32>
    %64 = vector.extract_strided_slice %62 {offsets = [0, 0], sizes = [8, 64], strides = [1, 1]} : vector<8x256xf32> to vector<8x64xf32>
    %65 = vector.extract_strided_slice %62 {offsets = [0, 64], sizes = [8, 64], strides = [1, 1]} : vector<8x256xf32> to vector<8x64xf32>
    %66 = vector.extract_strided_slice %63 {offsets = [0, 128], sizes = [8, 64], strides = [1, 1]} : vector<8x256xf32> to vector<8x64xf32>
    %67 = vector.extract_strided_slice %62 {offsets = [0, 192], sizes = [8, 64], strides = [1, 1]} : vector<8x256xf32> to vector<8x64xf32>
    %68 = arith.mulf %65, %49 : vector<8x64xf32>
    %69 = arith.mulf %64, %66 : vector<8x64xf32>
    %70 = arith.addf %68, %69 : vector<8x64xf32>
    %71 = math.tanh %70 : vector<8x64xf32>
    %72 = arith.mulf %67, %71 : vector<8x64xf32>
    %c3_i32 = arith.constant 3 : i32
    %c8_i32_22 = arith.constant 8 : i32
    %73 = arith.muli %c3_i32, %c8_i32_22 : i32
    %74 = tpu.assume_multiple %73, 8 : i32
    %75 = arith.index_cast %74 : i32 to index
    %c0_23 = arith.constant 0 : index
    %76 = vector.load %arg11[%75, %c0_23] : memref<224x256xf32, #tpu.memory_space<vmem>>, vector<8x256xf32>
    %cst_24 = arith.constant dense<0.000000e+00> : vector<8x256xf32>
    %77 = tpu.matmul %72, %7, %cst_24 {dimension_numbers = #tpu.dot_dimension_numbers<[1], [0], [0], [1], [0, 0, 1, 1], [], []>} : vector<8x64xf32>, vector<64x256xf32>, vector<8x256xf32> -> vector<8x256xf32>
    %78 = arith.addf %76, %77 : vector<8x256xf32>
    %79 = arith.negf %78 : vector<8x256xf32>
    %80 = math.exp %79 : vector<8x256xf32>
    %cst_25 = arith.constant 1.000000e+00 : f32
    %81 = vector.broadcast %cst_25 : f32 to vector<8x256xf32>
    %82 = arith.addf %81, %80 : vector<8x256xf32>
    %83 = arith.divf %81, %82 : vector<8x256xf32>
    %84 = math.tanh %78 : vector<8x256xf32>
    %85 = vector.extract_strided_slice %83 {offsets = [0, 0], sizes = [8, 64], strides = [1, 1]} : vector<8x256xf32> to vector<8x64xf32>
    %86 = vector.extract_strided_slice %83 {offsets = [0, 64], sizes = [8, 64], strides = [1, 1]} : vector<8x256xf32> to vector<8x64xf32>
    %87 = vector.extract_strided_slice %84 {offsets = [0, 128], sizes = [8, 64], strides = [1, 1]} : vector<8x256xf32> to vector<8x64xf32>
    %88 = vector.extract_strided_slice %83 {offsets = [0, 192], sizes = [8, 64], strides = [1, 1]} : vector<8x256xf32> to vector<8x64xf32>
    %89 = arith.mulf %86, %70 : vector<8x64xf32>
    %90 = arith.mulf %85, %87 : vector<8x64xf32>
    %91 = arith.addf %89, %90 : vector<8x64xf32>
    %92 = math.tanh %91 : vector<8x64xf32>
    %93 = arith.mulf %88, %92 : vector<8x64xf32>
    %c4_i32 = arith.constant 4 : i32
    %c8_i32_26 = arith.constant 8 : i32
    %94 = arith.muli %c4_i32, %c8_i32_26 : i32
    %95 = tpu.assume_multiple %94, 8 : i32
    %96 = arith.index_cast %95 : i32 to index
    %c0_27 = arith.constant 0 : index
    %97 = vector.load %arg11[%96, %c0_27] : memref<224x256xf32, #tpu.memory_space<vmem>>, vector<8x256xf32>
    %cst_28 = arith.constant dense<0.000000e+00> : vector<8x256xf32>
    %98 = tpu.matmul %93, %7, %cst_28 {dimension_numbers = #tpu.dot_dimension_numbers<[1], [0], [0], [1], [0, 0, 1, 1], [], []>} : vector<8x64xf32>, vector<64x256xf32>, vector<8x256xf32> -> vector<8x256xf32>
    %99 = arith.addf %97, %98 : vector<8x256xf32>
    %100 = arith.negf %99 : vector<8x256xf32>
    %101 = math.exp %100 : vector<8x256xf32>
    %cst_29 = arith.constant 1.000000e+00 : f32
    %102 = vector.broadcast %cst_29 : f32 to vector<8x256xf32>
    %103 = arith.addf %102, %101 : vector<8x256xf32>
    %104 = arith.divf %102, %103 : vector<8x256xf32>
    %105 = math.tanh %99 : vector<8x256xf32>
    %106 = vector.extract_strided_slice %104 {offsets = [0, 0], sizes = [8, 64], strides = [1, 1]} : vector<8x256xf32> to vector<8x64xf32>
    %107 = vector.extract_strided_slice %104 {offsets = [0, 64], sizes = [8, 64], strides = [1, 1]} : vector<8x256xf32> to vector<8x64xf32>
    %108 = vector.extract_strided_slice %105 {offsets = [0, 128], sizes = [8, 64], strides = [1, 1]} : vector<8x256xf32> to vector<8x64xf32>
    %109 = vector.extract_strided_slice %104 {offsets = [0, 192], sizes = [8, 64], strides = [1, 1]} : vector<8x256xf32> to vector<8x64xf32>
    %110 = arith.mulf %107, %91 : vector<8x64xf32>
    %111 = arith.mulf %106, %108 : vector<8x64xf32>
    %112 = arith.addf %110, %111 : vector<8x64xf32>
    %113 = math.tanh %112 : vector<8x64xf32>
    %114 = arith.mulf %109, %113 : vector<8x64xf32>
    %c5_i32 = arith.constant 5 : i32
    %c8_i32_30 = arith.constant 8 : i32
    %115 = arith.muli %c5_i32, %c8_i32_30 : i32
    %116 = tpu.assume_multiple %115, 8 : i32
    %117 = arith.index_cast %116 : i32 to index
    %c0_31 = arith.constant 0 : index
    %118 = vector.load %arg11[%117, %c0_31] : memref<224x256xf32, #tpu.memory_space<vmem>>, vector<8x256xf32>
    %cst_32 = arith.constant dense<0.000000e+00> : vector<8x256xf32>
    %119 = tpu.matmul %114, %7, %cst_32 {dimension_numbers = #tpu.dot_dimension_numbers<[1], [0], [0], [1], [0, 0, 1, 1], [], []>} : vector<8x64xf32>, vector<64x256xf32>, vector<8x256xf32> -> vector<8x256xf32>
    %120 = arith.addf %118, %119 : vector<8x256xf32>
    %121 = arith.negf %120 : vector<8x256xf32>
    %122 = math.exp %121 : vector<8x256xf32>
    %cst_33 = arith.constant 1.000000e+00 : f32
    %123 = vector.broadcast %cst_33 : f32 to vector<8x256xf32>
    %124 = arith.addf %123, %122 : vector<8x256xf32>
    %125 = arith.divf %123, %124 : vector<8x256xf32>
    %126 = math.tanh %120 : vector<8x256xf32>
    %127 = vector.extract_strided_slice %125 {offsets = [0, 0], sizes = [8, 64], strides = [1, 1]} : vector<8x256xf32> to vector<8x64xf32>
    %128 = vector.extract_strided_slice %125 {offsets = [0, 64], sizes = [8, 64], strides = [1, 1]} : vector<8x256xf32> to vector<8x64xf32>
    %129 = vector.extract_strided_slice %126 {offsets = [0, 128], sizes = [8, 64], strides = [1, 1]} : vector<8x256xf32> to vector<8x64xf32>
    %130 = vector.extract_strided_slice %125 {offsets = [0, 192], sizes = [8, 64], strides = [1, 1]} : vector<8x256xf32> to vector<8x64xf32>
    %131 = arith.mulf %128, %112 : vector<8x64xf32>
    %132 = arith.mulf %127, %129 : vector<8x64xf32>
    %133 = arith.addf %131, %132 : vector<8x64xf32>
    %134 = math.tanh %133 : vector<8x64xf32>
    %135 = arith.mulf %130, %134 : vector<8x64xf32>
    %c6_i32 = arith.constant 6 : i32
    %c8_i32_34 = arith.constant 8 : i32
    %136 = arith.muli %c6_i32, %c8_i32_34 : i32
    %137 = tpu.assume_multiple %136, 8 : i32
    %138 = arith.index_cast %137 : i32 to index
    %c0_35 = arith.constant 0 : index
    %139 = vector.load %arg11[%138, %c0_35] : memref<224x256xf32, #tpu.memory_space<vmem>>, vector<8x256xf32>
    %cst_36 = arith.constant dense<0.000000e+00> : vector<8x256xf32>
    %140 = tpu.matmul %135, %7, %cst_36 {dimension_numbers = #tpu.dot_dimension_numbers<[1], [0], [0], [1], [0, 0, 1, 1], [], []>} : vector<8x64xf32>, vector<64x256xf32>, vector<8x256xf32> -> vector<8x256xf32>
    %141 = arith.addf %139, %140 : vector<8x256xf32>
    %142 = arith.negf %141 : vector<8x256xf32>
    %143 = math.exp %142 : vector<8x256xf32>
    %cst_37 = arith.constant 1.000000e+00 : f32
    %144 = vector.broadcast %cst_37 : f32 to vector<8x256xf32>
    %145 = arith.addf %144, %143 : vector<8x256xf32>
    %146 = arith.divf %144, %145 : vector<8x256xf32>
    %147 = math.tanh %141 : vector<8x256xf32>
    %148 = vector.extract_strided_slice %146 {offsets = [0, 0], sizes = [8, 64], strides = [1, 1]} : vector<8x256xf32> to vector<8x64xf32>
    %149 = vector.extract_strided_slice %146 {offsets = [0, 64], sizes = [8, 64], strides = [1, 1]} : vector<8x256xf32> to vector<8x64xf32>
    %150 = vector.extract_strided_slice %147 {offsets = [0, 128], sizes = [8, 64], strides = [1, 1]} : vector<8x256xf32> to vector<8x64xf32>
    %151 = vector.extract_strided_slice %146 {offsets = [0, 192], sizes = [8, 64], strides = [1, 1]} : vector<8x256xf32> to vector<8x64xf32>
    %152 = arith.mulf %149, %133 : vector<8x64xf32>
    %153 = arith.mulf %148, %150 : vector<8x64xf32>
    %154 = arith.addf %152, %153 : vector<8x64xf32>
    %155 = math.tanh %154 : vector<8x64xf32>
    %156 = arith.mulf %151, %155 : vector<8x64xf32>
    %c7_i32 = arith.constant 7 : i32
    %c8_i32_38 = arith.constant 8 : i32
    %157 = arith.muli %c7_i32, %c8_i32_38 : i32
    %158 = tpu.assume_multiple %157, 8 : i32
    %159 = arith.index_cast %158 : i32 to index
    %c0_39 = arith.constant 0 : index
    %160 = vector.load %arg11[%159, %c0_39] : memref<224x256xf32, #tpu.memory_space<vmem>>, vector<8x256xf32>
    %cst_40 = arith.constant dense<0.000000e+00> : vector<8x256xf32>
    %161 = tpu.matmul %156, %7, %cst_40 {dimension_numbers = #tpu.dot_dimension_numbers<[1], [0], [0], [1], [0, 0, 1, 1], [], []>} : vector<8x64xf32>, vector<64x256xf32>, vector<8x256xf32> -> vector<8x256xf32>
    %162 = arith.addf %160, %161 : vector<8x256xf32>
    %163 = arith.negf %162 : vector<8x256xf32>
    %164 = math.exp %163 : vector<8x256xf32>
    %cst_41 = arith.constant 1.000000e+00 : f32
    %165 = vector.broadcast %cst_41 : f32 to vector<8x256xf32>
    %166 = arith.addf %165, %164 : vector<8x256xf32>
    %167 = arith.divf %165, %166 : vector<8x256xf32>
    %168 = math.tanh %162 : vector<8x256xf32>
    %169 = vector.extract_strided_slice %167 {offsets = [0, 0], sizes = [8, 64], strides = [1, 1]} : vector<8x256xf32> to vector<8x64xf32>
    %170 = vector.extract_strided_slice %167 {offsets = [0, 64], sizes = [8, 64], strides = [1, 1]} : vector<8x256xf32> to vector<8x64xf32>
    %171 = vector.extract_strided_slice %168 {offsets = [0, 128], sizes = [8, 64], strides = [1, 1]} : vector<8x256xf32> to vector<8x64xf32>
    %172 = vector.extract_strided_slice %167 {offsets = [0, 192], sizes = [8, 64], strides = [1, 1]} : vector<8x256xf32> to vector<8x64xf32>
    %173 = arith.mulf %170, %154 : vector<8x64xf32>
    %174 = arith.mulf %169, %171 : vector<8x64xf32>
    %175 = arith.addf %173, %174 : vector<8x64xf32>
    %176 = math.tanh %175 : vector<8x64xf32>
    %177 = arith.mulf %172, %176 : vector<8x64xf32>
    %c8_i32_42 = arith.constant 8 : i32
    %c8_i32_43 = arith.constant 8 : i32
    %178 = arith.muli %c8_i32_42, %c8_i32_43 : i32
    %179 = tpu.assume_multiple %178, 8 : i32
    %180 = arith.index_cast %179 : i32 to index
    %c0_44 = arith.constant 0 : index
    %181 = vector.load %arg11[%180, %c0_44] : memref<224x256xf32, #tpu.memory_space<vmem>>, vector<8x256xf32>
    %cst_45 = arith.constant dense<0.000000e+00> : vector<8x256xf32>
    %182 = tpu.matmul %177, %7, %cst_45 {dimension_numbers = #tpu.dot_dimension_numbers<[1], [0], [0], [1], [0, 0, 1, 1], [], []>} : vector<8x64xf32>, vector<64x256xf32>, vector<8x256xf32> -> vector<8x256xf32>
    %183 = arith.addf %181, %182 : vector<8x256xf32>
    %184 = arith.negf %183 : vector<8x256xf32>
    %185 = math.exp %184 : vector<8x256xf32>
    %cst_46 = arith.constant 1.000000e+00 : f32
    %186 = vector.broadcast %cst_46 : f32 to vector<8x256xf32>
    %187 = arith.addf %186, %185 : vector<8x256xf32>
    %188 = arith.divf %186, %187 : vector<8x256xf32>
    %189 = math.tanh %183 : vector<8x256xf32>
    %190 = vector.extract_strided_slice %188 {offsets = [0, 0], sizes = [8, 64], strides = [1, 1]} : vector<8x256xf32> to vector<8x64xf32>
    %191 = vector.extract_strided_slice %188 {offsets = [0, 64], sizes = [8, 64], strides = [1, 1]} : vector<8x256xf32> to vector<8x64xf32>
    %192 = vector.extract_strided_slice %189 {offsets = [0, 128], sizes = [8, 64], strides = [1, 1]} : vector<8x256xf32> to vector<8x64xf32>
    %193 = vector.extract_strided_slice %188 {offsets = [0, 192], sizes = [8, 64], strides = [1, 1]} : vector<8x256xf32> to vector<8x64xf32>
    %194 = arith.mulf %191, %175 : vector<8x64xf32>
    %195 = arith.mulf %190, %192 : vector<8x64xf32>
    %196 = arith.addf %194, %195 : vector<8x64xf32>
    %197 = math.tanh %196 : vector<8x64xf32>
    %198 = arith.mulf %193, %197 : vector<8x64xf32>
    %c9_i32 = arith.constant 9 : i32
    %c8_i32_47 = arith.constant 8 : i32
    %199 = arith.muli %c9_i32, %c8_i32_47 : i32
    %200 = tpu.assume_multiple %199, 8 : i32
    %201 = arith.index_cast %200 : i32 to index
    %c0_48 = arith.constant 0 : index
    %202 = vector.load %arg11[%201, %c0_48] : memref<224x256xf32, #tpu.memory_space<vmem>>, vector<8x256xf32>
    %cst_49 = arith.constant dense<0.000000e+00> : vector<8x256xf32>
    %203 = tpu.matmul %198, %7, %cst_49 {dimension_numbers = #tpu.dot_dimension_numbers<[1], [0], [0], [1], [0, 0, 1, 1], [], []>} : vector<8x64xf32>, vector<64x256xf32>, vector<8x256xf32> -> vector<8x256xf32>
    %204 = arith.addf %202, %203 : vector<8x256xf32>
    %205 = arith.negf %204 : vector<8x256xf32>
    %206 = math.exp %205 : vector<8x256xf32>
    %cst_50 = arith.constant 1.000000e+00 : f32
    %207 = vector.broadcast %cst_50 : f32 to vector<8x256xf32>
    %208 = arith.addf %207, %206 : vector<8x256xf32>
    %209 = arith.divf %207, %208 : vector<8x256xf32>
    %210 = math.tanh %204 : vector<8x256xf32>
    %211 = vector.extract_strided_slice %209 {offsets = [0, 0], sizes = [8, 64], strides = [1, 1]} : vector<8x256xf32> to vector<8x64xf32>
    %212 = vector.extract_strided_slice %209 {offsets = [0, 64], sizes = [8, 64], strides = [1, 1]} : vector<8x256xf32> to vector<8x64xf32>
    %213 = vector.extract_strided_slice %210 {offsets = [0, 128], sizes = [8, 64], strides = [1, 1]} : vector<8x256xf32> to vector<8x64xf32>
    %214 = vector.extract_strided_slice %209 {offsets = [0, 192], sizes = [8, 64], strides = [1, 1]} : vector<8x256xf32> to vector<8x64xf32>
    %215 = arith.mulf %212, %196 : vector<8x64xf32>
    %216 = arith.mulf %211, %213 : vector<8x64xf32>
    %217 = arith.addf %215, %216 : vector<8x64xf32>
    %218 = math.tanh %217 : vector<8x64xf32>
    %219 = arith.mulf %214, %218 : vector<8x64xf32>
    %c10_i32 = arith.constant 10 : i32
    %c8_i32_51 = arith.constant 8 : i32
    %220 = arith.muli %c10_i32, %c8_i32_51 : i32
    %221 = tpu.assume_multiple %220, 8 : i32
    %222 = arith.index_cast %221 : i32 to index
    %c0_52 = arith.constant 0 : index
    %223 = vector.load %arg11[%222, %c0_52] : memref<224x256xf32, #tpu.memory_space<vmem>>, vector<8x256xf32>
    %cst_53 = arith.constant dense<0.000000e+00> : vector<8x256xf32>
    %224 = tpu.matmul %219, %7, %cst_53 {dimension_numbers = #tpu.dot_dimension_numbers<[1], [0], [0], [1], [0, 0, 1, 1], [], []>} : vector<8x64xf32>, vector<64x256xf32>, vector<8x256xf32> -> vector<8x256xf32>
    %225 = arith.addf %223, %224 : vector<8x256xf32>
    %226 = arith.negf %225 : vector<8x256xf32>
    %227 = math.exp %226 : vector<8x256xf32>
    %cst_54 = arith.constant 1.000000e+00 : f32
    %228 = vector.broadcast %cst_54 : f32 to vector<8x256xf32>
    %229 = arith.addf %228, %227 : vector<8x256xf32>
    %230 = arith.divf %228, %229 : vector<8x256xf32>
    %231 = math.tanh %225 : vector<8x256xf32>
    %232 = vector.extract_strided_slice %230 {offsets = [0, 0], sizes = [8, 64], strides = [1, 1]} : vector<8x256xf32> to vector<8x64xf32>
    %233 = vector.extract_strided_slice %230 {offsets = [0, 64], sizes = [8, 64], strides = [1, 1]} : vector<8x256xf32> to vector<8x64xf32>
    %234 = vector.extract_strided_slice %231 {offsets = [0, 128], sizes = [8, 64], strides = [1, 1]} : vector<8x256xf32> to vector<8x64xf32>
    %235 = vector.extract_strided_slice %230 {offsets = [0, 192], sizes = [8, 64], strides = [1, 1]} : vector<8x256xf32> to vector<8x64xf32>
    %236 = arith.mulf %233, %217 : vector<8x64xf32>
    %237 = arith.mulf %232, %234 : vector<8x64xf32>
    %238 = arith.addf %236, %237 : vector<8x64xf32>
    %239 = math.tanh %238 : vector<8x64xf32>
    %240 = arith.mulf %235, %239 : vector<8x64xf32>
    %c11_i32 = arith.constant 11 : i32
    %c8_i32_55 = arith.constant 8 : i32
    %241 = arith.muli %c11_i32, %c8_i32_55 : i32
    %242 = tpu.assume_multiple %241, 8 : i32
    %243 = arith.index_cast %242 : i32 to index
    %c0_56 = arith.constant 0 : index
    %244 = vector.load %arg11[%243, %c0_56] : memref<224x256xf32, #tpu.memory_space<vmem>>, vector<8x256xf32>
    %cst_57 = arith.constant dense<0.000000e+00> : vector<8x256xf32>
    %245 = tpu.matmul %240, %7, %cst_57 {dimension_numbers = #tpu.dot_dimension_numbers<[1], [0], [0], [1], [0, 0, 1, 1], [], []>} : vector<8x64xf32>, vector<64x256xf32>, vector<8x256xf32> -> vector<8x256xf32>
    %246 = arith.addf %244, %245 : vector<8x256xf32>
    %247 = arith.negf %246 : vector<8x256xf32>
    %248 = math.exp %247 : vector<8x256xf32>
    %cst_58 = arith.constant 1.000000e+00 : f32
    %249 = vector.broadcast %cst_58 : f32 to vector<8x256xf32>
    %250 = arith.addf %249, %248 : vector<8x256xf32>
    %251 = arith.divf %249, %250 : vector<8x256xf32>
    %252 = math.tanh %246 : vector<8x256xf32>
    %253 = vector.extract_strided_slice %251 {offsets = [0, 0], sizes = [8, 64], strides = [1, 1]} : vector<8x256xf32> to vector<8x64xf32>
    %254 = vector.extract_strided_slice %251 {offsets = [0, 64], sizes = [8, 64], strides = [1, 1]} : vector<8x256xf32> to vector<8x64xf32>
    %255 = vector.extract_strided_slice %252 {offsets = [0, 128], sizes = [8, 64], strides = [1, 1]} : vector<8x256xf32> to vector<8x64xf32>
    %256 = vector.extract_strided_slice %251 {offsets = [0, 192], sizes = [8, 64], strides = [1, 1]} : vector<8x256xf32> to vector<8x64xf32>
    %257 = arith.mulf %254, %238 : vector<8x64xf32>
    %258 = arith.mulf %253, %255 : vector<8x64xf32>
    %259 = arith.addf %257, %258 : vector<8x64xf32>
    %260 = math.tanh %259 : vector<8x64xf32>
    %261 = arith.mulf %256, %260 : vector<8x64xf32>
    %c12_i32 = arith.constant 12 : i32
    %c8_i32_59 = arith.constant 8 : i32
    %262 = arith.muli %c12_i32, %c8_i32_59 : i32
    %263 = tpu.assume_multiple %262, 8 : i32
    %264 = arith.index_cast %263 : i32 to index
    %c0_60 = arith.constant 0 : index
    %265 = vector.load %arg11[%264, %c0_60] : memref<224x256xf32, #tpu.memory_space<vmem>>, vector<8x256xf32>
    %cst_61 = arith.constant dense<0.000000e+00> : vector<8x256xf32>
    %266 = tpu.matmul %261, %7, %cst_61 {dimension_numbers = #tpu.dot_dimension_numbers<[1], [0], [0], [1], [0, 0, 1, 1], [], []>} : vector<8x64xf32>, vector<64x256xf32>, vector<8x256xf32> -> vector<8x256xf32>
    %267 = arith.addf %265, %266 : vector<8x256xf32>
    %268 = arith.negf %267 : vector<8x256xf32>
    %269 = math.exp %268 : vector<8x256xf32>
    %cst_62 = arith.constant 1.000000e+00 : f32
    %270 = vector.broadcast %cst_62 : f32 to vector<8x256xf32>
    %271 = arith.addf %270, %269 : vector<8x256xf32>
    %272 = arith.divf %270, %271 : vector<8x256xf32>
    %273 = math.tanh %267 : vector<8x256xf32>
    %274 = vector.extract_strided_slice %272 {offsets = [0, 0], sizes = [8, 64], strides = [1, 1]} : vector<8x256xf32> to vector<8x64xf32>
    %275 = vector.extract_strided_slice %272 {offsets = [0, 64], sizes = [8, 64], strides = [1, 1]} : vector<8x256xf32> to vector<8x64xf32>
    %276 = vector.extract_strided_slice %273 {offsets = [0, 128], sizes = [8, 64], strides = [1, 1]} : vector<8x256xf32> to vector<8x64xf32>
    %277 = vector.extract_strided_slice %272 {offsets = [0, 192], sizes = [8, 64], strides = [1, 1]} : vector<8x256xf32> to vector<8x64xf32>
    %278 = arith.mulf %275, %259 : vector<8x64xf32>
    %279 = arith.mulf %274, %276 : vector<8x64xf32>
    %280 = arith.addf %278, %279 : vector<8x64xf32>
    %281 = math.tanh %280 : vector<8x64xf32>
    %282 = arith.mulf %277, %281 : vector<8x64xf32>
    %c13_i32 = arith.constant 13 : i32
    %c8_i32_63 = arith.constant 8 : i32
    %283 = arith.muli %c13_i32, %c8_i32_63 : i32
    %284 = tpu.assume_multiple %283, 8 : i32
    %285 = arith.index_cast %284 : i32 to index
    %c0_64 = arith.constant 0 : index
    %286 = vector.load %arg11[%285, %c0_64] : memref<224x256xf32, #tpu.memory_space<vmem>>, vector<8x256xf32>
    %cst_65 = arith.constant dense<0.000000e+00> : vector<8x256xf32>
    %287 = tpu.matmul %282, %7, %cst_65 {dimension_numbers = #tpu.dot_dimension_numbers<[1], [0], [0], [1], [0, 0, 1, 1], [], []>} : vector<8x64xf32>, vector<64x256xf32>, vector<8x256xf32> -> vector<8x256xf32>
    %288 = arith.addf %286, %287 : vector<8x256xf32>
    %289 = arith.negf %288 : vector<8x256xf32>
    %290 = math.exp %289 : vector<8x256xf32>
    %cst_66 = arith.constant 1.000000e+00 : f32
    %291 = vector.broadcast %cst_66 : f32 to vector<8x256xf32>
    %292 = arith.addf %291, %290 : vector<8x256xf32>
    %293 = arith.divf %291, %292 : vector<8x256xf32>
    %294 = math.tanh %288 : vector<8x256xf32>
    %295 = vector.extract_strided_slice %293 {offsets = [0, 0], sizes = [8, 64], strides = [1, 1]} : vector<8x256xf32> to vector<8x64xf32>
    %296 = vector.extract_strided_slice %293 {offsets = [0, 64], sizes = [8, 64], strides = [1, 1]} : vector<8x256xf32> to vector<8x64xf32>
    %297 = vector.extract_strided_slice %294 {offsets = [0, 128], sizes = [8, 64], strides = [1, 1]} : vector<8x256xf32> to vector<8x64xf32>
    %298 = vector.extract_strided_slice %293 {offsets = [0, 192], sizes = [8, 64], strides = [1, 1]} : vector<8x256xf32> to vector<8x64xf32>
    %299 = arith.mulf %296, %280 : vector<8x64xf32>
    %300 = arith.mulf %295, %297 : vector<8x64xf32>
    %301 = arith.addf %299, %300 : vector<8x64xf32>
    %302 = math.tanh %301 : vector<8x64xf32>
    %303 = arith.mulf %298, %302 : vector<8x64xf32>
    %c14_i32 = arith.constant 14 : i32
    %c8_i32_67 = arith.constant 8 : i32
    %304 = arith.muli %c14_i32, %c8_i32_67 : i32
    %305 = tpu.assume_multiple %304, 8 : i32
    %306 = arith.index_cast %305 : i32 to index
    %c0_68 = arith.constant 0 : index
    %307 = vector.load %arg11[%306, %c0_68] : memref<224x256xf32, #tpu.memory_space<vmem>>, vector<8x256xf32>
    %cst_69 = arith.constant dense<0.000000e+00> : vector<8x256xf32>
    %308 = tpu.matmul %303, %7, %cst_69 {dimension_numbers = #tpu.dot_dimension_numbers<[1], [0], [0], [1], [0, 0, 1, 1], [], []>} : vector<8x64xf32>, vector<64x256xf32>, vector<8x256xf32> -> vector<8x256xf32>
    %309 = arith.addf %307, %308 : vector<8x256xf32>
    %310 = arith.negf %309 : vector<8x256xf32>
    %311 = math.exp %310 : vector<8x256xf32>
    %cst_70 = arith.constant 1.000000e+00 : f32
    %312 = vector.broadcast %cst_70 : f32 to vector<8x256xf32>
    %313 = arith.addf %312, %311 : vector<8x256xf32>
    %314 = arith.divf %312, %313 : vector<8x256xf32>
    %315 = math.tanh %309 : vector<8x256xf32>
    %316 = vector.extract_strided_slice %314 {offsets = [0, 0], sizes = [8, 64], strides = [1, 1]} : vector<8x256xf32> to vector<8x64xf32>
    %317 = vector.extract_strided_slice %314 {offsets = [0, 64], sizes = [8, 64], strides = [1, 1]} : vector<8x256xf32> to vector<8x64xf32>
    %318 = vector.extract_strided_slice %315 {offsets = [0, 128], sizes = [8, 64], strides = [1, 1]} : vector<8x256xf32> to vector<8x64xf32>
    %319 = vector.extract_strided_slice %314 {offsets = [0, 192], sizes = [8, 64], strides = [1, 1]} : vector<8x256xf32> to vector<8x64xf32>
    %320 = arith.mulf %317, %301 : vector<8x64xf32>
    %321 = arith.mulf %316, %318 : vector<8x64xf32>
    %322 = arith.addf %320, %321 : vector<8x64xf32>
    %323 = math.tanh %322 : vector<8x64xf32>
    %324 = arith.mulf %319, %323 : vector<8x64xf32>
    %c15_i32 = arith.constant 15 : i32
    %c8_i32_71 = arith.constant 8 : i32
    %325 = arith.muli %c15_i32, %c8_i32_71 : i32
    %326 = tpu.assume_multiple %325, 8 : i32
    %327 = arith.index_cast %326 : i32 to index
    %c0_72 = arith.constant 0 : index
    %328 = vector.load %arg11[%327, %c0_72] : memref<224x256xf32, #tpu.memory_space<vmem>>, vector<8x256xf32>
    %cst_73 = arith.constant dense<0.000000e+00> : vector<8x256xf32>
    %329 = tpu.matmul %324, %7, %cst_73 {dimension_numbers = #tpu.dot_dimension_numbers<[1], [0], [0], [1], [0, 0, 1, 1], [], []>} : vector<8x64xf32>, vector<64x256xf32>, vector<8x256xf32> -> vector<8x256xf32>
    %330 = arith.addf %328, %329 : vector<8x256xf32>
    %331 = arith.negf %330 : vector<8x256xf32>
    %332 = math.exp %331 : vector<8x256xf32>
    %cst_74 = arith.constant 1.000000e+00 : f32
    %333 = vector.broadcast %cst_74 : f32 to vector<8x256xf32>
    %334 = arith.addf %333, %332 : vector<8x256xf32>
    %335 = arith.divf %333, %334 : vector<8x256xf32>
    %336 = math.tanh %330 : vector<8x256xf32>
    %337 = vector.extract_strided_slice %335 {offsets = [0, 0], sizes = [8, 64], strides = [1, 1]} : vector<8x256xf32> to vector<8x64xf32>
    %338 = vector.extract_strided_slice %335 {offsets = [0, 64], sizes = [8, 64], strides = [1, 1]} : vector<8x256xf32> to vector<8x64xf32>
    %339 = vector.extract_strided_slice %336 {offsets = [0, 128], sizes = [8, 64], strides = [1, 1]} : vector<8x256xf32> to vector<8x64xf32>
    %340 = vector.extract_strided_slice %335 {offsets = [0, 192], sizes = [8, 64], strides = [1, 1]} : vector<8x256xf32> to vector<8x64xf32>
    %341 = arith.mulf %338, %322 : vector<8x64xf32>
    %342 = arith.mulf %337, %339 : vector<8x64xf32>
    %343 = arith.addf %341, %342 : vector<8x64xf32>
    %344 = math.tanh %343 : vector<8x64xf32>
    %345 = arith.mulf %340, %344 : vector<8x64xf32>
    %c16_i32 = arith.constant 16 : i32
    %c8_i32_75 = arith.constant 8 : i32
    %346 = arith.muli %c16_i32, %c8_i32_75 : i32
    %347 = tpu.assume_multiple %346, 8 : i32
    %348 = arith.index_cast %347 : i32 to index
    %c0_76 = arith.constant 0 : index
    %349 = vector.load %arg11[%348, %c0_76] : memref<224x256xf32, #tpu.memory_space<vmem>>, vector<8x256xf32>
    %cst_77 = arith.constant dense<0.000000e+00> : vector<8x256xf32>
    %350 = tpu.matmul %345, %7, %cst_77 {dimension_numbers = #tpu.dot_dimension_numbers<[1], [0], [0], [1], [0, 0, 1, 1], [], []>} : vector<8x64xf32>, vector<64x256xf32>, vector<8x256xf32> -> vector<8x256xf32>
    %351 = arith.addf %349, %350 : vector<8x256xf32>
    %352 = arith.negf %351 : vector<8x256xf32>
    %353 = math.exp %352 : vector<8x256xf32>
    %cst_78 = arith.constant 1.000000e+00 : f32
    %354 = vector.broadcast %cst_78 : f32 to vector<8x256xf32>
    %355 = arith.addf %354, %353 : vector<8x256xf32>
    %356 = arith.divf %354, %355 : vector<8x256xf32>
    %357 = math.tanh %351 : vector<8x256xf32>
    %358 = vector.extract_strided_slice %356 {offsets = [0, 0], sizes = [8, 64], strides = [1, 1]} : vector<8x256xf32> to vector<8x64xf32>
    %359 = vector.extract_strided_slice %356 {offsets = [0, 64], sizes = [8, 64], strides = [1, 1]} : vector<8x256xf32> to vector<8x64xf32>
    %360 = vector.extract_strided_slice %357 {offsets = [0, 128], sizes = [8, 64], strides = [1, 1]} : vector<8x256xf32> to vector<8x64xf32>
    %361 = vector.extract_strided_slice %356 {offsets = [0, 192], sizes = [8, 64], strides = [1, 1]} : vector<8x256xf32> to vector<8x64xf32>
    %362 = arith.mulf %359, %343 : vector<8x64xf32>
    %363 = arith.mulf %358, %360 : vector<8x64xf32>
    %364 = arith.addf %362, %363 : vector<8x64xf32>
    %365 = math.tanh %364 : vector<8x64xf32>
    %366 = arith.mulf %361, %365 : vector<8x64xf32>
    %c17_i32 = arith.constant 17 : i32
    %c8_i32_79 = arith.constant 8 : i32
    %367 = arith.muli %c17_i32, %c8_i32_79 : i32
    %368 = tpu.assume_multiple %367, 8 : i32
    %369 = arith.index_cast %368 : i32 to index
    %c0_80 = arith.constant 0 : index
    %370 = vector.load %arg11[%369, %c0_80] : memref<224x256xf32, #tpu.memory_space<vmem>>, vector<8x256xf32>
    %cst_81 = arith.constant dense<0.000000e+00> : vector<8x256xf32>
    %371 = tpu.matmul %366, %7, %cst_81 {dimension_numbers = #tpu.dot_dimension_numbers<[1], [0], [0], [1], [0, 0, 1, 1], [], []>} : vector<8x64xf32>, vector<64x256xf32>, vector<8x256xf32> -> vector<8x256xf32>
    %372 = arith.addf %370, %371 : vector<8x256xf32>
    %373 = arith.negf %372 : vector<8x256xf32>
    %374 = math.exp %373 : vector<8x256xf32>
    %cst_82 = arith.constant 1.000000e+00 : f32
    %375 = vector.broadcast %cst_82 : f32 to vector<8x256xf32>
    %376 = arith.addf %375, %374 : vector<8x256xf32>
    %377 = arith.divf %375, %376 : vector<8x256xf32>
    %378 = math.tanh %372 : vector<8x256xf32>
    %379 = vector.extract_strided_slice %377 {offsets = [0, 0], sizes = [8, 64], strides = [1, 1]} : vector<8x256xf32> to vector<8x64xf32>
    %380 = vector.extract_strided_slice %377 {offsets = [0, 64], sizes = [8, 64], strides = [1, 1]} : vector<8x256xf32> to vector<8x64xf32>
    %381 = vector.extract_strided_slice %378 {offsets = [0, 128], sizes = [8, 64], strides = [1, 1]} : vector<8x256xf32> to vector<8x64xf32>
    %382 = vector.extract_strided_slice %377 {offsets = [0, 192], sizes = [8, 64], strides = [1, 1]} : vector<8x256xf32> to vector<8x64xf32>
    %383 = arith.mulf %380, %364 : vector<8x64xf32>
    %384 = arith.mulf %379, %381 : vector<8x64xf32>
    %385 = arith.addf %383, %384 : vector<8x64xf32>
    %386 = math.tanh %385 : vector<8x64xf32>
    %387 = arith.mulf %382, %386 : vector<8x64xf32>
    %c18_i32 = arith.constant 18 : i32
    %c8_i32_83 = arith.constant 8 : i32
    %388 = arith.muli %c18_i32, %c8_i32_83 : i32
    %389 = tpu.assume_multiple %388, 8 : i32
    %390 = arith.index_cast %389 : i32 to index
    %c0_84 = arith.constant 0 : index
    %391 = vector.load %arg11[%390, %c0_84] : memref<224x256xf32, #tpu.memory_space<vmem>>, vector<8x256xf32>
    %cst_85 = arith.constant dense<0.000000e+00> : vector<8x256xf32>
    %392 = tpu.matmul %387, %7, %cst_85 {dimension_numbers = #tpu.dot_dimension_numbers<[1], [0], [0], [1], [0, 0, 1, 1], [], []>} : vector<8x64xf32>, vector<64x256xf32>, vector<8x256xf32> -> vector<8x256xf32>
    %393 = arith.addf %391, %392 : vector<8x256xf32>
    %394 = arith.negf %393 : vector<8x256xf32>
    %395 = math.exp %394 : vector<8x256xf32>
    %cst_86 = arith.constant 1.000000e+00 : f32
    %396 = vector.broadcast %cst_86 : f32 to vector<8x256xf32>
    %397 = arith.addf %396, %395 : vector<8x256xf32>
    %398 = arith.divf %396, %397 : vector<8x256xf32>
    %399 = math.tanh %393 : vector<8x256xf32>
    %400 = vector.extract_strided_slice %398 {offsets = [0, 0], sizes = [8, 64], strides = [1, 1]} : vector<8x256xf32> to vector<8x64xf32>
    %401 = vector.extract_strided_slice %398 {offsets = [0, 64], sizes = [8, 64], strides = [1, 1]} : vector<8x256xf32> to vector<8x64xf32>
    %402 = vector.extract_strided_slice %399 {offsets = [0, 128], sizes = [8, 64], strides = [1, 1]} : vector<8x256xf32> to vector<8x64xf32>
    %403 = vector.extract_strided_slice %398 {offsets = [0, 192], sizes = [8, 64], strides = [1, 1]} : vector<8x256xf32> to vector<8x64xf32>
    %404 = arith.mulf %401, %385 : vector<8x64xf32>
    %405 = arith.mulf %400, %402 : vector<8x64xf32>
    %406 = arith.addf %404, %405 : vector<8x64xf32>
    %407 = math.tanh %406 : vector<8x64xf32>
    %408 = arith.mulf %403, %407 : vector<8x64xf32>
    %c19_i32 = arith.constant 19 : i32
    %c8_i32_87 = arith.constant 8 : i32
    %409 = arith.muli %c19_i32, %c8_i32_87 : i32
    %410 = tpu.assume_multiple %409, 8 : i32
    %411 = arith.index_cast %410 : i32 to index
    %c0_88 = arith.constant 0 : index
    %412 = vector.load %arg11[%411, %c0_88] : memref<224x256xf32, #tpu.memory_space<vmem>>, vector<8x256xf32>
    %cst_89 = arith.constant dense<0.000000e+00> : vector<8x256xf32>
    %413 = tpu.matmul %408, %7, %cst_89 {dimension_numbers = #tpu.dot_dimension_numbers<[1], [0], [0], [1], [0, 0, 1, 1], [], []>} : vector<8x64xf32>, vector<64x256xf32>, vector<8x256xf32> -> vector<8x256xf32>
    %414 = arith.addf %412, %413 : vector<8x256xf32>
    %415 = arith.negf %414 : vector<8x256xf32>
    %416 = math.exp %415 : vector<8x256xf32>
    %cst_90 = arith.constant 1.000000e+00 : f32
    %417 = vector.broadcast %cst_90 : f32 to vector<8x256xf32>
    %418 = arith.addf %417, %416 : vector<8x256xf32>
    %419 = arith.divf %417, %418 : vector<8x256xf32>
    %420 = math.tanh %414 : vector<8x256xf32>
    %421 = vector.extract_strided_slice %419 {offsets = [0, 0], sizes = [8, 64], strides = [1, 1]} : vector<8x256xf32> to vector<8x64xf32>
    %422 = vector.extract_strided_slice %419 {offsets = [0, 64], sizes = [8, 64], strides = [1, 1]} : vector<8x256xf32> to vector<8x64xf32>
    %423 = vector.extract_strided_slice %420 {offsets = [0, 128], sizes = [8, 64], strides = [1, 1]} : vector<8x256xf32> to vector<8x64xf32>
    %424 = vector.extract_strided_slice %419 {offsets = [0, 192], sizes = [8, 64], strides = [1, 1]} : vector<8x256xf32> to vector<8x64xf32>
    %425 = arith.mulf %422, %406 : vector<8x64xf32>
    %426 = arith.mulf %421, %423 : vector<8x64xf32>
    %427 = arith.addf %425, %426 : vector<8x64xf32>
    %428 = math.tanh %427 : vector<8x64xf32>
    %429 = arith.mulf %424, %428 : vector<8x64xf32>
    %c20_i32 = arith.constant 20 : i32
    %c8_i32_91 = arith.constant 8 : i32
    %430 = arith.muli %c20_i32, %c8_i32_91 : i32
    %431 = tpu.assume_multiple %430, 8 : i32
    %432 = arith.index_cast %431 : i32 to index
    %c0_92 = arith.constant 0 : index
    %433 = vector.load %arg11[%432, %c0_92] : memref<224x256xf32, #tpu.memory_space<vmem>>, vector<8x256xf32>
    %cst_93 = arith.constant dense<0.000000e+00> : vector<8x256xf32>
    %434 = tpu.matmul %429, %7, %cst_93 {dimension_numbers = #tpu.dot_dimension_numbers<[1], [0], [0], [1], [0, 0, 1, 1], [], []>} : vector<8x64xf32>, vector<64x256xf32>, vector<8x256xf32> -> vector<8x256xf32>
    %435 = arith.addf %433, %434 : vector<8x256xf32>
    %436 = arith.negf %435 : vector<8x256xf32>
    %437 = math.exp %436 : vector<8x256xf32>
    %cst_94 = arith.constant 1.000000e+00 : f32
    %438 = vector.broadcast %cst_94 : f32 to vector<8x256xf32>
    %439 = arith.addf %438, %437 : vector<8x256xf32>
    %440 = arith.divf %438, %439 : vector<8x256xf32>
    %441 = math.tanh %435 : vector<8x256xf32>
    %442 = vector.extract_strided_slice %440 {offsets = [0, 0], sizes = [8, 64], strides = [1, 1]} : vector<8x256xf32> to vector<8x64xf32>
    %443 = vector.extract_strided_slice %440 {offsets = [0, 64], sizes = [8, 64], strides = [1, 1]} : vector<8x256xf32> to vector<8x64xf32>
    %444 = vector.extract_strided_slice %441 {offsets = [0, 128], sizes = [8, 64], strides = [1, 1]} : vector<8x256xf32> to vector<8x64xf32>
    %445 = vector.extract_strided_slice %440 {offsets = [0, 192], sizes = [8, 64], strides = [1, 1]} : vector<8x256xf32> to vector<8x64xf32>
    %446 = arith.mulf %443, %427 : vector<8x64xf32>
    %447 = arith.mulf %442, %444 : vector<8x64xf32>
    %448 = arith.addf %446, %447 : vector<8x64xf32>
    %449 = math.tanh %448 : vector<8x64xf32>
    %450 = arith.mulf %445, %449 : vector<8x64xf32>
    %c21_i32 = arith.constant 21 : i32
    %c8_i32_95 = arith.constant 8 : i32
    %451 = arith.muli %c21_i32, %c8_i32_95 : i32
    %452 = tpu.assume_multiple %451, 8 : i32
    %453 = arith.index_cast %452 : i32 to index
    %c0_96 = arith.constant 0 : index
    %454 = vector.load %arg11[%453, %c0_96] : memref<224x256xf32, #tpu.memory_space<vmem>>, vector<8x256xf32>
    %cst_97 = arith.constant dense<0.000000e+00> : vector<8x256xf32>
    %455 = tpu.matmul %450, %7, %cst_97 {dimension_numbers = #tpu.dot_dimension_numbers<[1], [0], [0], [1], [0, 0, 1, 1], [], []>} : vector<8x64xf32>, vector<64x256xf32>, vector<8x256xf32> -> vector<8x256xf32>
    %456 = arith.addf %454, %455 : vector<8x256xf32>
    %457 = arith.negf %456 : vector<8x256xf32>
    %458 = math.exp %457 : vector<8x256xf32>
    %cst_98 = arith.constant 1.000000e+00 : f32
    %459 = vector.broadcast %cst_98 : f32 to vector<8x256xf32>
    %460 = arith.addf %459, %458 : vector<8x256xf32>
    %461 = arith.divf %459, %460 : vector<8x256xf32>
    %462 = math.tanh %456 : vector<8x256xf32>
    %463 = vector.extract_strided_slice %461 {offsets = [0, 0], sizes = [8, 64], strides = [1, 1]} : vector<8x256xf32> to vector<8x64xf32>
    %464 = vector.extract_strided_slice %461 {offsets = [0, 64], sizes = [8, 64], strides = [1, 1]} : vector<8x256xf32> to vector<8x64xf32>
    %465 = vector.extract_strided_slice %462 {offsets = [0, 128], sizes = [8, 64], strides = [1, 1]} : vector<8x256xf32> to vector<8x64xf32>
    %466 = vector.extract_strided_slice %461 {offsets = [0, 192], sizes = [8, 64], strides = [1, 1]} : vector<8x256xf32> to vector<8x64xf32>
    %467 = arith.mulf %464, %448 : vector<8x64xf32>
    %468 = arith.mulf %463, %465 : vector<8x64xf32>
    %469 = arith.addf %467, %468 : vector<8x64xf32>
    %470 = math.tanh %469 : vector<8x64xf32>
    %471 = arith.mulf %466, %470 : vector<8x64xf32>
    %c22_i32 = arith.constant 22 : i32
    %c8_i32_99 = arith.constant 8 : i32
    %472 = arith.muli %c22_i32, %c8_i32_99 : i32
    %473 = tpu.assume_multiple %472, 8 : i32
    %474 = arith.index_cast %473 : i32 to index
    %c0_100 = arith.constant 0 : index
    %475 = vector.load %arg11[%474, %c0_100] : memref<224x256xf32, #tpu.memory_space<vmem>>, vector<8x256xf32>
    %cst_101 = arith.constant dense<0.000000e+00> : vector<8x256xf32>
    %476 = tpu.matmul %471, %7, %cst_101 {dimension_numbers = #tpu.dot_dimension_numbers<[1], [0], [0], [1], [0, 0, 1, 1], [], []>} : vector<8x64xf32>, vector<64x256xf32>, vector<8x256xf32> -> vector<8x256xf32>
    %477 = arith.addf %475, %476 : vector<8x256xf32>
    %478 = arith.negf %477 : vector<8x256xf32>
    %479 = math.exp %478 : vector<8x256xf32>
    %cst_102 = arith.constant 1.000000e+00 : f32
    %480 = vector.broadcast %cst_102 : f32 to vector<8x256xf32>
    %481 = arith.addf %480, %479 : vector<8x256xf32>
    %482 = arith.divf %480, %481 : vector<8x256xf32>
    %483 = math.tanh %477 : vector<8x256xf32>
    %484 = vector.extract_strided_slice %482 {offsets = [0, 0], sizes = [8, 64], strides = [1, 1]} : vector<8x256xf32> to vector<8x64xf32>
    %485 = vector.extract_strided_slice %482 {offsets = [0, 64], sizes = [8, 64], strides = [1, 1]} : vector<8x256xf32> to vector<8x64xf32>
    %486 = vector.extract_strided_slice %483 {offsets = [0, 128], sizes = [8, 64], strides = [1, 1]} : vector<8x256xf32> to vector<8x64xf32>
    %487 = vector.extract_strided_slice %482 {offsets = [0, 192], sizes = [8, 64], strides = [1, 1]} : vector<8x256xf32> to vector<8x64xf32>
    %488 = arith.mulf %485, %469 : vector<8x64xf32>
    %489 = arith.mulf %484, %486 : vector<8x64xf32>
    %490 = arith.addf %488, %489 : vector<8x64xf32>
    %491 = math.tanh %490 : vector<8x64xf32>
    %492 = arith.mulf %487, %491 : vector<8x64xf32>
    %c23_i32 = arith.constant 23 : i32
    %c8_i32_103 = arith.constant 8 : i32
    %493 = arith.muli %c23_i32, %c8_i32_103 : i32
    %494 = tpu.assume_multiple %493, 8 : i32
    %495 = arith.index_cast %494 : i32 to index
    %c0_104 = arith.constant 0 : index
    %496 = vector.load %arg11[%495, %c0_104] : memref<224x256xf32, #tpu.memory_space<vmem>>, vector<8x256xf32>
    %cst_105 = arith.constant dense<0.000000e+00> : vector<8x256xf32>
    %497 = tpu.matmul %492, %7, %cst_105 {dimension_numbers = #tpu.dot_dimension_numbers<[1], [0], [0], [1], [0, 0, 1, 1], [], []>} : vector<8x64xf32>, vector<64x256xf32>, vector<8x256xf32> -> vector<8x256xf32>
    %498 = arith.addf %496, %497 : vector<8x256xf32>
    %499 = arith.negf %498 : vector<8x256xf32>
    %500 = math.exp %499 : vector<8x256xf32>
    %cst_106 = arith.constant 1.000000e+00 : f32
    %501 = vector.broadcast %cst_106 : f32 to vector<8x256xf32>
    %502 = arith.addf %501, %500 : vector<8x256xf32>
    %503 = arith.divf %501, %502 : vector<8x256xf32>
    %504 = math.tanh %498 : vector<8x256xf32>
    %505 = vector.extract_strided_slice %503 {offsets = [0, 0], sizes = [8, 64], strides = [1, 1]} : vector<8x256xf32> to vector<8x64xf32>
    %506 = vector.extract_strided_slice %503 {offsets = [0, 64], sizes = [8, 64], strides = [1, 1]} : vector<8x256xf32> to vector<8x64xf32>
    %507 = vector.extract_strided_slice %504 {offsets = [0, 128], sizes = [8, 64], strides = [1, 1]} : vector<8x256xf32> to vector<8x64xf32>
    %508 = vector.extract_strided_slice %503 {offsets = [0, 192], sizes = [8, 64], strides = [1, 1]} : vector<8x256xf32> to vector<8x64xf32>
    %509 = arith.mulf %506, %490 : vector<8x64xf32>
    %510 = arith.mulf %505, %507 : vector<8x64xf32>
    %511 = arith.addf %509, %510 : vector<8x64xf32>
    %512 = math.tanh %511 : vector<8x64xf32>
    %513 = arith.mulf %508, %512 : vector<8x64xf32>
    %c24_i32 = arith.constant 24 : i32
    %c8_i32_107 = arith.constant 8 : i32
    %514 = arith.muli %c24_i32, %c8_i32_107 : i32
    %515 = tpu.assume_multiple %514, 8 : i32
    %516 = arith.index_cast %515 : i32 to index
    %c0_108 = arith.constant 0 : index
    %517 = vector.load %arg11[%516, %c0_108] : memref<224x256xf32, #tpu.memory_space<vmem>>, vector<8x256xf32>
    %cst_109 = arith.constant dense<0.000000e+00> : vector<8x256xf32>
    %518 = tpu.matmul %513, %7, %cst_109 {dimension_numbers = #tpu.dot_dimension_numbers<[1], [0], [0], [1], [0, 0, 1, 1], [], []>} : vector<8x64xf32>, vector<64x256xf32>, vector<8x256xf32> -> vector<8x256xf32>
    %519 = arith.addf %517, %518 : vector<8x256xf32>
    %520 = arith.negf %519 : vector<8x256xf32>
    %521 = math.exp %520 : vector<8x256xf32>
    %cst_110 = arith.constant 1.000000e+00 : f32
    %522 = vector.broadcast %cst_110 : f32 to vector<8x256xf32>
    %523 = arith.addf %522, %521 : vector<8x256xf32>
    %524 = arith.divf %522, %523 : vector<8x256xf32>
    %525 = math.tanh %519 : vector<8x256xf32>
    %526 = vector.extract_strided_slice %524 {offsets = [0, 0], sizes = [8, 64], strides = [1, 1]} : vector<8x256xf32> to vector<8x64xf32>
    %527 = vector.extract_strided_slice %524 {offsets = [0, 64], sizes = [8, 64], strides = [1, 1]} : vector<8x256xf32> to vector<8x64xf32>
    %528 = vector.extract_strided_slice %525 {offsets = [0, 128], sizes = [8, 64], strides = [1, 1]} : vector<8x256xf32> to vector<8x64xf32>
    %529 = vector.extract_strided_slice %524 {offsets = [0, 192], sizes = [8, 64], strides = [1, 1]} : vector<8x256xf32> to vector<8x64xf32>
    %530 = arith.mulf %527, %511 : vector<8x64xf32>
    %531 = arith.mulf %526, %528 : vector<8x64xf32>
    %532 = arith.addf %530, %531 : vector<8x64xf32>
    %533 = math.tanh %532 : vector<8x64xf32>
    %534 = arith.mulf %529, %533 : vector<8x64xf32>
    %c25_i32 = arith.constant 25 : i32
    %c8_i32_111 = arith.constant 8 : i32
    %535 = arith.muli %c25_i32, %c8_i32_111 : i32
    %536 = tpu.assume_multiple %535, 8 : i32
    %537 = arith.index_cast %536 : i32 to index
    %c0_112 = arith.constant 0 : index
    %538 = vector.load %arg11[%537, %c0_112] : memref<224x256xf32, #tpu.memory_space<vmem>>, vector<8x256xf32>
    %cst_113 = arith.constant dense<0.000000e+00> : vector<8x256xf32>
    %539 = tpu.matmul %534, %7, %cst_113 {dimension_numbers = #tpu.dot_dimension_numbers<[1], [0], [0], [1], [0, 0, 1, 1], [], []>} : vector<8x64xf32>, vector<64x256xf32>, vector<8x256xf32> -> vector<8x256xf32>
    %540 = arith.addf %538, %539 : vector<8x256xf32>
    %541 = arith.negf %540 : vector<8x256xf32>
    %542 = math.exp %541 : vector<8x256xf32>
    %cst_114 = arith.constant 1.000000e+00 : f32
    %543 = vector.broadcast %cst_114 : f32 to vector<8x256xf32>
    %544 = arith.addf %543, %542 : vector<8x256xf32>
    %545 = arith.divf %543, %544 : vector<8x256xf32>
    %546 = math.tanh %540 : vector<8x256xf32>
    %547 = vector.extract_strided_slice %545 {offsets = [0, 0], sizes = [8, 64], strides = [1, 1]} : vector<8x256xf32> to vector<8x64xf32>
    %548 = vector.extract_strided_slice %545 {offsets = [0, 64], sizes = [8, 64], strides = [1, 1]} : vector<8x256xf32> to vector<8x64xf32>
    %549 = vector.extract_strided_slice %546 {offsets = [0, 128], sizes = [8, 64], strides = [1, 1]} : vector<8x256xf32> to vector<8x64xf32>
    %550 = vector.extract_strided_slice %545 {offsets = [0, 192], sizes = [8, 64], strides = [1, 1]} : vector<8x256xf32> to vector<8x64xf32>
    %551 = arith.mulf %548, %532 : vector<8x64xf32>
    %552 = arith.mulf %547, %549 : vector<8x64xf32>
    %553 = arith.addf %551, %552 : vector<8x64xf32>
    %554 = math.tanh %553 : vector<8x64xf32>
    %555 = arith.mulf %550, %554 : vector<8x64xf32>
    %c26_i32 = arith.constant 26 : i32
    %c8_i32_115 = arith.constant 8 : i32
    %556 = arith.muli %c26_i32, %c8_i32_115 : i32
    %557 = tpu.assume_multiple %556, 8 : i32
    %558 = arith.index_cast %557 : i32 to index
    %c0_116 = arith.constant 0 : index
    %559 = vector.load %arg11[%558, %c0_116] : memref<224x256xf32, #tpu.memory_space<vmem>>, vector<8x256xf32>
    %cst_117 = arith.constant dense<0.000000e+00> : vector<8x256xf32>
    %560 = tpu.matmul %555, %7, %cst_117 {dimension_numbers = #tpu.dot_dimension_numbers<[1], [0], [0], [1], [0, 0, 1, 1], [], []>} : vector<8x64xf32>, vector<64x256xf32>, vector<8x256xf32> -> vector<8x256xf32>
    %561 = arith.addf %559, %560 : vector<8x256xf32>
    %562 = arith.negf %561 : vector<8x256xf32>
    %563 = math.exp %562 : vector<8x256xf32>
    %cst_118 = arith.constant 1.000000e+00 : f32
    %564 = vector.broadcast %cst_118 : f32 to vector<8x256xf32>
    %565 = arith.addf %564, %563 : vector<8x256xf32>
    %566 = arith.divf %564, %565 : vector<8x256xf32>
    %567 = math.tanh %561 : vector<8x256xf32>
    %568 = vector.extract_strided_slice %566 {offsets = [0, 0], sizes = [8, 64], strides = [1, 1]} : vector<8x256xf32> to vector<8x64xf32>
    %569 = vector.extract_strided_slice %566 {offsets = [0, 64], sizes = [8, 64], strides = [1, 1]} : vector<8x256xf32> to vector<8x64xf32>
    %570 = vector.extract_strided_slice %567 {offsets = [0, 128], sizes = [8, 64], strides = [1, 1]} : vector<8x256xf32> to vector<8x64xf32>
    %571 = vector.extract_strided_slice %566 {offsets = [0, 192], sizes = [8, 64], strides = [1, 1]} : vector<8x256xf32> to vector<8x64xf32>
    %572 = arith.mulf %569, %553 : vector<8x64xf32>
    %573 = arith.mulf %568, %570 : vector<8x64xf32>
    %574 = arith.addf %572, %573 : vector<8x64xf32>
    %575 = math.tanh %574 : vector<8x64xf32>
    %576 = arith.mulf %571, %575 : vector<8x64xf32>
    %c27_i32 = arith.constant 27 : i32
    %c8_i32_119 = arith.constant 8 : i32
    %577 = arith.muli %c27_i32, %c8_i32_119 : i32
    %578 = tpu.assume_multiple %577, 8 : i32
    %579 = arith.index_cast %578 : i32 to index
    %c0_120 = arith.constant 0 : index
    %580 = vector.load %arg11[%579, %c0_120] : memref<224x256xf32, #tpu.memory_space<vmem>>, vector<8x256xf32>
    %cst_121 = arith.constant dense<0.000000e+00> : vector<8x256xf32>
    %581 = tpu.matmul %576, %7, %cst_121 {dimension_numbers = #tpu.dot_dimension_numbers<[1], [0], [0], [1], [0, 0, 1, 1], [], []>} : vector<8x64xf32>, vector<64x256xf32>, vector<8x256xf32> -> vector<8x256xf32>
    %582 = arith.addf %580, %581 : vector<8x256xf32>
    %583 = arith.negf %582 : vector<8x256xf32>
    %584 = math.exp %583 : vector<8x256xf32>
    %cst_122 = arith.constant 1.000000e+00 : f32
    %585 = vector.broadcast %cst_122 : f32 to vector<8x256xf32>
    %586 = arith.addf %585, %584 : vector<8x256xf32>
    %587 = arith.divf %585, %586 : vector<8x256xf32>
    %588 = math.tanh %582 : vector<8x256xf32>
    %589 = vector.extract_strided_slice %587 {offsets = [0, 0], sizes = [8, 64], strides = [1, 1]} : vector<8x256xf32> to vector<8x64xf32>
    %590 = vector.extract_strided_slice %587 {offsets = [0, 64], sizes = [8, 64], strides = [1, 1]} : vector<8x256xf32> to vector<8x64xf32>
    %591 = vector.extract_strided_slice %588 {offsets = [0, 128], sizes = [8, 64], strides = [1, 1]} : vector<8x256xf32> to vector<8x64xf32>
    %592 = vector.extract_strided_slice %587 {offsets = [0, 192], sizes = [8, 64], strides = [1, 1]} : vector<8x256xf32> to vector<8x64xf32>
    %593 = arith.mulf %590, %574 : vector<8x64xf32>
    %594 = arith.mulf %589, %591 : vector<8x64xf32>
    %595 = arith.addf %593, %594 : vector<8x64xf32>
    %596 = math.tanh %595 : vector<8x64xf32>
    %597 = arith.mulf %592, %596 : vector<8x64xf32>
    %c28_i32 = arith.constant 28 : i32
    %c0_123 = arith.constant 0 : index
    %c0_124 = arith.constant 0 : index
    %598 = vector.load %arg4[%c0_123, %c0_124] : memref<1x64xf32, #tpu.memory_space<vmem>>, vector<1x64xf32>
    %599 = vector.broadcast %598 : vector<1x64xf32> to vector<8x64xf32>
    %600 = arith.mulf %597, %599 : vector<8x64xf32>
    %c0_125 = arith.constant 0 : index
    %c0_126 = arith.constant 0 : index
    %601 = vector.load %arg5[%c0_125, %c0_126] : memref<1x64xf32, #tpu.memory_space<vmem>>, vector<1x64xf32>
    %602 = vector.broadcast %601 : vector<1x64xf32> to vector<8x64xf32>
    %603 = arith.addf %600, %602 : vector<8x64xf32>
    %c0_127 = arith.constant 0 : index
    %c0_128 = arith.constant 0 : index
    %604 = vector.load %arg6[%c0_127, %c0_128] : memref<64x64xf32, #tpu.memory_space<vmem>>, vector<64x64xf32>
    %cst_129 = arith.constant dense<0.000000e+00> : vector<8x64xf32>
    %605 = tpu.matmul %603, %604, %cst_129 {dimension_numbers = #tpu.dot_dimension_numbers<[1], [0], [0], [1], [0, 0, 1, 1], [], []>} : vector<8x64xf32>, vector<64x64xf32>, vector<8x64xf32> -> vector<8x64xf32>
    %c0_130 = arith.constant 0 : index
    %c0_131 = arith.constant 0 : index
    %606 = vector.load %arg7[%c0_130, %c0_131] : memref<1x64xf32, #tpu.memory_space<vmem>>, vector<1x64xf32>
    %607 = vector.broadcast %606 : vector<1x64xf32> to vector<8x64xf32>
    %608 = arith.addf %605, %607 : vector<8x64xf32>
    %cst_132 = arith.constant 5.000000e-01 : f32
    %609 = vector.broadcast %cst_132 : f32 to vector<8x64xf32>
    %610 = arith.mulf %609, %608 : vector<8x64xf32>
    %cst_133 = arith.constant 0.707106769 : f32
    %611 = vector.broadcast %cst_133 : f32 to vector<8x64xf32>
    %612 = arith.mulf %608, %611 : vector<8x64xf32>
    %613 = math.erf %612 : vector<8x64xf32>
    %cst_134 = arith.constant 1.000000e+00 : f32
    %614 = vector.broadcast %cst_134 : f32 to vector<8x64xf32>
    %615 = arith.addf %614, %613 : vector<8x64xf32>
    %616 = arith.mulf %610, %615 : vector<8x64xf32>
    %c0_135 = arith.constant 0 : index
    %c0_136 = arith.constant 0 : index
    %617 = vector.load %arg8[%c0_135, %c0_136] : memref<64x128xf32, #tpu.memory_space<vmem>>, vector<64x128xf32>
    %cst_137 = arith.constant dense<0.000000e+00> : vector<8x128xf32>
    %618 = tpu.matmul %616, %617, %cst_137 {dimension_numbers = #tpu.dot_dimension_numbers<[1], [0], [0], [1], [0, 0, 1, 1], [], []>} : vector<8x64xf32>, vector<64x128xf32>, vector<8x128xf32> -> vector<8x128xf32>
    %c0_138 = arith.constant 0 : index
    %c0_139 = arith.constant 0 : index
    %619 = vector.load %arg9[%c0_138, %c0_139] : memref<1x128xf32, #tpu.memory_space<vmem>>, vector<1x128xf32>
    %620 = vector.broadcast %619 : vector<1x128xf32> to vector<8x128xf32>
    %621 = arith.addf %618, %620 : vector<8x128xf32>
    %cst_140 = arith.constant dense<0xFF800000> : vector<8xf32>
    %622 = vector.multi_reduction <maximumf>, %621, %cst_140 [1] : vector<8x128xf32> to vector<8xf32>
    %623 = vector.shape_cast %622 : vector<8xf32> to vector<8x1xf32>
    %624 = vector.broadcast %623 : vector<8x1xf32> to vector<8x128xf32>
    %625 = arith.subf %621, %624 : vector<8x128xf32>
    %626 = math.exp %625 : vector<8x128xf32>
    %cst_141 = arith.constant dense<0.000000e+00> : vector<8xf32>
    %627 = vector.multi_reduction <add>, %626, %cst_141 [1] : vector<8x128xf32> to vector<8xf32>
    %628 = vector.shape_cast %627 : vector<8xf32> to vector<8x1xf32>
    %629 = math.log %628 : vector<8x1xf32>
    %630 = arith.addf %623, %629 : vector<8x1xf32>
    %631 = vector.broadcast %630 : vector<8x1xf32> to vector<8x128xf32>
    %632 = arith.subf %621, %631 : vector<8x128xf32>
    %c0_142 = arith.constant 0 : index
    %c0_143 = arith.constant 0 : index
    %633 = vector.load %arg10[%c0_142, %c0_143] : memref<8x128xf32, #tpu.memory_space<vmem>>, vector<8x128xf32>
    tpu.vector_store %arg10[%c0_142, %c0_143], %632 {strides = array<i32>} : memref<8x128xf32, #tpu.memory_space<vmem>>, vector<8x128xf32>,
    return
  }
}

</mosaic_0001>

<llo_original>
// kernel: model_forward.1
$region0: #{model_forward.1}
  #allocation0 [shape = 'u32[]', space=smem, size = 0x4, offset = 0x4, fixed_abs, tag = 'smem constant byte address 0x4 - core index']
  #allocation1 [shape = 'u32[144,128]{1,0:T(1,128)}', space=vmem, size = 0x12000, scoped, tag = 'internal scratch']
  #allocation2 [shape = 'f32[224,256]{1,0:T(8,128)}', space=vmem, size = 0x38000, scoped, tag = 'scratch operand']
  %s0 = inlined_call_operand.vmem [shape: f32[224,56], index: 0, kind: input, shape index: {}]
  %s1 = inlined_call_operand.vmem [shape: f32[56,256], index: 1, kind: input, shape index: {}]
  %s2 = inlined_call_operand.vmem [shape: f32[64,256], index: 2, kind: input, shape index: {}]
  %s3 = inlined_call_operand.vmem [shape: f32[1,256], index: 3, kind: input, shape index: {}]
  %s4 = inlined_call_operand.vmem [shape: f32[1,64], index: 4, kind: input, shape index: {}]
  %s5 = inlined_call_operand.vmem [shape: f32[1,64], index: 5, kind: input, shape index: {}]
  %s6 = inlined_call_operand.vmem [shape: f32[64,64], index: 6, kind: input, shape index: {}]
  %s7 = inlined_call_operand.vmem [shape: f32[1,64], index: 7, kind: input, shape index: {}]
  %s8 = inlined_call_operand.vmem [shape: f32[64,128], index: 8, kind: input, shape index: {}]
  %s9 = inlined_call_operand.vmem [shape: f32[1,128], index: 9, kind: input, shape index: {}]
  %s10 = inlined_call_operand.hbm [shape: f32[8,128], index: 10, kind: output, shape index: {}]
  %s11 = sld [smem:[#allocation0]]
  $region50: #{model_forward.1} parent=0
    _
  %s13 = ssub.s32 1, %s11
  %s14 = scalar_select 0, %s13, %s11
  $region1: #{model_forward.1} parent=0
    #allocation3 [shape = 'u8[4096]{0}', space=vmem, size = 0x1000, scoped, tag = 'output window, operand 0, single buffered']
    #allocation4 [shape = 's32[1]{0}', space=sflag, size = 0x4, scoped, tag = 'scoped memory for model_forward.1']
    %15 = vsyncpa [#allocation4], 0
    // Predicated region
    $region2: #{model_forward.1} parent=1 // pred_check
      _
    $region3: #{model_forward.1} parent=1 // pred_check_branch
      %17 = sbr.rel (0) target = $region5
    $region4: #{model_forward.1} parent=1 // pred_region
      _
    $region5: #{model_forward.1} parent=1 // pred_fallthru
      _
    // Predicated region
    $region6: #{model_forward.1} parent=1 // pred_check
      _
    $region7: #{model_forward.1} parent=1 // pred_check_branch
      %19 = sbr.rel (0) target = $region9
    $region8: #{model_forward.1} parent=1 // pred_region
      _
    $region9: #{model_forward.1} parent=1 // pred_fallthru
      _
    // Predicated region
    $region10: #{model_forward.1} parent=1 // pred_check
      _
    $region11: #{model_forward.1} parent=1 // pred_check_branch
      %21 = sbr.rel (0) target = $region13
    $region12: #{model_forward.1} parent=1 // pred_region
      _
    $region13: #{model_forward.1} parent=1 // pred_fallthru
      _
    // Predicated region
    $region14: #{model_forward.1} parent=1 // pred_check
      _
    $region15: #{model_forward.1} parent=1 // pred_check_branch
      %23 = sbr.rel (0) target = $region17
    $region16: #{model_forward.1} parent=1 // pred_region
      _
    $region17: #{model_forward.1} parent=1 // pred_fallthru
      _
    // Predicated region
    $region18: #{model_forward.1} parent=1 // pred_check
      _
    $region19: #{model_forward.1} parent=1 // pred_check_branch
      %25 = sbr.rel (0) target = $region21
    $region20: #{model_forward.1} parent=1 // pred_region
      _
    $region21: #{model_forward.1} parent=1 // pred_fallthru
      _
    // Predicated region
    $region22: #{model_forward.1} parent=1 // pred_check
      _
    $region23: #{model_forward.1} parent=1 // pred_check_branch
      %27 = sbr.rel (0) target = $region25
    $region24: #{model_forward.1} parent=1 // pred_region
      _
    $region25: #{model_forward.1} parent=1 // pred_fallthru
      _
    // Predicated region
    $region26: #{model_forward.1} parent=1 // pred_check
      _
    $region27: #{model_forward.1} parent=1 // pred_check_branch
      %29 = sbr.rel (0) target = $region29
    $region28: #{model_forward.1} parent=1 // pred_region
      _
    $region29: #{model_forward.1} parent=1 // pred_fallthru
      _
    // Predicated region
    $region30: #{model_forward.1} parent=1 // pred_check
      _
    $region31: #{model_forward.1} parent=1 // pred_check_branch
      %31 = sbr.rel (0) target = $region33
    $region32: #{model_forward.1} parent=1 // pred_region
      _
    $region33: #{model_forward.1} parent=1 // pred_fallthru
      _
    // Predicated region
    $region34: #{model_forward.1} parent=1 // pred_check
      _
    $region35: #{model_forward.1} parent=1 // pred_check_branch
      %33 = sbr.rel (0) target = $region37
    $region36: #{model_forward.1} parent=1 // pred_region
      _
    $region37: #{model_forward.1} parent=1 // pred_fallthru
      _
    // Predicated region
    $region38: #{model_forward.1} parent=1 // pred_check
      _
    $region39: #{model_forward.1} parent=1 // pred_check_branch
      %35 = sbr.rel (0) target = $region41
    $region40: #{model_forward.1} parent=1 // pred_region
      _
    $region41: #{model_forward.1} parent=1 // pred_fallthru
      _
    %v36 = vld [vmem:[%s0] sm:$0xff]
    %v37 = vld [vmem:[%s0 + $0x8] sm:$0xff]
    %v38 = vld [vmem:[%s0 + $0x10] sm:$0xff]
    %v39 = vld [vmem:[%s0 + $0x18] sm:$0xff]
    %v40 = vld [vmem:[%s0 + $0x20] sm:$0xff]
    %v41 = vld [vmem:[%s0 + $0x28] sm:$0xff]
    %v42 = vld [vmem:[%s0 + $0x30] sm:$0xff]
    %v43 = vld [vmem:[%s0 + $0x38] sm:$0xff]
    %v44 = vld [vmem:[%s0 + $0x40] sm:$0xff]
    %v45 = vld [vmem:[%s0 + $0x48] sm:$0xff]
    %v46 = vld [vmem:[%s0 + $0x50] sm:$0xff]
    %v47 = vld [vmem:[%s0 + $0x58] sm:$0xff]
    %v48 = vld [vmem:[%s0 + $0x60] sm:$0xff]
    %v49 = vld [vmem:[%s0 + $0x68] sm:$0xff]
    %v50 = vld [vmem:[%s0 + $0x70] sm:$0xff]
    %v51 = vld [vmem:[%s0 + $0x78] sm:$0xff]
    %v52 = vld [vmem:[%s0 + $0x80] sm:$0xff]
    %v53 = vld [vmem:[%s0 + $0x88] sm:$0xff]
    %v54 = vld [vmem:[%s0 + $0x90] sm:$0xff]
    %v55 = vld [vmem:[%s0 + $0x98] sm:$0xff]
    %v56 = vld [vmem:[%s0 + $0xa0] sm:$0xff]
    %v57 = vld [vmem:[%s0 + $0xa8] sm:$0xff]
    %v58 = vld [vmem:[%s0 + $0xb0] sm:$0xff]
    %v59 = vld [vmem:[%s0 + $0xb8] sm:$0xff]
    %v60 = vld [vmem:[%s0 + $0xc0] sm:$0xff]
    %v61 = vld [vmem:[%s0 + $0xc8] sm:$0xff]
    %v62 = vld [vmem:[%s0 + $0xd0] sm:$0xff]
    %v63 = vld [vmem:[%s0 + $0xd8] sm:$0xff]
    %v64 = vld [vmem:[%s1] sm:$0xff]
    %v65 = vld [vmem:[%s1 + $0x8] sm:$0xff]
    %v66 = vld [vmem:[%s1 + $0x10] sm:$0xff]
    %v67 = vld [vmem:[%s1 + $0x18] sm:$0xff]
    %v68 = vld [vmem:[%s1 + $0x20] sm:$0xff]
    %v69 = vld [vmem:[%s1 + $0x28] sm:$0xff]
    %v70 = vld [vmem:[%s1 + $0x30] sm:$0xff]
    %v71 = vld [vmem:[%s1 + $0x38] sm:$0xff]
    %v72 = vld [vmem:[%s1 + $0x40] sm:$0xff]
    %v73 = vld [vmem:[%s1 + $0x48] sm:$0xff]
    %v74 = vld [vmem:[%s1 + $0x50] sm:$0xff]
    %v75 = vld [vmem:[%s1 + $0x58] sm:$0xff]
    %v76 = vld [vmem:[%s1 + $0x60] sm:$0xff]
    %v77 = vld [vmem:[%s1 + $0x68] sm:$0xff]
    %v78 = vld [vmem:[%s3] sm:$0x3]
    %v80 = vlaneseq
    %v81 = vshrl.u32 %v80, 7
    %v82 = vsub.s32 0, %v81
    %v83 = vrot.slane %v78, %v82
    %v84 = vlaneseq
    %v85 = vshrl.u32 %v84, 7
    %v86 = vsub.s32 1, %v85
    %v87 = vrot.slane %v78, %v86
    %vm90 = vcmask 457728
    %v92 = vsel %vm90, %v36, 0
    %v95 = vsel %vm90, %v37, 0
    %v98 = vsel %vm90, %v38, 0
    %v101 = vsel %vm90, %v39, 0
    %v104 = vsel %vm90, %v40, 0
    %v107 = vsel %vm90, %v41, 0
    %v110 = vsel %vm90, %v42, 0
    %v113 = vsel %vm90, %v43, 0
    %v116 = vsel %vm90, %v44, 0
    %v119 = vsel %vm90, %v45, 0
    %v122 = vsel %vm90, %v46, 0
    %v125 = vsel %vm90, %v47, 0
    %v128 = vsel %vm90, %v48, 0
    %v131 = vsel %vm90, %v49, 0
    %v134 = vsel %vm90, %v50, 0
    %v137 = vsel %vm90, %v51, 0
    %v140 = vsel %vm90, %v52, 0
    %v143 = vsel %vm90, %v53, 0
    %v146 = vsel %vm90, %v54, 0
    %v149 = vsel %vm90, %v55, 0
    %v152 = vsel %vm90, %v56, 0
    %v155 = vsel %vm90, %v57, 0
    %v158 = vsel %vm90, %v58, 0
    %v161 = vsel %vm90, %v59, 0
    %v164 = vsel %vm90, %v60, 0
    %v167 = vsel %vm90, %v61, 0
    %v170 = vsel %vm90, %v62, 0
    %v173 = vsel %vm90, %v63, 0
    %175 = vmatprep.subr.mxu0 %v65
    %176 = vmatpush1.msra.mxu0 %v64
    %177 = vmatprep.subr.mxu0 %v67
    %178 = vmatpush1.msra.mxu0 %v66
    %179 = vmatprep.subr.mxu0 %v69
    %180 = vmatpush1.msra.mxu0 %v68
    %181 = vmatprep.subr.mxu0 %v71
    %182 = vmatpush1.msra.mxu0 %v70
    %183 = vmatprep.subr.mxu0 %v73
    %184 = vmatpush1.msra.mxu0 %v72
    %185 = vmatprep.subr.mxu0 %v75
    %186 = vmatpush1.msra.mxu0 %v74
    %187 = vmatprep.subr.mxu0 %v77
    %188 = vmatpush1.msra.mxu0 %v76
    %189 = vmatprep.subr.mxu0 0.0
    %190 = vmatpush1.msra.mxu0 0.0
    %191 = vmatprep.subr.mxu0 0.0
    %192 = vmatpush1.msra.mxu0 0.0
    %193 = vmatprep.subr.mxu0 0.0
    %194 = vmatpush1.msra.mxu0 0.0
    %195 = vmatprep.subr.mxu0 0.0
    %196 = vmatpush1.msra.mxu0 0.0
    %197 = vmatprep.subr.mxu0 0.0
    %198 = vmatpush1.msra.mxu0 0.0
    %199 = vmatprep.subr.mxu0 0.0
    %200 = vmatpush1.msra.mxu0 0.0
    %201 = vmatprep.subr.mxu0 0.0
    %202 = vmatpush1.msra.mxu0 0.0
    %203 = vmatprep.subr.mxu0 0.0
    %204 = vmatpush1.msra.mxu0 0.0
    %205 = vmatprep.subr.mxu0 0.0
    %206 = vmatpush1.msra.mxu0 0.0
    %207 = vmatprep.subr.mxu0 0.0
    %208 = vmatpush1.msra.mxu0 0.0
    %209 = vmatprep.subr.mxu0 0.0
    %210 = vmatpush1.msra.mxu0 0.0
    %211 = vmatprep.subr.mxu0 0.0
    %212 = vmatpush1.msra.mxu0 0.0
    %213 = vmatprep.subr.mxu0 0.0
    %214 = vmatpush1.msra.mxu0 0.0
    %215 = vmatprep.subr.mxu0 0.0
    %216 = vmatpush1.msra.mxu0 0.0
    %217 = vmatprep.subr.mxu0 0.0
    %218 = vmatpush1.msra.mxu0 0.0
    %219 = vmatprep.subr.mxu0 0.0
    %220 = vmatpush1.msra.mxu0 0.0
    %221 = vmatprep.subr.mxu0 0.0
    %222 = vmatpush1.msra.mxu0 0.0
    %223 = vmatprep.subr.mxu0 0.0
    %224 = vmatpush1.msra.mxu0 0.0
    %225 = vmatprep.subr.mxu0 0.0
    %226 = vmatpush1.msra.mxu0 0.0
    %227 = vmatprep.subr.mxu0 0.0
    %228 = vmatpush1.msra.mxu0 0.0
    %229 = vmatprep.subr.mxu0 0.0
    %230 = vmatpush1.msra.mxu0 0.0
    %231 = vmatprep.subr.mxu0 0.0
    %232 = vmatpush1.msra.mxu0 0.0
    %233 = vmatprep.subr.mxu0 0.0
    %234 = vmatpush1.msra.mxu0 0.0
    %235 = vmatprep.subr.mxu0 0.0
    %236 = vmatpush1.msra.mxu0 0.0
    %237 = vmatprep.subr.mxu0 0.0
    %238 = vmatpush1.msra.mxu0 0.0
    %239 = vmatprep.mubr.f32.mxu0 0.0
    %240 = vmatmul.mubr.f32.gmra.mrb[0].mxu0 %v92
    %v241 = vpop.f32.mrb[0].mxu0
    %v242 = vadd.f32 %v83, %v241
    %v243 = vpop.f32.mrb[0].mxu0
    %v244 = vadd.f32 %v87, %v243
    %245 = vmatprep.mubr.f32.mxu0 0.0
    %246 = vmatmul.mubr.f32.gmra.mrb[0].mxu0 %v95
    %v247 = vpop.f32.mrb[0].mxu0
    %v248 = vadd.f32 %v83, %v247
    %v249 = vpop.f32.mrb[0].mxu0
    %v250 = vadd.f32 %v87, %v249
    %251 = vmatprep.mubr.f32.mxu0 0.0
    %252 = vmatmul.mubr.f32.gmra.mrb[0].mxu0 %v98
    %v253 = vpop.f32.mrb[0].mxu0
    %v254 = vadd.f32 %v83, %v253
    %v255 = vpop.f32.mrb[0].mxu0
    %v256 = vadd.f32 %v87, %v255
    %257 = vmatprep.mubr.f32.mxu0 0.0
    %258 = vmatmul.mubr.f32.gmra.mrb[0].mxu0 %v101
    %v259 = vpop.f32.mrb[0].mxu0
    %v260 = vadd.f32 %v83, %v259
    %v261 = vpop.f32.mrb[0].mxu0
    %v262 = vadd.f32 %v87, %v261
    %263 = vmatprep.mubr.f32.mxu0 0.0
    %264 = vmatmul.mubr.f32.gmra.mrb[0].mxu0 %v104
    %v265 = vpop.f32.mrb[0].mxu0
    %v266 = vadd.f32 %v83, %v265
    %v267 = vpop.f32.mrb[0].mxu0
    %v268 = vadd.f32 %v87, %v267
    %269 = vmatprep.mubr.f32.mxu0 0.0
    %270 = vmatmul.mubr.f32.gmra.mrb[0].mxu0 %v107
    %v271 = vpop.f32.mrb[0].mxu0
    %v272 = vadd.f32 %v83, %v271
    %v273 = vpop.f32.mrb[0].mxu0
    %v274 = vadd.f32 %v87, %v273
    %275 = vmatprep.mubr.f32.mxu0 0.0
    %276 = vmatmul.mubr.f32.gmra.mrb[0].mxu0 %v110
    %v277 = vpop.f32.mrb[0].mxu0
    %v278 = vadd.f32 %v83, %v277
    %v279 = vpop.f32.mrb[0].mxu0
    %v280 = vadd.f32 %v87, %v279
    %281 = vmatprep.mubr.f32.mxu0 0.0
    %282 = vmatmul.mubr.f32.gmra.mrb[0].mxu0 %v113
    %v283 = vpop.f32.mrb[0].mxu0
    %v284 = vadd.f32 %v83, %v283
    %v285 = vpop.f32.mrb[0].mxu0
    %v286 = vadd.f32 %v87, %v285
    %287 = vmatprep.mubr.f32.mxu0 0.0
    %288 = vmatmul.mubr.f32.gmra.mrb[0].mxu0 %v116
    %v289 = vpop.f32.mrb[0].mxu0
    %v290 = vadd.f32 %v83, %v289
    %v291 = vpop.f32.mrb[0].mxu0
    %v292 = vadd.f32 %v87, %v291
    %293 = vmatprep.mubr.f32.mxu0 0.0
    %294 = vmatmul.mubr.f32.gmra.mrb[0].mxu0 %v119
    %v295 = vpop.f32.mrb[0].mxu0
    %v296 = vadd.f32 %v83, %v295
    %v297 = vpop.f32.mrb[0].mxu0
    %v298 = vadd.f32 %v87, %v297
    %299 = vmatprep.mubr.f32.mxu0 0.0
    %300 = vmatmul.mubr.f32.gmra.mrb[0].mxu0 %v122
    %v301 = vpop.f32.mrb[0].mxu0
    %v302 = vadd.f32 %v83, %v301
    %v303 = vpop.f32.mrb[0].mxu0
    %v304 = vadd.f32 %v87, %v303
    %305 = vmatprep.mubr.f32.mxu0 0.0
    %306 = vmatmul.mubr.f32.gmra.mrb[0].mxu0 %v125
    %v307 = vpop.f32.mrb[0].mxu0
    %v308 = vadd.f32 %v83, %v307
    %v309 = vpop.f32.mrb[0].mxu0
    %v310 = vadd.f32 %v87, %v309
    %311 = vmatprep.mubr.f32.mxu0 0.0
    %312 = vmatmul.mubr.f32.gmra.mrb[0].mxu0 %v128
    %v313 = vpop.f32.mrb[0].mxu0
    %v314 = vadd.f32 %v83, %v313
    %v315 = vpop.f32.mrb[0].mxu0
    %v316 = vadd.f32 %v87, %v315
    %317 = vmatprep.mubr.f32.mxu0 0.0
    %318 = vmatmul.mubr.f32.gmra.mrb[0].mxu0 %v131
    %v319 = vpop.f32.mrb[0].mxu0
    %v320 = vadd.f32 %v83, %v319
    %v321 = vpop.f32.mrb[0].mxu0
    %v322 = vadd.f32 %v87, %v321
    %323 = vmatprep.mubr.f32.mxu0 0.0
    %324 = vmatmul.mubr.f32.gmra.mrb[0].mxu0 %v134
    %v325 = vpop.f32.mrb[0].mxu0
    %v326 = vadd.f32 %v83, %v325
    %v327 = vpop.f32.mrb[0].mxu0
    %v328 = vadd.f32 %v87, %v327
    %329 = vmatprep.mubr.f32.mxu0 0.0
    %330 = vmatmul.mubr.f32.gmra.mrb[0].mxu0 %v137
    %v331 = vpop.f32.mrb[0].mxu0
    %v332 = vadd.f32 %v83, %v331
    %v333 = vpop.f32.mrb[0].mxu0
    %v334 = vadd.f32 %v87, %v333
    %335 = vmatprep.mubr.f32.mxu0 0.0
    %336 = vmatmul.mubr.f32.gmra.mrb[0].mxu0 %v140
    %v337 = vpop.f32.mrb[0].mxu0
    %v338 = vadd.f32 %v83, %v337
    %v339 = vpop.f32.mrb[0].mxu0
    %v340 = vadd.f32 %v87, %v339
    %341 = vmatprep.mubr.f32.mxu0 0.0
    %342 = vmatmul.mubr.f32.gmra.mrb[0].mxu0 %v143
    %v343 = vpop.f32.mrb[0].mxu0
    %v344 = vadd.f32 %v83, %v343
    %v345 = vpop.f32.mrb[0].mxu0
    %v346 = vadd.f32 %v87, %v345
    %347 = vmatprep.mubr.f32.mxu0 0.0
    %348 = vmatmul.mubr.f32.gmra.mrb[0].mxu0 %v146
    %v349 = vpop.f32.mrb[0].mxu0
    %v350 = vadd.f32 %v83, %v349
    %v351 = vpop.f32.mrb[0].mxu0
    %v352 = vadd.f32 %v87, %v351
    %353 = vmatprep.mubr.f32.mxu0 0.0
    %354 = vmatmul.mubr.f32.gmra.mrb[0].mxu0 %v149
    %v355 = vpop.f32.mrb[0].mxu0
    %v356 = vadd.f32 %v83, %v355
    %v357 = vpop.f32.mrb[0].mxu0
    %v358 = vadd.f32 %v87, %v357
    %359 = vmatprep.mubr.f32.mxu0 0.0
    %360 = vmatmul.mubr.f32.gmra.mrb[0].mxu0 %v152
    %v361 = vpop.f32.mrb[0].mxu0
    %v362 = vadd.f32 %v83, %v361
    %v363 = vpop.f32.mrb[0].mxu0
    %v364 = vadd.f32 %v87, %v363
    %365 = vmatprep.mubr.f32.mxu0 0.0
    %366 = vmatmul.mubr.f32.gmra.mrb[0].mxu0 %v155
    %v367 = vpop.f32.mrb[0].mxu0
    %v368 = vadd.f32 %v83, %v367
    %v369 = vpop.f32.mrb[0].mxu0
    %v370 = vadd.f32 %v87, %v369
    %371 = vmatprep.mubr.f32.mxu0 0.0
    %372 = vmatmul.mubr.f32.gmra.mrb[0].mxu0 %v158
    %v373 = vpop.f32.mrb[0].mxu0
    %v374 = vadd.f32 %v83, %v373
    %v375 = vpop.f32.mrb[0].mxu0
    %v376 = vadd.f32 %v87, %v375
    %377 = vmatprep.mubr.f32.mxu0 0.0
    %378 = vmatmul.mubr.f32.gmra.mrb[0].mxu0 %v161
    %v379 = vpop.f32.mrb[0].mxu0
    %v380 = vadd.f32 %v83, %v379
    %v381 = vpop.f32.mrb[0].mxu0
    %v382 = vadd.f32 %v87, %v381
    %383 = vmatprep.mubr.f32.mxu0 0.0
    %384 = vmatmul.mubr.f32.gmra.mrb[0].mxu0 %v164
    %v385 = vpop.f32.mrb[0].mxu0
    %v386 = vadd.f32 %v83, %v385
    %v387 = vpop.f32.mrb[0].mxu0
    %v388 = vadd.f32 %v87, %v387
    %389 = vmatprep.mubr.f32.mxu0 0.0
    %390 = vmatmul.mubr.f32.gmra.mrb[0].mxu0 %v167
    %v391 = vpop.f32.mrb[0].mxu0
    %v392 = vadd.f32 %v83, %v391
    %v393 = vpop.f32.mrb[0].mxu0
    %v394 = vadd.f32 %v87, %v393
    %395 = vmatprep.mubr.f32.mxu0 0.0
    %396 = vmatmul.mubr.f32.gmra.mrb[0].mxu0 %v170
    %v397 = vpop.f32.mrb[0].mxu0
    %v398 = vadd.f32 %v83, %v397
    %v399 = vpop.f32.mrb[0].mxu0
    %v400 = vadd.f32 %v87, %v399
    %401 = vmatprep.mubr.f32.mxu0 0.0
    %402 = vmatmul.mubr.f32.gmra.mrb[0].mxu0 %v173
    %v403 = vpop.f32.mrb[0].mxu0
    %v404 = vadd.f32 %v83, %v403
    %v405 = vpop.f32.mrb[0].mxu0
    %v406 = vadd.f32 %v87, %v405
    %407 = vdwg.mxu0
    %408 = vst [vmem:[#allocation2] sm:$0xff] %v242
    %409 = vst [vmem:[#allocation2 + $0x8] sm:$0xff] %v244
    %410 = vst [vmem:[#allocation2 + $0x10] sm:$0xff] %v248
    %411 = vst [vmem:[#allocation2 + $0x18] sm:$0xff] %v250
    %412 = vst [vmem:[#allocation2 + $0x20] sm:$0xff] %v254
    %413 = vst [vmem:[#allocation2 + $0x28] sm:$0xff] %v256
    %414 = vst [vmem:[#allocation2 + $0x30] sm:$0xff] %v260
    %415 = vst [vmem:[#allocation2 + $0x38] sm:$0xff] %v262
    %416 = vst [vmem:[#allocation2 + $0x40] sm:$0xff] %v266
    %417 = vst [vmem:[#allocation2 + $0x48] sm:$0xff] %v268
    %418 = vst [vmem:[#allocation2 + $0x50] sm:$0xff] %v272
    %419 = vst [vmem:[#allocation2 + $0x58] sm:$0xff] %v274
    %420 = vst [vmem:[#allocation2 + $0x60] sm:$0xff] %v278
    %421 = vst [vmem:[#allocation2 + $0x68] sm:$0xff] %v280
    %422 = vst [vmem:[#allocation2 + $0x70] sm:$0xff] %v284
    %423 = vst [vmem:[#allocation2 + $0x78] sm:$0xff] %v286
    %424 = vst [vmem:[#allocation2 + $0x80] sm:$0xff] %v290
    %425 = vst [vmem:[#allocation2 + $0x88] sm:$0xff] %v292
    %426 = vst [vmem:[#allocation2 + $0x90] sm:$0xff] %v296
    %427 = vst [vmem:[#allocation2 + $0x98] sm:$0xff] %v298
    %428 = vst [vmem:[#allocation2 + $0xa0] sm:$0xff] %v302
    %429 = vst [vmem:[#allocation2 + $0xa8] sm:$0xff] %v304
    %430 = vst [vmem:[#allocation2 + $0xb0] sm:$0xff] %v308
    %431 = vst [vmem:[#allocation2 + $0xb8] sm:$0xff] %v310
    %432 = vst [vmem:[#allocation2 + $0xc0] sm:$0xff] %v314
    %433 = vst [vmem:[#allocation2 + $0xc8] sm:$0xff] %v316
    %434 = vst [vmem:[#allocation2 + $0xd0] sm:$0xff] %v320
    %435 = vst [vmem:[#allocation2 + $0xd8] sm:$0xff] %v322
    %436 = vst [vmem:[#allocation2 + $0xe0] sm:$0xff] %v326
    %437 = vst [vmem:[#allocation2 + $0xe8] sm:$0xff] %v328
    %438 = vst [vmem:[#allocation2 + $0xf0] sm:$0xff] %v332
    %439 = vst [vmem:[#allocation2 + $0xf8] sm:$0xff] %v334
    %440 = vst [vmem:[#allocation2 + $0x100] sm:$0xff] %v338
    %441 = vst [vmem:[#allocation2 + $0x108] sm:$0xff] %v340
    %442 = vst [vmem:[#allocation2 + $0x110] sm:$0xff] %v344
    %443 = vst [vmem:[#allocation2 + $0x118] sm:$0xff] %v346
    %444 = vst [vmem:[#allocation2 + $0x120] sm:$0xff] %v350
    %445 = vst [vmem:[#allocation2 + $0x128] sm:$0xff] %v352
    %446 = vst [vmem:[#allocation2 + $0x130] sm:$0xff] %v356
    %447 = vst [vmem:[#allocation2 + $0x138] sm:$0xff] %v358
    %448 = vst [vmem:[#allocation2 + $0x140] sm:$0xff] %v362
    %449 = vst [vmem:[#allocation2 + $0x148] sm:$0xff] %v364
    %450 = vst [vmem:[#allocation2 + $0x150] sm:$0xff] %v368
    %451 = vst [vmem:[#allocation2 + $0x158] sm:$0xff] %v370
    %452 = vst [vmem:[#allocation2 + $0x160] sm:$0xff] %v374
    %453 = vst [vmem:[#allocation2 + $0x168] sm:$0xff] %v376
    %454 = vst [vmem:[#allocation2 + $0x170] sm:$0xff] %v380
    %455 = vst [vmem:[#allocation2 + $0x178] sm:$0xff] %v382
    %456 = vst [vmem:[#allocation2 + $0x180] sm:$0xff] %v386
    %457 = vst [vmem:[#allocation2 + $0x188] sm:$0xff] %v388
    %458 = vst [vmem:[#allocation2 + $0x190] sm:$0xff] %v392
    %459 = vst [vmem:[#allocation2 + $0x198] sm:$0xff] %v394
    %460 = vst [vmem:[#allocation2 + $0x1a0] sm:$0xff] %v398
    %461 = vst [vmem:[#allocation2 + $0x1a8] sm:$0xff] %v400
    %462 = vst [vmem:[#allocation2 + $0x1b0] sm:$0xff] %v404
    %463 = vst [vmem:[#allocation2 + $0x1b8] sm:$0xff] %v406
    %v464 = vld [vmem:[%s2] sm:$0xff]
    %v465 = vld [vmem:[%s2 + $0x8] sm:$0xff]
    %v466 = vld [vmem:[%s2 + $0x10] sm:$0xff]
    %v467 = vld [vmem:[%s2 + $0x18] sm:$0xff]
    %v468 = vld [vmem:[%s2 + $0x20] sm:$0xff]
    %v469 = vld [vmem:[%s2 + $0x28] sm:$0xff]
    %v470 = vld [vmem:[%s2 + $0x30] sm:$0xff]
    %v471 = vld [vmem:[%s2 + $0x38] sm:$0xff]
    %v472 = vld [vmem:[%s2 + $0x40] sm:$0xff]
    %v473 = vld [vmem:[%s2 + $0x48] sm:$0xff]
    %v474 = vld [vmem:[%s2 + $0x50] sm:$0xff]
    %v475 = vld [vmem:[%s2 + $0x58] sm:$0xff]
    %v476 = vld [vmem:[%s2 + $0x60] sm:$0xff]
    %v477 = vld [vmem:[%s2 + $0x68] sm:$0xff]
    %v478 = vld [vmem:[%s2 + $0x70] sm:$0xff]
    %v479 = vld [vmem:[%s2 + $0x78] sm:$0xff]
    %s480 = smul.u32 0, 2
    %s481 = smul.addr %s480, 8
    %s482 = scalar_lea.vmem [#allocation2], %s481
    %v483 = vld [vmem:[%s482] sm:$0xff]
    %v484 = vld [vmem:[%s482 + $0x8] sm:$0xff]
    %vm485 = vcmask 523264
    %v487 = vsel %vm485, 0.0, 0
    %489 = vmatprep.subr.mxu0 %v465
    %490 = vmatpush1.msra.mxu0 %v464
    %491 = vmatprep.subr.mxu0 %v467
    %492 = vmatpush1.msra.mxu0 %v466
    %493 = vmatprep.subr.mxu0 %v469
    %494 = vmatpush1.msra.mxu0 %v468
    %495 = vmatprep.subr.mxu0 %v471
    %496 = vmatpush1.msra.mxu0 %v470
    %497 = vmatprep.subr.mxu0 %v473
    %498 = vmatpush1.msra.mxu0 %v472
    %499 = vmatprep.subr.mxu0 %v475
    %500 = vmatpush1.msra.mxu0 %v474
    %501 = vmatprep.subr.mxu0 %v477
    %502 = vmatpush1.msra.mxu0 %v476
    %503 = vmatprep.subr.mxu0 %v479
    %504 = vmatpush1.msra.mxu0 %v478
    %505 = vmatprep.subr.mxu0 0.0
    %506 = vmatpush1.msra.mxu0 0.0
    %507 = vmatprep.subr.mxu0 0.0
    %508 = vmatpush1.msra.mxu0 0.0
    %509 = vmatprep.subr.mxu0 0.0
    %510 = vmatpush1.msra.mxu0 0.0
    %511 = vmatprep.subr.mxu0 0.0
    %512 = vmatpush1.msra.mxu0 0.0
    %513 = vmatprep.subr.mxu0 0.0
    %514 = vmatpush1.msra.mxu0 0.0
    %515 = vmatprep.subr.mxu0 0.0
    %516 = vmatpush1.msra.mxu0 0.0
    %517 = vmatprep.subr.mxu0 0.0
    %518 = vmatpush1.msra.mxu0 0.0
    %519 = vmatprep.subr.mxu0 0.0
    %520 = vmatpush1.msra.mxu0 0.0
    %521 = vmatprep.subr.mxu0 0.0
    %522 = vmatpush1.msra.mxu0 0.0
    %523 = vmatprep.subr.mxu0 0.0
    %524 = vmatpush1.msra.mxu0 0.0
    %525 = vmatprep.subr.mxu0 0.0
    %526 = vmatpush1.msra.mxu0 0.0
    %527 = vmatprep.subr.mxu0 0.0
    %528 = vmatpush1.msra.mxu0 0.0
    %529 = vmatprep.subr.mxu0 0.0
    %530 = vmatpush1.msra.mxu0 0.0
    %531 = vmatprep.subr.mxu0 0.0
    %532 = vmatpush1.msra.mxu0 0.0
    %533 = vmatprep.subr.mxu0 0.0
    %534 = vmatpush1.msra.mxu0 0.0
    %535 = vmatprep.subr.mxu0 0.0
    %536 = vmatpush1.msra.mxu0 0.0
    %537 = vmatprep.subr.mxu0 0.0
    %538 = vmatpush1.msra.mxu0 0.0
    %539 = vmatprep.subr.mxu0 0.0
    %540 = vmatpush1.msra.mxu0 0.0
    %541 = vmatprep.subr.mxu0 0.0
    %542 = vmatpush1.msra.mxu0 0.0
    %543 = vmatprep.subr.mxu0 0.0
    %544 = vmatpush1.msra.mxu0 0.0
    %545 = vmatprep.subr.mxu0 0.0
    %546 = vmatpush1.msra.mxu0 0.0
    %547 = vmatprep.subr.mxu0 0.0
    %548 = vmatpush1.msra.mxu0 0.0
    %549 = vmatprep.subr.mxu0 0.0
    %550 = vmatpush1.msra.mxu0 0.0
    %551 = vmatprep.subr.mxu0 0.0
    %552 = vmatpush1.msra.mxu0 0.0
    %553 = vmatprep.mubr.f32.mxu0 0.0
    %554 = vmatmul.mubr.f32.gmra.mrb[0].mxu0 %v487
    %v555 = vpop.f32.mrb[0].mxu0
    %v556 = vadd.f32 0.0, %v555
    %v557 = vpop.f32.mrb[0].mxu0
    %v558 = vadd.f32 0.0, %v557
    %559 = vdwg.mxu0
    %v560 = vadd.f32 %v483, %v556
    %v561 = vadd.f32 %v484, %v558
    %v562 = vxor.u32 %v560, 2147483648
    %v563 = vxor.u32 %v561, 2147483648
    %v564 = vmul.f32 %v562, 1.442695
    %v565 = vpow.pop %v564
    %v566 = vmul.f32 %v563, 1.442695
    %v567 = vpow.pop %v566
    %v568 = vadd.f32 %v565, 1.0
    %v569 = vadd.f32 %v567, 1.0
    %v570 = vrcp.pop %v568
    %v571 = vmul.f32 1.0, %v570
    %v572 = vrcp.pop %v569
    %v573 = vmul.f32 1.0, %v572
    %v574 = vtanh.pop %v561
    %v575 = vmul.f32 %v571, 0.0
    %v576 = vmul.f32 %v571, %v574
    %578 = vrot.lane.b32.xlu0 %v576, 64
    %v579 = vpop.permute.xlu0 %578
    %v581 = vadd.f32 %v575, %v579
    %v582 = vtanh.pop %v581
    %v583 = vmul.f32 %v573, %v582
    %s584 = smul.u32 1, 2
    %s585 = smul.addr %s584, 8
    %s586 = scalar_lea.vmem [#allocation2], %s585
    %v587 = vld [vmem:[%s586] sm:$0xff]
    %v588 = vld [vmem:[%s586 + $0x8] sm:$0xff]
    %590 = vrot.lane.b32.xlu0 %v583, 64
    %v591 = vpop.permute.xlu0 %590
    %v592 = vsel %vm485, %v591, 0
    %594 = vmatprep.subr.mxu0 %v465
    %595 = vmatpush1.msra.mxu0 %v464
    %596 = vmatprep.subr.mxu0 %v467
    %597 = vmatpush1.msra.mxu0 %v466
    %598 = vmatprep.subr.mxu0 %v469
    %599 = vmatpush1.msra.mxu0 %v468
    %600 = vmatprep.subr.mxu0 %v471
    %601 = vmatpush1.msra.mxu0 %v470
    %602 = vmatprep.subr.mxu0 %v473
    %603 = vmatpush1.msra.mxu0 %v472
    %604 = vmatprep.subr.mxu0 %v475
    %605 = vmatpush1.msra.mxu0 %v474
    %606 = vmatprep.subr.mxu0 %v477
    %607 = vmatpush1.msra.mxu0 %v476
    %608 = vmatprep.subr.mxu0 %v479
    %609 = vmatpush1.msra.mxu0 %v478
    %610 = vmatprep.subr.mxu0 0.0
    %611 = vmatpush1.msra.mxu0 0.0
    %612 = vmatprep.subr.mxu0 0.0
    %613 = vmatpush1.msra.mxu0 0.0
    %614 = vmatprep.subr.mxu0 0.0
    %615 = vmatpush1.msra.mxu0 0.0
    %616 = vmatprep.subr.mxu0 0.0
    %617 = vmatpush1.msra.mxu0 0.0
    %618 = vmatprep.subr.mxu0 0.0
    %619 = vmatpush1.msra.mxu0 0.0
    %620 = vmatprep.subr.mxu0 0.0
    %621 = vmatpush1.msra.mxu0 0.0
    %622 = vmatprep.subr.mxu0 0.0
    %623 = vmatpush1.msra.mxu0 0.0
    %624 = vmatprep.subr.mxu0 0.0
    %625 = vmatpush1.msra.mxu0 0.0
    %626 = vmatprep.subr.mxu0 0.0
    %627 = vmatpush1.msra.mxu0 0.0
    %628 = vmatprep.subr.mxu0 0.0
    %629 = vmatpush1.msra.mxu0 0.0
    %630 = vmatprep.subr.mxu0 0.0
    %631 = vmatpush1.msra.mxu0 0.0
    %632 = vmatprep.subr.mxu0 0.0
    %633 = vmatpush1.msra.mxu0 0.0
    %634 = vmatprep.subr.mxu0 0.0
    %635 = vmatpush1.msra.mxu0 0.0
    %636 = vmatprep.subr.mxu0 0.0
    %637 = vmatpush1.msra.mxu0 0.0
    %638 = vmatprep.subr.mxu0 0.0
    %639 = vmatpush1.msra.mxu0 0.0
    %640 = vmatprep.subr.mxu0 0.0
    %641 = vmatpush1.msra.mxu0 0.0
    %642 = vmatprep.subr.mxu0 0.0
    %643 = vmatpush1.msra.mxu0 0.0
    %644 = vmatprep.subr.mxu0 0.0
    %645 = vmatpush1.msra.mxu0 0.0
    %646 = vmatprep.subr.mxu0 0.0
    %647 = vmatpush1.msra.mxu0 0.0
    %648 = vmatprep.subr.mxu0 0.0
    %649 = vmatpush1.msra.mxu0 0.0
    %650 = vmatprep.subr.mxu0 0.0
    %651 = vmatpush1.msra.mxu0 0.0
    %652 = vmatprep.subr.mxu0 0.0
    %653 = vmatpush1.msra.mxu0 0.0
    %654 = vmatprep.subr.mxu0 0.0
    %655 = vmatpush1.msra.mxu0 0.0
    %656 = vmatprep.subr.mxu0 0.0
    %657 = vmatpush1.msra.mxu0 0.0
    %658 = vmatprep.mubr.f32.mxu0 0.0
    %659 = vmatmul.mubr.f32.gmra.mrb[0].mxu0 %v592
    %v660 = vpop.f32.mrb[0].mxu0
    %v661 = vadd.f32 0.0, %v660
    %v662 = vpop.f32.mrb[0].mxu0
    %v663 = vadd.f32 0.0, %v662
    %664 = vdwg.mxu0
    %v665 = vadd.f32 %v587, %v661
    %v666 = vadd.f32 %v588, %v663
    %v667 = vxor.u32 %v665, 2147483648
    %v668 = vxor.u32 %v666, 2147483648
    %v669 = vmul.f32 %v667, 1.442695
    %v670 = vpow.pop %v669
    %v671 = vmul.f32 %v668, 1.442695
    %v672 = vpow.pop %v671
    %v673 = vadd.f32 %v670, 1.0
    %v674 = vadd.f32 %v672, 1.0
    %v675 = vrcp.pop %v673
    %v676 = vmul.f32 1.0, %v675
    %v677 = vrcp.pop %v674
    %v678 = vmul.f32 1.0, %v677
    %v679 = vtanh.pop %v666
    %v680 = vmul.f32 %v676, %v581
    %v681 = vmul.f32 %v676, %v679
    %683 = vrot.lane.b32.xlu0 %v681, 64
    %v684 = vpop.permute.xlu0 %683
    %v686 = vadd.f32 %v680, %v684
    %v687 = vtanh.pop %v686
    %v688 = vmul.f32 %v678, %v687
    %s689 = smul.u32 2, 2
    %s690 = smul.addr %s689, 8
    %s691 = scalar_lea.vmem [#allocation2], %s690
    %v692 = vld [vmem:[%s691] sm:$0xff]
    %v693 = vld [vmem:[%s691 + $0x8] sm:$0xff]
    %695 = vrot.lane.b32.xlu0 %v688, 64
    %v696 = vpop.permute.xlu0 %695
    %v697 = vsel %vm485, %v696, 0
    %699 = vmatprep.subr.mxu0 %v465
    %700 = vmatpush1.msra.mxu0 %v464
    %701 = vmatprep.subr.mxu0 %v467
    %702 = vmatpush1.msra.mxu0 %v466
    %703 = vmatprep.subr.mxu0 %v469
    %704 = vmatpush1.msra.mxu0 %v468
    %705 = vmatprep.subr.mxu0 %v471
    %706 = vmatpush1.msra.mxu0 %v470
    %707 = vmatprep.subr.mxu0 %v473
    %708 = vmatpush1.msra.mxu0 %v472
    %709 = vmatprep.subr.mxu0 %v475
    %710 = vmatpush1.msra.mxu0 %v474
    %711 = vmatprep.subr.mxu0 %v477
    %712 = vmatpush1.msra.mxu0 %v476
    %713 = vmatprep.subr.mxu0 %v479
    %714 = vmatpush1.msra.mxu0 %v478
    %715 = vmatprep.subr.mxu0 0.0
    %716 = vmatpush1.msra.mxu0 0.0
    %717 = vmatprep.subr.mxu0 0.0
    %718 = vmatpush1.msra.mxu0 0.0
    %719 = vmatprep.subr.mxu0 0.0
    %720 = vmatpush1.msra.mxu0 0.0
    %721 = vmatprep.subr.mxu0 0.0
    %722 = vmatpush1.msra.mxu0 0.0
    %723 = vmatprep.subr.mxu0 0.0
    %724 = vmatpush1.msra.mxu0 0.0
    %725 = vmatprep.subr.mxu0 0.0
    %726 = vmatpush1.msra.mxu0 0.0
    %727 = vmatprep.subr.mxu0 0.0
    %728 = vmatpush1.msra.mxu0 0.0
    %729 = vmatprep.subr.mxu0 0.0
    %730 = vmatpush1.msra.mxu0 0.0
    %731 = vmatprep.subr.mxu0 0.0
    %732 = vmatpush1.msra.mxu0 0.0
    %733 = vmatprep.subr.mxu0 0.0
    %734 = vmatpush1.msra.mxu0 0.0
    %735 = vmatprep.subr.mxu0 0.0
    %736 = vmatpush1.msra.mxu0 0.0
    %737 = vmatprep.subr.mxu0 0.0
    %738 = vmatpush1.msra.mxu0 0.0
    %739 = vmatprep.subr.mxu0 0.0
    %740 = vmatpush1.msra.mxu0 0.0
    %741 = vmatprep.subr.mxu0 0.0
    %742 = vmatpush1.msra.mxu0 0.0
    %743 = vmatprep.subr.mxu0 0.0
    %744 = vmatpush1.msra.mxu0 0.0
    %745 = vmatprep.subr.mxu0 0.0
    %746 = vmatpush1.msra.mxu0 0.0
    %747 = vmatprep.subr.mxu0 0.0
    %748 = vmatpush1.msra.mxu0 0.0
    %749 = vmatprep.subr.mxu0 0.0
    %750 = vmatpush1.msra.mxu0 0.0
    %751 = vmatprep.subr.mxu0 0.0
    %752 = vmatpush1.msra.mxu0 0.0
    %753 = vmatprep.subr.mxu0 0.0
    %754 = vmatpush1.msra.mxu0 0.0
    %755 = vmatprep.subr.mxu0 0.0
    %756 = vmatpush1.msra.mxu0 0.0
    %757 = vmatprep.subr.mxu0 0.0
    %758 = vmatpush1.msra.mxu0 0.0
    %759 = vmatprep.subr.mxu0 0.0
    %760 = vmatpush1.msra.mxu0 0.0
    %761 = vmatprep.subr.mxu0 0.0
    %762 = vmatpush1.msra.mxu0 0.0
    %763 = vmatprep.mubr.f32.mxu0 0.0
    %764 = vmatmul.mubr.f32.gmra.mrb[0].mxu0 %v697
    %v765 = vpop.f32.mrb[0].mxu0
    %v766 = vadd.f32 0.0, %v765
    %v767 = vpop.f32.mrb[0].mxu0
    %v768 = vadd.f32 0.0, %v767
    %769 = vdwg.mxu0
    %v770 = vadd.f32 %v692, %v766
    %v771 = vadd.f32 %v693, %v768
    %v772 = vxor.u32 %v770, 2147483648
    %v773 = vxor.u32 %v771, 2147483648
    %v774 = vmul.f32 %v772, 1.442695
    %v775 = vpow.pop %v774
    %v776 = vmul.f32 %v773, 1.442695
    %v777 = vpow.pop %v776
    %v778 = vadd.f32 %v775, 1.0
    %v779 = vadd.f32 %v777, 1.0
    %v780 = vrcp.pop %v778
    %v781 = vmul.f32 1.0, %v780
    %v782 = vrcp.pop %v779
    %v783 = vmul.f32 1.0, %v782
    %v784 = vtanh.pop %v771
    %v785 = vmul.f32 %v781, %v686
    %v786 = vmul.f32 %v781, %v784
    %788 = vrot.lane.b32.xlu0 %v786, 64
    %v789 = vpop.permute.xlu0 %788
    %v791 = vadd.f32 %v785, %v789
    %v792 = vtanh.pop %v791
    %v793 = vmul.f32 %v783, %v792
    %s794 = smul.u32 3, 2
    %s795 = smul.addr %s794, 8
    %s796 = scalar_lea.vmem [#allocation2], %s795
    %v797 = vld [vmem:[%s796] sm:$0xff]
    %v798 = vld [vmem:[%s796 + $0x8] sm:$0xff]
    %800 = vrot.lane.b32.xlu0 %v793, 64
    %v801 = vpop.permute.xlu0 %800
    %v802 = vsel %vm485, %v801, 0
    %804 = vmatprep.subr.mxu0 %v465
    %805 = vmatpush1.msra.mxu0 %v464
    %806 = vmatprep.subr.mxu0 %v467
    %807 = vmatpush1.msra.mxu0 %v466
    %808 = vmatprep.subr.mxu0 %v469
    %809 = vmatpush1.msra.mxu0 %v468
    %810 = vmatprep.subr.mxu0 %v471
    %811 = vmatpush1.msra.mxu0 %v470
    %812 = vmatprep.subr.mxu0 %v473
    %813 = vmatpush1.msra.mxu0 %v472
    %814 = vmatprep.subr.mxu0 %v475
    %815 = vmatpush1.msra.mxu0 %v474
    %816 = vmatprep.subr.mxu0 %v477
    %817 = vmatpush1.msra.mxu0 %v476
    %818 = vmatprep.subr.mxu0 %v479
    %819 = vmatpush1.msra.mxu0 %v478
    %820 = vmatprep.subr.mxu0 0.0
    %821 = vmatpush1.msra.mxu0 0.0
    %822 = vmatprep.subr.mxu0 0.0
    %823 = vmatpush1.msra.mxu0 0.0
    %824 = vmatprep.subr.mxu0 0.0
    %825 = vmatpush1.msra.mxu0 0.0
    %826 = vmatprep.subr.mxu0 0.0
    %827 = vmatpush1.msra.mxu0 0.0
    %828 = vmatprep.subr.mxu0 0.0
    %829 = vmatpush1.msra.mxu0 0.0
    %830 = vmatprep.subr.mxu0 0.0
    %831 = vmatpush1.msra.mxu0 0.0
    %832 = vmatprep.subr.mxu0 0.0
    %833 = vmatpush1.msra.mxu0 0.0
    %834 = vmatprep.subr.mxu0 0.0
    %835 = vmatpush1.msra.mxu0 0.0
    %836 = vmatprep.subr.mxu0 0.0
    %837 = vmatpush1.msra.mxu0 0.0
    %838 = vmatprep.subr.mxu0 0.0
    %839 = vmatpush1.msra.mxu0 0.0
    %840 = vmatprep.subr.mxu0 0.0
    %841 = vmatpush1.msra.mxu0 0.0
    %842 = vmatprep.subr.mxu0 0.0
    %843 = vmatpush1.msra.mxu0 0.0
    %844 = vmatprep.subr.mxu0 0.0
    %845 = vmatpush1.msra.mxu0 0.0
    %846 = vmatprep.subr.mxu0 0.0
    %847 = vmatpush1.msra.mxu0 0.0
    %848 = vmatprep.subr.mxu0 0.0
    %849 = vmatpush1.msra.mxu0 0.0
    %850 = vmatprep.subr.mxu0 0.0
    %851 = vmatpush1.msra.mxu0 0.0
    %852 = vmatprep.subr.mxu0 0.0
    %853 = vmatpush1.msra.mxu0 0.0
    %854 = vmatprep.subr.mxu0 0.0
    %855 = vmatpush1.msra.mxu0 0.0
    %856 = vmatprep.subr.mxu0 0.0
    %857 = vmatpush1.msra.mxu0 0.0
    %858 = vmatprep.subr.mxu0 0.0
    %859 = vmatpush1.msra.mxu0 0.0
    %860 = vmatprep.subr.mxu0 0.0
    %861 = vmatpush1.msra.mxu0 0.0
    %862 = vmatprep.subr.mxu0 0.0
    %863 = vmatpush1.msra.mxu0 0.0
    %864 = vmatprep.subr.mxu0 0.0
    %865 = vmatpush1.msra.mxu0 0.0
    %866 = vmatprep.subr.mxu0 0.0
    %867 = vmatpush1.msra.mxu0 0.0
    %868 = vmatprep.mubr.f32.mxu0 0.0
    %869 = vmatmul.mubr.f32.gmra.mrb[0].mxu0 %v802
    %v870 = vpop.f32.mrb[0].mxu0
    %v871 = vadd.f32 0.0, %v870
    %v872 = vpop.f32.mrb[0].mxu0
    %v873 = vadd.f32 0.0, %v872
    %874 = vdwg.mxu0
    %v875 = vadd.f32 %v797, %v871
    %v876 = vadd.f32 %v798, %v873
    %v877 = vxor.u32 %v875, 2147483648
    %v878 = vxor.u32 %v876, 2147483648
    %v879 = vmul.f32 %v877, 1.442695
    %v880 = vpow.pop %v879
    %v881 = vmul.f32 %v878, 1.442695
    %v882 = vpow.pop %v881
    %v883 = vadd.f32 %v880, 1.0
    %v884 = vadd.f32 %v882, 1.0
    %v885 = vrcp.pop %v883
    %v886 = vmul.f32 1.0, %v885
    %v887 = vrcp.pop %v884
    %v888 = vmul.f32 1.0, %v887
    %v889 = vtanh.pop %v876
    %v890 = vmul.f32 %v886, %v791
    %v891 = vmul.f32 %v886, %v889
    %893 = vrot.lane.b32.xlu0 %v891, 64
    %v894 = vpop.permute.xlu0 %893
    %v896 = vadd.f32 %v890, %v894
    %v897 = vtanh.pop %v896
    %v898 = vmul.f32 %v888, %v897
    %s899 = smul.u32 4, 2
    %s900 = smul.addr %s899, 8
    %s901 = scalar_lea.vmem [#allocation2], %s900
    %v902 = vld [vmem:[%s901] sm:$0xff]
    %v903 = vld [vmem:[%s901 + $0x8] sm:$0xff]
    %905 = vrot.lane.b32.xlu0 %v898, 64
    %v906 = vpop.permute.xlu0 %905
    %v907 = vsel %vm485, %v906, 0
    %909 = vmatprep.subr.mxu0 %v465
    %910 = vmatpush1.msra.mxu0 %v464
    %911 = vmatprep.subr.mxu0 %v467
    %912 = vmatpush1.msra.mxu0 %v466
    %913 = vmatprep.subr.mxu0 %v469
    %914 = vmatpush1.msra.mxu0 %v468
    %915 = vmatprep.subr.mxu0 %v471
    %916 = vmatpush1.msra.mxu0 %v470
    %917 = vmatprep.subr.mxu0 %v473
    %918 = vmatpush1.msra.mxu0 %v472
    %919 = vmatprep.subr.mxu0 %v475
    %920 = vmatpush1.msra.mxu0 %v474
    %921 = vmatprep.subr.mxu0 %v477
    %922 = vmatpush1.msra.mxu0 %v476
    %923 = vmatprep.subr.mxu0 %v479
    %924 = vmatpush1.msra.mxu0 %v478
    %925 = vmatprep.subr.mxu0 0.0
    %926 = vmatpush1.msra.mxu0 0.0
    %927 = vmatprep.subr.mxu0 0.0
    %928 = vmatpush1.msra.mxu0 0.0
    %929 = vmatprep.subr.mxu0 0.0
    %930 = vmatpush1.msra.mxu0 0.0
    %931 = vmatprep.subr.mxu0 0.0
    %932 = vmatpush1.msra.mxu0 0.0
    %933 = vmatprep.subr.mxu0 0.0
    %934 = vmatpush1.msra.mxu0 0.0
    %935 = vmatprep.subr.mxu0 0.0
    %936 = vmatpush1.msra.mxu0 0.0
    %937 = vmatprep.subr.mxu0 0.0
    %938 = vmatpush1.msra.mxu0 0.0
    %939 = vmatprep.subr.mxu0 0.0
    %940 = vmatpush1.msra.mxu0 0.0
    %941 = vmatprep.subr.mxu0 0.0
    %942 = vmatpush1.msra.mxu0 0.0
    %943 = vmatprep.subr.mxu0 0.0
    %944 = vmatpush1.msra.mxu0 0.0
    %945 = vmatprep.subr.mxu0 0.0
    %946 = vmatpush1.msra.mxu0 0.0
    %947 = vmatprep.subr.mxu0 0.0
    %948 = vmatpush1.msra.mxu0 0.0
    %949 = vmatprep.subr.mxu0 0.0
    %950 = vmatpush1.msra.mxu0 0.0
    %951 = vmatprep.subr.mxu0 0.0
    %952 = vmatpush1.msra.mxu0 0.0
    %953 = vmatprep.subr.mxu0 0.0
    %954 = vmatpush1.msra.mxu0 0.0
    %955 = vmatprep.subr.mxu0 0.0
    %956 = vmatpush1.msra.mxu0 0.0
    %957 = vmatprep.subr.mxu0 0.0
    %958 = vmatpush1.msra.mxu0 0.0
    %959 = vmatprep.subr.mxu0 0.0
    %960 = vmatpush1.msra.mxu0 0.0
    %961 = vmatprep.subr.mxu0 0.0
    %962 = vmatpush1.msra.mxu0 0.0
    %963 = vmatprep.subr.mxu0 0.0
    %964 = vmatpush1.msra.mxu0 0.0
    %965 = vmatprep.subr.mxu0 0.0
    %966 = vmatpush1.msra.mxu0 0.0
    %967 = vmatprep.subr.mxu0 0.0
    %968 = vmatpush1.msra.mxu0 0.0
    %969 = vmatprep.subr.mxu0 0.0
    %970 = vmatpush1.msra.mxu0 0.0
    %971 = vmatprep.subr.mxu0 0.0
    %972 = vmatpush1.msra.mxu0 0.0
    %973 = vmatprep.mubr.f32.mxu0 0.0
    %974 = vmatmul.mubr.f32.gmra.mrb[0].mxu0 %v907
    %v975 = vpop.f32.mrb[0].mxu0
    %v976 = vadd.f32 0.0, %v975
    %v977 = vpop.f32.mrb[0].mxu0
    %v978 = vadd.f32 0.0, %v977
    %979 = vdwg.mxu0
    %v980 = vadd.f32 %v902, %v976
    %v981 = vadd.f32 %v903, %v978
    %v982 = vxor.u32 %v980, 2147483648
    %v983 = vxor.u32 %v981, 2147483648
    %v984 = vmul.f32 %v982, 1.442695
    %v985 = vpow.pop %v984
    %v986 = vmul.f32 %v983, 1.442695
    %v987 = vpow.pop %v986
    %v988 = vadd.f32 %v985, 1.0
    %v989 = vadd.f32 %v987, 1.0
    %v990 = vrcp.pop %v988
    %v991 = vmul.f32 1.0, %v990
    %v992 = vrcp.pop %v989
    %v993 = vmul.f32 1.0, %v992
    %v994 = vtanh.pop %v981
    %v995 = vmul.f32 %v991, %v896
    %v996 = vmul.f32 %v991, %v994
    %998 = vrot.lane.b32.xlu0 %v996, 64
    %v999 = vpop.permute.xlu0 %998
    %v1001 = vadd.f32 %v995, %v999
    %v1002 = vtanh.pop %v1001
    %v1003 = vmul.f32 %v993, %v1002
    %s1004 = smul.u32 5, 2
    %s1005 = smul.addr %s1004, 8
    %s1006 = scalar_lea.vmem [#allocation2], %s1005
    %v1007 = vld [vmem:[%s1006] sm:$0xff]
    %v1008 = vld [vmem:[%s1006 + $0x8] sm:$0xff]
    %1010 = vrot.lane.b32.xlu0 %v1003, 64
    %v1011 = vpop.permute.xlu0 %1010
    %v1012 = vsel %vm485, %v1011, 0
    %1014 = vmatprep.subr.mxu0 %v465
    %1015 = vmatpush1.msra.mxu0 %v464
    %1016 = vmatprep.subr.mxu0 %v467
    %1017 = vmatpush1.msra.mxu0 %v466
    %1018 = vmatprep.subr.mxu0 %v469
    %1019 = vmatpush1.msra.mxu0 %v468
    %1020 = vmatprep.subr.mxu0 %v471
    %1021 = vmatpush1.msra.mxu0 %v470
    %1022 = vmatprep.subr.mxu0 %v473
    %1023 = vmatpush1.msra.mxu0 %v472
    %1024 = vmatprep.subr.mxu0 %v475
    %1025 = vmatpush1.msra.mxu0 %v474
    %1026 = vmatprep.subr.mxu0 %v477
    %1027 = vmatpush1.msra.mxu0 %v476
    %1028 = vmatprep.subr.mxu0 %v479
    %1029 = vmatpush1.msra.mxu0 %v478
    %1030 = vmatprep.subr.mxu0 0.0
    %1031 = vmatpush1.msra.mxu0 0.0
    %1032 = vmatprep.subr.mxu0 0.0
    %1033 = vmatpush1.msra.mxu0 0.0
    %1034 = vmatprep.subr.mxu0 0.0
    %1035 = vmatpush1.msra.mxu0 0.0
    %1036 = vmatprep.subr.mxu0 0.0
    %1037 = vmatpush1.msra.mxu0 0.0
    %1038 = vmatprep.subr.mxu0 0.0
    %1039 = vmatpush1.msra.mxu0 0.0
    %1040 = vmatprep.subr.mxu0 0.0
    %1041 = vmatpush1.msra.mxu0 0.0
    %1042 = vmatprep.subr.mxu0 0.0
    %1043 = vmatpush1.msra.mxu0 0.0
    %1044 = vmatprep.subr.mxu0 0.0
    %1045 = vmatpush1.msra.mxu0 0.0
    %1046 = vmatprep.subr.mxu0 0.0
    %1047 = vmatpush1.msra.mxu0 0.0
    %1048 = vmatprep.subr.mxu0 0.0
    %1049 = vmatpush1.msra.mxu0 0.0
    %1050 = vmatprep.subr.mxu0 0.0
    %1051 = vmatpush1.msra.mxu0 0.0
    %1052 = vmatprep.subr.mxu0 0.0
    %1053 = vmatpush1.msra.mxu0 0.0
    %1054 = vmatprep.subr.mxu0 0.0
    %1055 = vmatpush1.msra.mxu0 0.0
    %1056 = vmatprep.subr.mxu0 0.0
    %1057 = vmatpush1.msra.mxu0 0.0
    %1058 = vmatprep.subr.mxu0 0.0
    %1059 = vmatpush1.msra.mxu0 0.0
    %1060 = vmatprep.subr.mxu0 0.0
    %1061 = vmatpush1.msra.mxu0 0.0
    %1062 = vmatprep.subr.mxu0 0.0
    %1063 = vmatpush1.msra.mxu0 0.0
    %1064 = vmatprep.subr.mxu0 0.0
    %1065 = vmatpush1.msra.mxu0 0.0
    %1066 = vmatprep.subr.mxu0 0.0
    %1067 = vmatpush1.msra.mxu0 0.0
    %1068 = vmatprep.subr.mxu0 0.0
    %1069 = vmatpush1.msra.mxu0 0.0
    %1070 = vmatprep.subr.mxu0 0.0
    %1071 = vmatpush1.msra.mxu0 0.0
    %1072 = vmatprep.subr.mxu0 0.0
    %1073 = vmatpush1.msra.mxu0 0.0
    %1074 = vmatprep.subr.mxu0 0.0
    %1075 = vmatpush1.msra.mxu0 0.0
    %1076 = vmatprep.subr.mxu0 0.0
    %1077 = vmatpush1.msra.mxu0 0.0
    %1078 = vmatprep.mubr.f32.mxu0 0.0
    %1079 = vmatmul.mubr.f32.gmra.mrb[0].mxu0 %v1012
    %v1080 = vpop.f32.mrb[0].mxu0
    %v1081 = vadd.f32 0.0, %v1080
    %v1082 = vpop.f32.mrb[0].mxu0
    %v1083 = vadd.f32 0.0, %v1082
    %1084 = vdwg.mxu0
    %v1085 = vadd.f32 %v1007, %v1081
    %v1086 = vadd.f32 %v1008, %v1083
    %v1087 = vxor.u32 %v1085, 2147483648
    %v1088 = vxor.u32 %v1086, 2147483648
    %v1089 = vmul.f32 %v1087, 1.442695
    %v1090 = vpow.pop %v1089
    %v1091 = vmul.f32 %v1088, 1.442695
    %v1092 = vpow.pop %v1091
    %v1093 = vadd.f32 %v1090, 1.0
    %v1094 = vadd.f32 %v1092, 1.0
    %v1095 = vrcp.pop %v1093
    %v1096 = vmul.f32 1.0, %v1095
    %v1097 = vrcp.pop %v1094
    %v1098 = vmul.f32 1.0, %v1097
    %v1099 = vtanh.pop %v1086
    %v1100 = vmul.f32 %v1096, %v1001
    %v1101 = vmul.f32 %v1096, %v1099
    %1103 = vrot.lane.b32.xlu0 %v1101, 64
    %v1104 = vpop.permute.xlu0 %1103
    %v1106 = vadd.f32 %v1100, %v1104
    %v1107 = vtanh.pop %v1106
    %v1108 = vmul.f32 %v1098, %v1107
    %s1109 = smul.u32 6, 2
    %s1110 = smul.addr %s1109, 8
    %s1111 = scalar_lea.vmem [#allocation2], %s1110
    %v1112 = vld [vmem:[%s1111] sm:$0xff]
    %v1113 = vld [vmem:[%s1111 + $0x8] sm:$0xff]
    %1115 = vrot.lane.b32.xlu0 %v1108, 64
    %v1116 = vpop.permute.xlu0 %1115
    %v1117 = vsel %vm485, %v1116, 0
    %1119 = vmatprep.subr.mxu0 %v465
    %1120 = vmatpush1.msra.mxu0 %v464
    %1121 = vmatprep.subr.mxu0 %v467
    %1122 = vmatpush1.msra.mxu0 %v466
    %1123 = vmatprep.subr.mxu0 %v469
    %1124 = vmatpush1.msra.mxu0 %v468
    %1125 = vmatprep.subr.mxu0 %v471
    %1126 = vmatpush1.msra.mxu0 %v470
    %1127 = vmatprep.subr.mxu0 %v473
    %1128 = vmatpush1.msra.mxu0 %v472
    %1129 = vmatprep.subr.mxu0 %v475
    %1130 = vmatpush1.msra.mxu0 %v474
    %1131 = vmatprep.subr.mxu0 %v477
    %1132 = vmatpush1.msra.mxu0 %v476
    %1133 = vmatprep.subr.mxu0 %v479
    %1134 = vmatpush1.msra.mxu0 %v478
    %1135 = vmatprep.subr.mxu0 0.0
    %1136 = vmatpush1.msra.mxu0 0.0
    %1137 = vmatprep.subr.mxu0 0.0
    %1138 = vmatpush1.msra.mxu0 0.0
    %1139 = vmatprep.subr.mxu0 0.0
    %1140 = vmatpush1.msra.mxu0 0.0
    %1141 = vmatprep.subr.mxu0 0.0
    %1142 = vmatpush1.msra.mxu0 0.0
    %1143 = vmatprep.subr.mxu0 0.0
    %1144 = vmatpush1.msra.mxu0 0.0
    %1145 = vmatprep.subr.mxu0 0.0
    %1146 = vmatpush1.msra.mxu0 0.0
    %1147 = vmatprep.subr.mxu0 0.0
    %1148 = vmatpush1.msra.mxu0 0.0
    %1149 = vmatprep.subr.mxu0 0.0
    %1150 = vmatpush1.msra.mxu0 0.0
    %1151 = vmatprep.subr.mxu0 0.0
    %1152 = vmatpush1.msra.mxu0 0.0
    %1153 = vmatprep.subr.mxu0 0.0
    %1154 = vmatpush1.msra.mxu0 0.0
    %1155 = vmatprep.subr.mxu0 0.0
    %1156 = vmatpush1.msra.mxu0 0.0
    %1157 = vmatprep.subr.mxu0 0.0
    %1158 = vmatpush1.msra.mxu0 0.0
    %1159 = vmatprep.subr.mxu0 0.0
    %1160 = vmatpush1.msra.mxu0 0.0
    %1161 = vmatprep.subr.mxu0 0.0
    %1162 = vmatpush1.msra.mxu0 0.0
    %1163 = vmatprep.subr.mxu0 0.0
    %1164 = vmatpush1.msra.mxu0 0.0
    %1165 = vmatprep.subr.mxu0 0.0
    %1166 = vmatpush1.msra.mxu0 0.0
    %1167 = vmatprep.subr.mxu0 0.0
    %1168 = vmatpush1.msra.mxu0 0.0
    %1169 = vmatprep.subr.mxu0 0.0
    %1170 = vmatpush1.msra.mxu0 0.0
    %1171 = vmatprep.subr.mxu0 0.0
    %1172 = vmatpush1.msra.mxu0 0.0
    %1173 = vmatprep.subr.mxu0 0.0
    %1174 = vmatpush1.msra.mxu0 0.0
    %1175 = vmatprep.subr.mxu0 0.0
    %1176 = vmatpush1.msra.mxu0 0.0
    %1177 = vmatprep.subr.mxu0 0.0
    %1178 = vmatpush1.msra.mxu0 0.0
    %1179 = vmatprep.subr.mxu0 0.0
    %1180 = vmatpush1.msra.mxu0 0.0
    %1181 = vmatprep.subr.mxu0 0.0
    %1182 = vmatpush1.msra.mxu0 0.0
    %1183 = vmatprep.mubr.f32.mxu0 0.0
    %1184 = vmatmul.mubr.f32.gmra.mrb[0].mxu0 %v1117
    %v1185 = vpop.f32.mrb[0].mxu0
    %v1186 = vadd.f32 0.0, %v1185
    %v1187 = vpop.f32.mrb[0].mxu0
    %v1188 = vadd.f32 0.0, %v1187
    %1189 = vdwg.mxu0
    %v1190 = vadd.f32 %v1112, %v1186
    %v1191 = vadd.f32 %v1113, %v1188
    %v1192 = vxor.u32 %v1190, 2147483648
    %v1193 = vxor.u32 %v1191, 2147483648
    %v1194 = vmul.f32 %v1192, 1.442695
    %v1195 = vpow.pop %v1194
    %v1196 = vmul.f32 %v1193, 1.442695
    %v1197 = vpow.pop %v1196
    %v1198 = vadd.f32 %v1195, 1.0
    %v1199 = vadd.f32 %v1197, 1.0
    %v1200 = vrcp.pop %v1198
    %v1201 = vmul.f32 1.0, %v1200
    %v1202 = vrcp.pop %v1199
    %v1203 = vmul.f32 1.0, %v1202
    %v1204 = vtanh.pop %v1191
    %v1205 = vmul.f32 %v1201, %v1106
    %v1206 = vmul.f32 %v1201, %v1204
    %1208 = vrot.lane.b32.xlu0 %v1206, 64
    %v1209 = vpop.permute.xlu0 %1208
    %v1211 = vadd.f32 %v1205, %v1209
    %v1212 = vtanh.pop %v1211
    %v1213 = vmul.f32 %v1203, %v1212
    %s1214 = smul.u32 7, 2
    %s1215 = smul.addr %s1214, 8
    %s1216 = scalar_lea.vmem [#allocation2], %s1215
    %v1217 = vld [vmem:[%s1216] sm:$0xff]
    %v1218 = vld [vmem:[%s1216 + $0x8] sm:$0xff]
    %1220 = vrot.lane.b32.xlu0 %v1213, 64
    %v1221 = vpop.permute.xlu0 %1220
    %v1222 = vsel %vm485, %v1221, 0
    %1224 = vmatprep.subr.mxu0 %v465
    %1225 = vmatpush1.msra.mxu0 %v464
    %1226 = vmatprep.subr.mxu0 %v467
    %1227 = vmatpush1.msra.mxu0 %v466
    %1228 = vmatprep.subr.mxu0 %v469
    %1229 = vmatpush1.msra.mxu0 %v468
    %1230 = vmatprep.subr.mxu0 %v471
    %1231 = vmatpush1.msra.mxu0 %v470
    %1232 = vmatprep.subr.mxu0 %v473
    %1233 = vmatpush1.msra.mxu0 %v472
    %1234 = vmatprep.subr.mxu0 %v475
    %1235 = vmatpush1.msra.mxu0 %v474
    %1236 = vmatprep.subr.mxu0 %v477
    %1237 = vmatpush1.msra.mxu0 %v476
    %1238 = vmatprep.subr.mxu0 %v479
    %1239 = vmatpush1.msra.mxu0 %v478
    %1240 = vmatprep.subr.mxu0 0.0
    %1241 = vmatpush1.msra.mxu0 0.0
    %1242 = vmatprep.subr.mxu0 0.0
    %1243 = vmatpush1.msra.mxu0 0.0
    %1244 = vmatprep.subr.mxu0 0.0
    %1245 = vmatpush1.msra.mxu0 0.0
    %1246 = vmatprep.subr.mxu0 0.0
    %1247 = vmatpush1.msra.mxu0 0.0
    %1248 = vmatprep.subr.mxu0 0.0
    %1249 = vmatpush1.msra.mxu0 0.0
    %1250 = vmatprep.subr.mxu0 0.0
    %1251 = vmatpush1.msra.mxu0 0.0
    %1252 = vmatprep.subr.mxu0 0.0
    %1253 = vmatpush1.msra.mxu0 0.0
    %1254 = vmatprep.subr.mxu0 0.0
    %1255 = vmatpush1.msra.mxu0 0.0
    %1256 = vmatprep.subr.mxu0 0.0
    %1257 = vmatpush1.msra.mxu0 0.0
    %1258 = vmatprep.subr.mxu0 0.0
    %1259 = vmatpush1.msra.mxu0 0.0
    %1260 = vmatprep.subr.mxu0 0.0
    %1261 = vmatpush1.msra.mxu0 0.0
    %1262 = vmatprep.subr.mxu0 0.0
    %1263 = vmatpush1.msra.mxu0 0.0
    %1264 = vmatprep.subr.mxu0 0.0
    %1265 = vmatpush1.msra.mxu0 0.0
    %1266 = vmatprep.subr.mxu0 0.0
    %1267 = vmatpush1.msra.mxu0 0.0
    %1268 = vmatprep.subr.mxu0 0.0
    %1269 = vmatpush1.msra.mxu0 0.0
    %1270 = vmatprep.subr.mxu0 0.0
    %1271 = vmatpush1.msra.mxu0 0.0
    %1272 = vmatprep.subr.mxu0 0.0
    %1273 = vmatpush1.msra.mxu0 0.0
    %1274 = vmatprep.subr.mxu0 0.0
    %1275 = vmatpush1.msra.mxu0 0.0
    %1276 = vmatprep.subr.mxu0 0.0
    %1277 = vmatpush1.msra.mxu0 0.0
    %1278 = vmatprep.subr.mxu0 0.0
    %1279 = vmatpush1.msra.mxu0 0.0
    %1280 = vmatprep.subr.mxu0 0.0
    %1281 = vmatpush1.msra.mxu0 0.0
    %1282 = vmatprep.subr.mxu0 0.0
    %1283 = vmatpush1.msra.mxu0 0.0
    %1284 = vmatprep.subr.mxu0 0.0
    %1285 = vmatpush1.msra.mxu0 0.0
    %1286 = vmatprep.subr.mxu0 0.0
    %1287 = vmatpush1.msra.mxu0 0.0
    %1288 = vmatprep.mubr.f32.mxu0 0.0
    %1289 = vmatmul.mubr.f32.gmra.mrb[0].mxu0 %v1222
    %v1290 = vpop.f32.mrb[0].mxu0
    %v1291 = vadd.f32 0.0, %v1290
    %v1292 = vpop.f32.mrb[0].mxu0
    %v1293 = vadd.f32 0.0, %v1292
    %1294 = vdwg.mxu0
    %v1295 = vadd.f32 %v1217, %v1291
    %v1296 = vadd.f32 %v1218, %v1293
    %v1297 = vxor.u32 %v1295, 2147483648
    %v1298 = vxor.u32 %v1296, 2147483648
    %v1299 = vmul.f32 %v1297, 1.442695
    %v1300 = vpow.pop %v1299
    %v1301 = vmul.f32 %v1298, 1.442695
    %v1302 = vpow.pop %v1301
    %v1303 = vadd.f32 %v1300, 1.0
    %v1304 = vadd.f32 %v1302, 1.0
    %v1305 = vrcp.pop %v1303
    %v1306 = vmul.f32 1.0, %v1305
    %v1307 = vrcp.pop %v1304
    %v1308 = vmul.f32 1.0, %v1307
    %v1309 = vtanh.pop %v1296
    %v1310 = vmul.f32 %v1306, %v1211
    %v1311 = vmul.f32 %v1306, %v1309
    %1313 = vrot.lane.b32.xlu0 %v1311, 64
    %v1314 = vpop.permute.xlu0 %1313
    %v1316 = vadd.f32 %v1310, %v1314
    %v1317 = vtanh.pop %v1316
    %v1318 = vmul.f32 %v1308, %v1317
    %s1319 = smul.u32 8, 2
    %s1320 = smul.addr %s1319, 8
    %s1321 = scalar_lea.vmem [#allocation2], %s1320
    %v1322 = vld [vmem:[%s1321] sm:$0xff]
    %v1323 = vld [vmem:[%s1321 + $0x8] sm:$0xff]
    %1325 = vrot.lane.b32.xlu0 %v1318, 64
    %v1326 = vpop.permute.xlu0 %1325
    %v1327 = vsel %vm485, %v1326, 0
    %1329 = vmatprep.subr.mxu0 %v465
    %1330 = vmatpush1.msra.mxu0 %v464
    %1331 = vmatprep.subr.mxu0 %v467
    %1332 = vmatpush1.msra.mxu0 %v466
    %1333 = vmatprep.subr.mxu0 %v469
    %1334 = vmatpush1.msra.mxu0 %v468
    %1335 = vmatprep.subr.mxu0 %v471
    %1336 = vmatpush1.msra.mxu0 %v470
    %1337 = vmatprep.subr.mxu0 %v473
    %1338 = vmatpush1.msra.mxu0 %v472
    %1339 = vmatprep.subr.mxu0 %v475
    %1340 = vmatpush1.msra.mxu0 %v474
    %1341 = vmatprep.subr.mxu0 %v477
    %1342 = vmatpush1.msra.mxu0 %v476
    %1343 = vmatprep.subr.mxu0 %v479
    %1344 = vmatpush1.msra.mxu0 %v478
    %1345 = vmatprep.subr.mxu0 0.0
    %1346 = vmatpush1.msra.mxu0 0.0
    %1347 = vmatprep.subr.mxu0 0.0
    %1348 = vmatpush1.msra.mxu0 0.0
    %1349 = vmatprep.subr.mxu0 0.0
    %1350 = vmatpush1.msra.mxu0 0.0
    %1351 = vmatprep.subr.mxu0 0.0
    %1352 = vmatpush1.msra.mxu0 0.0
    %1353 = vmatprep.subr.mxu0 0.0
    %1354 = vmatpush1.msra.mxu0 0.0
    %1355 = vmatprep.subr.mxu0 0.0
    %1356 = vmatpush1.msra.mxu0 0.0
    %1357 = vmatprep.subr.mxu0 0.0
    %1358 = vmatpush1.msra.mxu0 0.0
    %1359 = vmatprep.subr.mxu0 0.0
    %1360 = vmatpush1.msra.mxu0 0.0
    %1361 = vmatprep.subr.mxu0 0.0
    %1362 = vmatpush1.msra.mxu0 0.0
    %1363 = vmatprep.subr.mxu0 0.0
    %1364 = vmatpush1.msra.mxu0 0.0
    %1365 = vmatprep.subr.mxu0 0.0
    %1366 = vmatpush1.msra.mxu0 0.0
    %1367 = vmatprep.subr.mxu0 0.0
    %1368 = vmatpush1.msra.mxu0 0.0
    %1369 = vmatprep.subr.mxu0 0.0
    %1370 = vmatpush1.msra.mxu0 0.0
    %1371 = vmatprep.subr.mxu0 0.0
    %1372 = vmatpush1.msra.mxu0 0.0
    %1373 = vmatprep.subr.mxu0 0.0
    %1374 = vmatpush1.msra.mxu0 0.0
    %1375 = vmatprep.subr.mxu0 0.0
    %1376 = vmatpush1.msra.mxu0 0.0
    %1377 = vmatprep.subr.mxu0 0.0
    %1378 = vmatpush1.msra.mxu0 0.0
    %1379 = vmatprep.subr.mxu0 0.0
    %1380 = vmatpush1.msra.mxu0 0.0
    %1381 = vmatprep.subr.mxu0 0.0
    %1382 = vmatpush1.msra.mxu0 0.0
    %1383 = vmatprep.subr.mxu0 0.0
    %1384 = vmatpush1.msra.mxu0 0.0
    %1385 = vmatprep.subr.mxu0 0.0
    %1386 = vmatpush1.msra.mxu0 0.0
    %1387 = vmatprep.subr.mxu0 0.0
    %1388 = vmatpush1.msra.mxu0 0.0
    %1389 = vmatprep.subr.mxu0 0.0
    %1390 = vmatpush1.msra.mxu0 0.0
    %1391 = vmatprep.subr.mxu0 0.0
    %1392 = vmatpush1.msra.mxu0 0.0
    %1393 = vmatprep.mubr.f32.mxu0 0.0
    %1394 = vmatmul.mubr.f32.gmra.mrb[0].mxu0 %v1327
    %v1395 = vpop.f32.mrb[0].mxu0
    %v1396 = vadd.f32 0.0, %v1395
    %v1397 = vpop.f32.mrb[0].mxu0
    %v1398 = vadd.f32 0.0, %v1397
    %1399 = vdwg.mxu0
    %v1400 = vadd.f32 %v1322, %v1396
    %v1401 = vadd.f32 %v1323, %v1398
    %v1402 = vxor.u32 %v1400, 2147483648
    %v1403 = vxor.u32 %v1401, 2147483648
    %v1404 = vmul.f32 %v1402, 1.442695
    %v1405 = vpow.pop %v1404
    %v1406 = vmul.f32 %v1403, 1.442695
    %v1407 = vpow.pop %v1406
    %v1408 = vadd.f32 %v1405, 1.0
    %v1409 = vadd.f32 %v1407, 1.0
    %v1410 = vrcp.pop %v1408
    %v1411 = vmul.f32 1.0, %v1410
    %v1412 = vrcp.pop %v1409
    %v1413 = vmul.f32 1.0, %v1412
    %v1414 = vtanh.pop %v1401
    %v1415 = vmul.f32 %v1411, %v1316
    %v1416 = vmul.f32 %v1411, %v1414
    %1418 = vrot.lane.b32.xlu0 %v1416, 64
    %v1419 = vpop.permute.xlu0 %1418
    %v1421 = vadd.f32 %v1415, %v1419
    %v1422 = vtanh.pop %v1421
    %v1423 = vmul.f32 %v1413, %v1422
    %s1424 = smul.u32 9, 2
    %s1425 = smul.addr %s1424, 8
    %s1426 = scalar_lea.vmem [#allocation2], %s1425
    %v1427 = vld [vmem:[%s1426] sm:$0xff]
    %v1428 = vld [vmem:[%s1426 + $0x8] sm:$0xff]
    %1430 = vrot.lane.b32.xlu0 %v1423, 64
    %v1431 = vpop.permute.xlu0 %1430
    %v1432 = vsel %vm485, %v1431, 0
    %1434 = vmatprep.subr.mxu0 %v465
    %1435 = vmatpush1.msra.mxu0 %v464
    %1436 = vmatprep.subr.mxu0 %v467
    %1437 = vmatpush1.msra.mxu0 %v466
    %1438 = vmatprep.subr.mxu0 %v469
    %1439 = vmatpush1.msra.mxu0 %v468
    %1440 = vmatprep.subr.mxu0 %v471
    %1441 = vmatpush1.msra.mxu0 %v470
    %1442 = vmatprep.subr.mxu0 %v473
    %1443 = vmatpush1.msra.mxu0 %v472
    %1444 = vmatprep.subr.mxu0 %v475
    %1445 = vmatpush1.msra.mxu0 %v474
    %1446 = vmatprep.subr.mxu0 %v477
    %1447 = vmatpush1.msra.mxu0 %v476
    %1448 = vmatprep.subr.mxu0 %v479
    %1449 = vmatpush1.msra.mxu0 %v478
    %1450 = vmatprep.subr.mxu0 0.0
    %1451 = vmatpush1.msra.mxu0 0.0
    %1452 = vmatprep.subr.mxu0 0.0
    %1453 = vmatpush1.msra.mxu0 0.0
    %1454 = vmatprep.subr.mxu0 0.0
    %1455 = vmatpush1.msra.mxu0 0.0
    %1456 = vmatprep.subr.mxu0 0.0
    %1457 = vmatpush1.msra.mxu0 0.0
    %1458 = vmatprep.subr.mxu0 0.0
    %1459 = vmatpush1.msra.mxu0 0.0
    %1460 = vmatprep.subr.mxu0 0.0
    %1461 = vmatpush1.msra.mxu0 0.0
    %1462 = vmatprep.subr.mxu0 0.0
    %1463 = vmatpush1.msra.mxu0 0.0
    %1464 = vmatprep.subr.mxu0 0.0
    %1465 = vmatpush1.msra.mxu0 0.0
    %1466 = vmatprep.subr.mxu0 0.0
    %1467 = vmatpush1.msra.mxu0 0.0
    %1468 = vmatprep.subr.mxu0 0.0
    %1469 = vmatpush1.msra.mxu0 0.0
    %1470 = vmatprep.subr.mxu0 0.0
    %1471 = vmatpush1.msra.mxu0 0.0
    %1472 = vmatprep.subr.mxu0 0.0
    %1473 = vmatpush1.msra.mxu0 0.0
    %1474 = vmatprep.subr.mxu0 0.0
    %1475 = vmatpush1.msra.mxu0 0.0
    %1476 = vmatprep.subr.mxu0 0.0
    %1477 = vmatpush1.msra.mxu0 0.0
    %1478 = vmatprep.subr.mxu0 0.0
    %1479 = vmatpush1.msra.mxu0 0.0
    %1480 = vmatprep.subr.mxu0 0.0
    %1481 = vmatpush1.msra.mxu0 0.0
    %1482 = vmatprep.subr.mxu0 0.0
    %1483 = vmatpush1.msra.mxu0 0.0
    %1484 = vmatprep.subr.mxu0 0.0
    %1485 = vmatpush1.msra.mxu0 0.0
    %1486 = vmatprep.subr.mxu0 0.0
    %1487 = vmatpush1.msra.mxu0 0.0
    %1488 = vmatprep.subr.mxu0 0.0
    %1489 = vmatpush1.msra.mxu0 0.0
    %1490 = vmatprep.subr.mxu0 0.0
    %1491 = vmatpush1.msra.mxu0 0.0
    %1492 = vmatprep.subr.mxu0 0.0
    %1493 = vmatpush1.msra.mxu0 0.0
    %1494 = vmatprep.subr.mxu0 0.0
    %1495 = vmatpush1.msra.mxu0 0.0
    %1496 = vmatprep.subr.mxu0 0.0
    %1497 = vmatpush1.msra.mxu0 0.0
    %1498 = vmatprep.mubr.f32.mxu0 0.0
    %1499 = vmatmul.mubr.f32.gmra.mrb[0].mxu0 %v1432
    %v1500 = vpop.f32.mrb[0].mxu0
    %v1501 = vadd.f32 0.0, %v1500
    %v1502 = vpop.f32.mrb[0].mxu0
    %v1503 = vadd.f32 0.0, %v1502
    %1504 = vdwg.mxu0
    %v1505 = vadd.f32 %v1427, %v1501
    %v1506 = vadd.f32 %v1428, %v1503
    %v1507 = vxor.u32 %v1505, 2147483648
    %v1508 = vxor.u32 %v1506, 2147483648
    %v1509 = vmul.f32 %v1507, 1.442695
    %v1510 = vpow.pop %v1509
    %v1511 = vmul.f32 %v1508, 1.442695
    %v1512 = vpow.pop %v1511
    %v1513 = vadd.f32 %v1510, 1.0
    %v1514 = vadd.f32 %v1512, 1.0
    %v1515 = vrcp.pop %v1513
    %v1516 = vmul.f32 1.0, %v1515
    %v1517 = vrcp.pop %v1514
    %v1518 = vmul.f32 1.0, %v1517
    %v1519 = vtanh.pop %v1506
    %v1520 = vmul.f32 %v1516, %v1421
    %v1521 = vmul.f32 %v1516, %v1519
    %1523 = vrot.lane.b32.xlu0 %v1521, 64
    %v1524 = vpop.permute.xlu0 %1523
    %v1526 = vadd.f32 %v1520, %v1524
    %v1527 = vtanh.pop %v1526
    %v1528 = vmul.f32 %v1518, %v1527
    %s1529 = smul.u32 10, 2
    %s1530 = smul.addr %s1529, 8
    %s1531 = scalar_lea.vmem [#allocation2], %s1530
    %v1532 = vld [vmem:[%s1531] sm:$0xff]
    %v1533 = vld [vmem:[%s1531 + $0x8] sm:$0xff]
    %1535 = vrot.lane.b32.xlu0 %v1528, 64
    %v1536 = vpop.permute.xlu0 %1535
    %v1537 = vsel %vm485, %v1536, 0
    %1539 = vmatprep.subr.mxu0 %v465
    %1540 = vmatpush1.msra.mxu0 %v464
    %1541 = vmatprep.subr.mxu0 %v467
    %1542 = vmatpush1.msra.mxu0 %v466
    %1543 = vmatprep.subr.mxu0 %v469
    %1544 = vmatpush1.msra.mxu0 %v468
    %1545 = vmatprep.subr.mxu0 %v471
    %1546 = vmatpush1.msra.mxu0 %v470
    %1547 = vmatprep.subr.mxu0 %v473
    %1548 = vmatpush1.msra.mxu0 %v472
    %1549 = vmatprep.subr.mxu0 %v475
    %1550 = vmatpush1.msra.mxu0 %v474
    %1551 = vmatprep.subr.mxu0 %v477
    %1552 = vmatpush1.msra.mxu0 %v476
    %1553 = vmatprep.subr.mxu0 %v479
    %1554 = vmatpush1.msra.mxu0 %v478
    %1555 = vmatprep.subr.mxu0 0.0
    %1556 = vmatpush1.msra.mxu0 0.0
    %1557 = vmatprep.subr.mxu0 0.0
    %1558 = vmatpush1.msra.mxu0 0.0
    %1559 = vmatprep.subr.mxu0 0.0
    %1560 = vmatpush1.msra.mxu0 0.0
    %1561 = vmatprep.subr.mxu0 0.0
    %1562 = vmatpush1.msra.mxu0 0.0
    %1563 = vmatprep.subr.mxu0 0.0
    %1564 = vmatpush1.msra.mxu0 0.0
    %1565 = vmatprep.subr.mxu0 0.0
    %1566 = vmatpush1.msra.mxu0 0.0
    %1567 = vmatprep.subr.mxu0 0.0
    %1568 = vmatpush1.msra.mxu0 0.0
    %1569 = vmatprep.subr.mxu0 0.0
    %1570 = vmatpush1.msra.mxu0 0.0
    %1571 = vmatprep.subr.mxu0 0.0
    %1572 = vmatpush1.msra.mxu0 0.0
    %1573 = vmatprep.subr.mxu0 0.0
    %1574 = vmatpush1.msra.mxu0 0.0
    %1575 = vmatprep.subr.mxu0 0.0
    %1576 = vmatpush1.msra.mxu0 0.0
    %1577 = vmatprep.subr.mxu0 0.0
    %1578 = vmatpush1.msra.mxu0 0.0
    %1579 = vmatprep.subr.mxu0 0.0
    %1580 = vmatpush1.msra.mxu0 0.0
    %1581 = vmatprep.subr.mxu0 0.0
    %1582 = vmatpush1.msra.mxu0 0.0
    %1583 = vmatprep.subr.mxu0 0.0
    %1584 = vmatpush1.msra.mxu0 0.0
    %1585 = vmatprep.subr.mxu0 0.0
    %1586 = vmatpush1.msra.mxu0 0.0
    %1587 = vmatprep.subr.mxu0 0.0
    %1588 = vmatpush1.msra.mxu0 0.0
    %1589 = vmatprep.subr.mxu0 0.0
    %1590 = vmatpush1.msra.mxu0 0.0
    %1591 = vmatprep.subr.mxu0 0.0
    %1592 = vmatpush1.msra.mxu0 0.0
    %1593 = vmatprep.subr.mxu0 0.0
    %1594 = vmatpush1.msra.mxu0 0.0
    %1595 = vmatprep.subr.mxu0 0.0
    %1596 = vmatpush1.msra.mxu0 0.0
    %1597 = vmatprep.subr.mxu0 0.0
    %1598 = vmatpush1.msra.mxu0 0.0
    %1599 = vmatprep.subr.mxu0 0.0
    %1600 = vmatpush1.msra.mxu0 0.0
    %1601 = vmatprep.subr.mxu0 0.0
    %1602 = vmatpush1.msra.mxu0 0.0
    %1603 = vmatprep.mubr.f32.mxu0 0.0
    %1604 = vmatmul.mubr.f32.gmra.mrb[0].mxu0 %v1537
    %v1605 = vpop.f32.mrb[0].mxu0
    %v1606 = vadd.f32 0.0, %v1605
    %v1607 = vpop.f32.mrb[0].mxu0
    %v1608 = vadd.f32 0.0, %v1607
    %1609 = vdwg.mxu0
    %v1610 = vadd.f32 %v1532, %v1606
    %v1611 = vadd.f32 %v1533, %v1608
    %v1612 = vxor.u32 %v1610, 2147483648
    %v1613 = vxor.u32 %v1611, 2147483648
    %v1614 = vmul.f32 %v1612, 1.442695
    %v1615 = vpow.pop %v1614
    %v1616 = vmul.f32 %v1613, 1.442695
    %v1617 = vpow.pop %v1616
    %v1618 = vadd.f32 %v1615, 1.0
    %v1619 = vadd.f32 %v1617, 1.0
    %v1620 = vrcp.pop %v1618
    %v1621 = vmul.f32 1.0, %v1620
    %v1622 = vrcp.pop %v1619
    %v1623 = vmul.f32 1.0, %v1622
    %v1624 = vtanh.pop %v1611
    %v1625 = vmul.f32 %v1621, %v1526
    %v1626 = vmul.f32 %v1621, %v1624
    %1628 = vrot.lane.b32.xlu0 %v1626, 64
    %v1629 = vpop.permute.xlu0 %1628
    %v1631 = vadd.f32 %v1625, %v1629
    %v1632 = vtanh.pop %v1631
    %v1633 = vmul.f32 %v1623, %v1632
    %s1634 = smul.u32 11, 2
    %s1635 = smul.addr %s1634, 8
    %s1636 = scalar_lea.vmem [#allocation2], %s1635
    %v1637 = vld [vmem:[%s1636] sm:$0xff]
    %v1638 = vld [vmem:[%s1636 + $0x8] sm:$0xff]
    %1640 = vrot.lane.b32.xlu0 %v1633, 64
    %v1641 = vpop.permute.xlu0 %1640
    %v1642 = vsel %vm485, %v1641, 0
    %1644 = vmatprep.subr.mxu0 %v465
    %1645 = vmatpush1.msra.mxu0 %v464
    %1646 = vmatprep.subr.mxu0 %v467
    %1647 = vmatpush1.msra.mxu0 %v466
    %1648 = vmatprep.subr.mxu0 %v469
    %1649 = vmatpush1.msra.mxu0 %v468
    %1650 = vmatprep.subr.mxu0 %v471
    %1651 = vmatpush1.msra.mxu0 %v470
    %1652 = vmatprep.subr.mxu0 %v473
    %1653 = vmatpush1.msra.mxu0 %v472
    %1654 = vmatprep.subr.mxu0 %v475
    %1655 = vmatpush1.msra.mxu0 %v474
    %1656 = vmatprep.subr.mxu0 %v477
    %1657 = vmatpush1.msra.mxu0 %v476
    %1658 = vmatprep.subr.mxu0 %v479
    %1659 = vmatpush1.msra.mxu0 %v478
    %1660 = vmatprep.subr.mxu0 0.0
    %1661 = vmatpush1.msra.mxu0 0.0
    %1662 = vmatprep.subr.mxu0 0.0
    %1663 = vmatpush1.msra.mxu0 0.0
    %1664 = vmatprep.subr.mxu0 0.0
    %1665 = vmatpush1.msra.mxu0 0.0
    %1666 = vmatprep.subr.mxu0 0.0
    %1667 = vmatpush1.msra.mxu0 0.0
    %1668 = vmatprep.subr.mxu0 0.0
    %1669 = vmatpush1.msra.mxu0 0.0
    %1670 = vmatprep.subr.mxu0 0.0
    %1671 = vmatpush1.msra.mxu0 0.0
    %1672 = vmatprep.subr.mxu0 0.0
    %1673 = vmatpush1.msra.mxu0 0.0
    %1674 = vmatprep.subr.mxu0 0.0
    %1675 = vmatpush1.msra.mxu0 0.0
    %1676 = vmatprep.subr.mxu0 0.0
    %1677 = vmatpush1.msra.mxu0 0.0
    %1678 = vmatprep.subr.mxu0 0.0
    %1679 = vmatpush1.msra.mxu0 0.0
    %1680 = vmatprep.subr.mxu0 0.0
    %1681 = vmatpush1.msra.mxu0 0.0
    %1682 = vmatprep.subr.mxu0 0.0
    %1683 = vmatpush1.msra.mxu0 0.0
    %1684 = vmatprep.subr.mxu0 0.0
    %1685 = vmatpush1.msra.mxu0 0.0
    %1686 = vmatprep.subr.mxu0 0.0
    %1687 = vmatpush1.msra.mxu0 0.0
    %1688 = vmatprep.subr.mxu0 0.0
    %1689 = vmatpush1.msra.mxu0 0.0
    %1690 = vmatprep.subr.mxu0 0.0
    %1691 = vmatpush1.msra.mxu0 0.0
    %1692 = vmatprep.subr.mxu0 0.0
    %1693 = vmatpush1.msra.mxu0 0.0
    %1694 = vmatprep.subr.mxu0 0.0
    %1695 = vmatpush1.msra.mxu0 0.0
    %1696 = vmatprep.subr.mxu0 0.0
    %1697 = vmatpush1.msra.mxu0 0.0
    %1698 = vmatprep.subr.mxu0 0.0
    %1699 = vmatpush1.msra.mxu0 0.0
    %1700 = vmatprep.subr.mxu0 0.0
    %1701 = vmatpush1.msra.mxu0 0.0
    %1702 = vmatprep.subr.mxu0 0.0
    %1703 = vmatpush1.msra.mxu0 0.0
    %1704 = vmatprep.subr.mxu0 0.0
    %1705 = vmatpush1.msra.mxu0 0.0
    %1706 = vmatprep.subr.mxu0 0.0
    %1707 = vmatpush1.msra.mxu0 0.0
    %1708 = vmatprep.mubr.f32.mxu0 0.0
    %1709 = vmatmul.mubr.f32.gmra.mrb[0].mxu0 %v1642
    %v1710 = vpop.f32.mrb[0].mxu0
    %v1711 = vadd.f32 0.0, %v1710
    %v1712 = vpop.f32.mrb[0].mxu0
    %v1713 = vadd.f32 0.0, %v1712
    %1714 = vdwg.mxu0
    %v1715 = vadd.f32 %v1637, %v1711
    %v1716 = vadd.f32 %v1638, %v1713
    %v1717 = vxor.u32 %v1715, 2147483648
    %v1718 = vxor.u32 %v1716, 2147483648
    %v1719 = vmul.f32 %v1717, 1.442695
    %v1720 = vpow.pop %v1719
    %v1721 = vmul.f32 %v1718, 1.442695
    %v1722 = vpow.pop %v1721
    %v1723 = vadd.f32 %v1720, 1.0
    %v1724 = vadd.f32 %v1722, 1.0
    %v1725 = vrcp.pop %v1723
    %v1726 = vmul.f32 1.0, %v1725
    %v1727 = vrcp.pop %v1724
    %v1728 = vmul.f32 1.0, %v1727
    %v1729 = vtanh.pop %v1716
    %v1730 = vmul.f32 %v1726, %v1631
    %v1731 = vmul.f32 %v1726, %v1729
    %1733 = vrot.lane.b32.xlu0 %v1731, 64
    %v1734 = vpop.permute.xlu0 %1733
    %v1736 = vadd.f32 %v1730, %v1734
    %v1737 = vtanh.pop %v1736
    %v1738 = vmul.f32 %v1728, %v1737
    %s1739 = smul.u32 12, 2
    %s1740 = smul.addr %s1739, 8
    %s1741 = scalar_lea.vmem [#allocation2], %s1740
    %v1742 = vld [vmem:[%s1741] sm:$0xff]
    %v1743 = vld [vmem:[%s1741 + $0x8] sm:$0xff]
    %1745 = vrot.lane.b32.xlu0 %v1738, 64
    %v1746 = vpop.permute.xlu0 %1745
    %v1747 = vsel %vm485, %v1746, 0
    %1749 = vmatprep.subr.mxu0 %v465
    %1750 = vmatpush1.msra.mxu0 %v464
    %1751 = vmatprep.subr.mxu0 %v467
    %1752 = vmatpush1.msra.mxu0 %v466
    %1753 = vmatprep.subr.mxu0 %v469
    %1754 = vmatpush1.msra.mxu0 %v468
    %1755 = vmatprep.subr.mxu0 %v471
    %1756 = vmatpush1.msra.mxu0 %v470
    %1757 = vmatprep.subr.mxu0 %v473
    %1758 = vmatpush1.msra.mxu0 %v472
    %1759 = vmatprep.subr.mxu0 %v475
    %1760 = vmatpush1.msra.mxu0 %v474
    %1761 = vmatprep.subr.mxu0 %v477
    %1762 = vmatpush1.msra.mxu0 %v476
    %1763 = vmatprep.subr.mxu0 %v479
    %1764 = vmatpush1.msra.mxu0 %v478
    %1765 = vmatprep.subr.mxu0 0.0
    %1766 = vmatpush1.msra.mxu0 0.0
    %1767 = vmatprep.subr.mxu0 0.0
    %1768 = vmatpush1.msra.mxu0 0.0
    %1769 = vmatprep.subr.mxu0 0.0
    %1770 = vmatpush1.msra.mxu0 0.0
    %1771 = vmatprep.subr.mxu0 0.0
    %1772 = vmatpush1.msra.mxu0 0.0
    %1773 = vmatprep.subr.mxu0 0.0
    %1774 = vmatpush1.msra.mxu0 0.0
    %1775 = vmatprep.subr.mxu0 0.0
    %1776 = vmatpush1.msra.mxu0 0.0
    %1777 = vmatprep.subr.mxu0 0.0
    %1778 = vmatpush1.msra.mxu0 0.0
    %1779 = vmatprep.subr.mxu0 0.0
    %1780 = vmatpush1.msra.mxu0 0.0
    %1781 = vmatprep.subr.mxu0 0.0
    %1782 = vmatpush1.msra.mxu0 0.0
    %1783 = vmatprep.subr.mxu0 0.0
    %1784 = vmatpush1.msra.mxu0 0.0
    %1785 = vmatprep.subr.mxu0 0.0
    %1786 = vmatpush1.msra.mxu0 0.0
    %1787 = vmatprep.subr.mxu0 0.0
    %1788 = vmatpush1.msra.mxu0 0.0
    %1789 = vmatprep.subr.mxu0 0.0
    %1790 = vmatpush1.msra.mxu0 0.0
    %1791 = vmatprep.subr.mxu0 0.0
    %1792 = vmatpush1.msra.mxu0 0.0
    %1793 = vmatprep.subr.mxu0 0.0
    %1794 = vmatpush1.msra.mxu0 0.0
    %1795 = vmatprep.subr.mxu0 0.0
    %1796 = vmatpush1.msra.mxu0 0.0
    %1797 = vmatprep.subr.mxu0 0.0
    %1798 = vmatpush1.msra.mxu0 0.0
    %1799 = vmatprep.subr.mxu0 0.0
    %1800 = vmatpush1.msra.mxu0 0.0
    %1801 = vmatprep.subr.mxu0 0.0
    %1802 = vmatpush1.msra.mxu0 0.0
    %1803 = vmatprep.subr.mxu0 0.0
    %1804 = vmatpush1.msra.mxu0 0.0
    %1805 = vmatprep.subr.mxu0 0.0
    %1806 = vmatpush1.msra.mxu0 0.0
    %1807 = vmatprep.subr.mxu0 0.0
    %1808 = vmatpush1.msra.mxu0 0.0
    %1809 = vmatprep.subr.mxu0 0.0
    %1810 = vmatpush1.msra.mxu0 0.0
    %1811 = vmatprep.subr.mxu0 0.0
    %1812 = vmatpush1.msra.mxu0 0.0
    %1813 = vmatprep.mubr.f32.mxu0 0.0
    %1814 = vmatmul.mubr.f32.gmra.mrb[0].mxu0 %v1747
    %v1815 = vpop.f32.mrb[0].mxu0
    %v1816 = vadd.f32 0.0, %v1815
    %v1817 = vpop.f32.mrb[0].mxu0
    %v1818 = vadd.f32 0.0, %v1817
    %1819 = vdwg.mxu0
    %v1820 = vadd.f32 %v1742, %v1816
    %v1821 = vadd.f32 %v1743, %v1818
    %v1822 = vxor.u32 %v1820, 2147483648
    %v1823 = vxor.u32 %v1821, 2147483648
    %v1824 = vmul.f32 %v1822, 1.442695
    %v1825 = vpow.pop %v1824
    %v1826 = vmul.f32 %v1823, 1.442695
    %v1827 = vpow.pop %v1826
    %v1828 = vadd.f32 %v1825, 1.0
    %v1829 = vadd.f32 %v1827, 1.0
    %v1830 = vrcp.pop %v1828
    %v1831 = vmul.f32 1.0, %v1830
    %v1832 = vrcp.pop %v1829
    %v1833 = vmul.f32 1.0, %v1832
    %v1834 = vtanh.pop %v1821
    %v1835 = vmul.f32 %v1831, %v1736
    %v1836 = vmul.f32 %v1831, %v1834
    %1838 = vrot.lane.b32.xlu0 %v1836, 64
    %v1839 = vpop.permute.xlu0 %1838
    %v1841 = vadd.f32 %v1835, %v1839
    %v1842 = vtanh.pop %v1841
    %v1843 = vmul.f32 %v1833, %v1842
    %s1844 = smul.u32 13, 2
    %s1845 = smul.addr %s1844, 8
    %s1846 = scalar_lea.vmem [#allocation2], %s1845
    %v1847 = vld [vmem:[%s1846] sm:$0xff]
    %v1848 = vld [vmem:[%s1846 + $0x8] sm:$0xff]
    %1850 = vrot.lane.b32.xlu0 %v1843, 64
    %v1851 = vpop.permute.xlu0 %1850
    %v1852 = vsel %vm485, %v1851, 0
    %1854 = vmatprep.subr.mxu0 %v465
    %1855 = vmatpush1.msra.mxu0 %v464
    %1856 = vmatprep.subr.mxu0 %v467
    %1857 = vmatpush1.msra.mxu0 %v466
    %1858 = vmatprep.subr.mxu0 %v469
    %1859 = vmatpush1.msra.mxu0 %v468
    %1860 = vmatprep.subr.mxu0 %v471
    %1861 = vmatpush1.msra.mxu0 %v470
    %1862 = vmatprep.subr.mxu0 %v473
    %1863 = vmatpush1.msra.mxu0 %v472
    %1864 = vmatprep.subr.mxu0 %v475
    %1865 = vmatpush1.msra.mxu0 %v474
    %1866 = vmatprep.subr.mxu0 %v477
    %1867 = vmatpush1.msra.mxu0 %v476
    %1868 = vmatprep.subr.mxu0 %v479
    %1869 = vmatpush1.msra.mxu0 %v478
    %1870 = vmatprep.subr.mxu0 0.0
    %1871 = vmatpush1.msra.mxu0 0.0
    %1872 = vmatprep.subr.mxu0 0.0
    %1873 = vmatpush1.msra.mxu0 0.0
    %1874 = vmatprep.subr.mxu0 0.0
    %1875 = vmatpush1.msra.mxu0 0.0
    %1876 = vmatprep.subr.mxu0 0.0
    %1877 = vmatpush1.msra.mxu0 0.0
    %1878 = vmatprep.subr.mxu0 0.0
    %1879 = vmatpush1.msra.mxu0 0.0
    %1880 = vmatprep.subr.mxu0 0.0
    %1881 = vmatpush1.msra.mxu0 0.0
    %1882 = vmatprep.subr.mxu0 0.0
    %1883 = vmatpush1.msra.mxu0 0.0
    %1884 = vmatprep.subr.mxu0 0.0
    %1885 = vmatpush1.msra.mxu0 0.0
    %1886 = vmatprep.subr.mxu0 0.0
    %1887 = vmatpush1.msra.mxu0 0.0
    %1888 = vmatprep.subr.mxu0 0.0
    %1889 = vmatpush1.msra.mxu0 0.0
    %1890 = vmatprep.subr.mxu0 0.0
    %1891 = vmatpush1.msra.mxu0 0.0
    %1892 = vmatprep.subr.mxu0 0.0
    %1893 = vmatpush1.msra.mxu0 0.0
    %1894 = vmatprep.subr.mxu0 0.0
    %1895 = vmatpush1.msra.mxu0 0.0
    %1896 = vmatprep.subr.mxu0 0.0
    %1897 = vmatpush1.msra.mxu0 0.0
    %1898 = vmatprep.subr.mxu0 0.0
    %1899 = vmatpush1.msra.mxu0 0.0
    %1900 = vmatprep.subr.mxu0 0.0
    %1901 = vmatpush1.msra.mxu0 0.0
    %1902 = vmatprep.subr.mxu0 0.0
    %1903 = vmatpush1.msra.mxu0 0.0
    %1904 = vmatprep.subr.mxu0 0.0
    %1905 = vmatpush1.msra.mxu0 0.0
    %1906 = vmatprep.subr.mxu0 0.0
    %1907 = vmatpush1.msra.mxu0 0.0
    %1908 = vmatprep.subr.mxu0 0.0
    %1909 = vmatpush1.msra.mxu0 0.0
    %1910 = vmatprep.subr.mxu0 0.0
    %1911 = vmatpush1.msra.mxu0 0.0
    %1912 = vmatprep.subr.mxu0 0.0
    %1913 = vmatpush1.msra.mxu0 0.0
    %1914 = vmatprep.subr.mxu0 0.0
    %1915 = vmatpush1.msra.mxu0 0.0
    %1916 = vmatprep.subr.mxu0 0.0
    %1917 = vmatpush1.msra.mxu0 0.0
    %1918 = vmatprep.mubr.f32.mxu0 0.0
    %1919 = vmatmul.mubr.f32.gmra.mrb[0].mxu0 %v1852
    %v1920 = vpop.f32.mrb[0].mxu0
    %v1921 = vadd.f32 0.0, %v1920
    %v1922 = vpop.f32.mrb[0].mxu0
    %v1923 = vadd.f32 0.0, %v1922
    %1924 = vdwg.mxu0
    %v1925 = vadd.f32 %v1847, %v1921
    %v1926 = vadd.f32 %v1848, %v1923
    %v1927 = vxor.u32 %v1925, 2147483648
    %v1928 = vxor.u32 %v1926, 2147483648
    %v1929 = vmul.f32 %v1927, 1.442695
    %v1930 = vpow.pop %v1929
    %v1931 = vmul.f32 %v1928, 1.442695
    %v1932 = vpow.pop %v1931
    %v1933 = vadd.f32 %v1930, 1.0
    %v1934 = vadd.f32 %v1932, 1.0
    %v1935 = vrcp.pop %v1933
    %v1936 = vmul.f32 1.0, %v1935
    %v1937 = vrcp.pop %v1934
    %v1938 = vmul.f32 1.0, %v1937
    %v1939 = vtanh.pop %v1926
    %v1940 = vmul.f32 %v1936, %v1841
    %v1941 = vmul.f32 %v1936, %v1939
    %1943 = vrot.lane.b32.xlu0 %v1941, 64
    %v1944 = vpop.permute.xlu0 %1943
    %v1946 = vadd.f32 %v1940, %v1944
    %v1947 = vtanh.pop %v1946
    %v1948 = vmul.f32 %v1938, %v1947
    %s1949 = smul.u32 14, 2
    %s1950 = smul.addr %s1949, 8
    %s1951 = scalar_lea.vmem [#allocation2], %s1950
    %v1952 = vld [vmem:[%s1951] sm:$0xff]
    %v1953 = vld [vmem:[%s1951 + $0x8] sm:$0xff]
    %1955 = vrot.lane.b32.xlu0 %v1948, 64
    %v1956 = vpop.permute.xlu0 %1955
    %v1957 = vsel %vm485, %v1956, 0
    %1959 = vmatprep.subr.mxu0 %v465
    %1960 = vmatpush1.msra.mxu0 %v464
    %1961 = vmatprep.subr.mxu0 %v467
    %1962 = vmatpush1.msra.mxu0 %v466
    %1963 = vmatprep.subr.mxu0 %v469
    %1964 = vmatpush1.msra.mxu0 %v468
    %1965 = vmatprep.subr.mxu0 %v471
    %1966 = vmatpush1.msra.mxu0 %v470
    %1967 = vmatprep.subr.mxu0 %v473
    %1968 = vmatpush1.msra.mxu0 %v472
    %1969 = vmatprep.subr.mxu0 %v475
    %1970 = vmatpush1.msra.mxu0 %v474
    %1971 = vmatprep.subr.mxu0 %v477
    %1972 = vmatpush1.msra.mxu0 %v476
    %1973 = vmatprep.subr.mxu0 %v479
    %1974 = vmatpush1.msra.mxu0 %v478
    %1975 = vmatprep.subr.mxu0 0.0
    %1976 = vmatpush1.msra.mxu0 0.0
    %1977 = vmatprep.subr.mxu0 0.0
    %1978 = vmatpush1.msra.mxu0 0.0
    %1979 = vmatprep.subr.mxu0 0.0
    %1980 = vmatpush1.msra.mxu0 0.0
    %1981 = vmatprep.subr.mxu0 0.0
    %1982 = vmatpush1.msra.mxu0 0.0
    %1983 = vmatprep.subr.mxu0 0.0
    %1984 = vmatpush1.msra.mxu0 0.0
    %1985 = vmatprep.subr.mxu0 0.0
    %1986 = vmatpush1.msra.mxu0 0.0
    %1987 = vmatprep.subr.mxu0 0.0
    %1988 = vmatpush1.msra.mxu0 0.0
    %1989 = vmatprep.subr.mxu0 0.0
    %1990 = vmatpush1.msra.mxu0 0.0
    %1991 = vmatprep.subr.mxu0 0.0
    %1992 = vmatpush1.msra.mxu0 0.0
    %1993 = vmatprep.subr.mxu0 0.0
    %1994 = vmatpush1.msra.mxu0 0.0
    %1995 = vmatprep.subr.mxu0 0.0
    %1996 = vmatpush1.msra.mxu0 0.0
    %1997 = vmatprep.subr.mxu0 0.0
    %1998 = vmatpush1.msra.mxu0 0.0
    %1999 = vmatprep.subr.mxu0 0.0
    %2000 = vmatpush1.msra.mxu0 0.0
    %2001 = vmatprep.subr.mxu0 0.0
    %2002 = vmatpush1.msra.mxu0 0.0
    %2003 = vmatprep.subr.mxu0 0.0
    %2004 = vmatpush1.msra.mxu0 0.0
    %2005 = vmatprep.subr.mxu0 0.0
    %2006 = vmatpush1.msra.mxu0 0.0
    %2007 = vmatprep.subr.mxu0 0.0
    %2008 = vmatpush1.msra.mxu0 0.0
    %2009 = vmatprep.subr.mxu0 0.0
    %2010 = vmatpush1.msra.mxu0 0.0
    %2011 = vmatprep.subr.mxu0 0.0
    %2012 = vmatpush1.msra.mxu0 0.0
    %2013 = vmatprep.subr.mxu0 0.0
    %2014 = vmatpush1.msra.mxu0 0.0
    %2015 = vmatprep.subr.mxu0 0.0
    %2016 = vmatpush1.msra.mxu0 0.0
    %2017 = vmatprep.subr.mxu0 0.0
    %2018 = vmatpush1.msra.mxu0 0.0
    %2019 = vmatprep.subr.mxu0 0.0
    %2020 = vmatpush1.msra.mxu0 0.0
    %2021 = vmatprep.subr.mxu0 0.0
    %2022 = vmatpush1.msra.mxu0 0.0
    %2023 = vmatprep.mubr.f32.mxu0 0.0
    %2024 = vmatmul.mubr.f32.gmra.mrb[0].mxu0 %v1957
    %v2025 = vpop.f32.mrb[0].mxu0
    %v2026 = vadd.f32 0.0, %v2025
    %v2027 = vpop.f32.mrb[0].mxu0
    %v2028 = vadd.f32 0.0, %v2027
    %2029 = vdwg.mxu0
    %v2030 = vadd.f32 %v1952, %v2026
    %v2031 = vadd.f32 %v1953, %v2028
    %v2032 = vxor.u32 %v2030, 2147483648
    %v2033 = vxor.u32 %v2031, 2147483648
    %v2034 = vmul.f32 %v2032, 1.442695
    %v2035 = vpow.pop %v2034
    %v2036 = vmul.f32 %v2033, 1.442695
    %v2037 = vpow.pop %v2036
    %v2038 = vadd.f32 %v2035, 1.0
    %v2039 = vadd.f32 %v2037, 1.0
    %v2040 = vrcp.pop %v2038
    %v2041 = vmul.f32 1.0, %v2040
    %v2042 = vrcp.pop %v2039
    %v2043 = vmul.f32 1.0, %v2042
    %v2044 = vtanh.pop %v2031
    %v2045 = vmul.f32 %v2041, %v1946
    %v2046 = vmul.f32 %v2041, %v2044
    %2048 = vrot.lane.b32.xlu0 %v2046, 64
    %v2049 = vpop.permute.xlu0 %2048
    %v2051 = vadd.f32 %v2045, %v2049
    %v2052 = vtanh.pop %v2051
    %v2053 = vmul.f32 %v2043, %v2052
    %s2054 = smul.u32 15, 2
    %s2055 = smul.addr %s2054, 8
    %s2056 = scalar_lea.vmem [#allocation2], %s2055
    %v2057 = vld [vmem:[%s2056] sm:$0xff]
    %v2058 = vld [vmem:[%s2056 + $0x8] sm:$0xff]
    %2060 = vrot.lane.b32.xlu0 %v2053, 64
    %v2061 = vpop.permute.xlu0 %2060
    %v2062 = vsel %vm485, %v2061, 0
    %2064 = vmatprep.subr.mxu0 %v465
    %2065 = vmatpush1.msra.mxu0 %v464
    %2066 = vmatprep.subr.mxu0 %v467
    %2067 = vmatpush1.msra.mxu0 %v466
    %2068 = vmatprep.subr.mxu0 %v469
    %2069 = vmatpush1.msra.mxu0 %v468
    %2070 = vmatprep.subr.mxu0 %v471
    %2071 = vmatpush1.msra.mxu0 %v470
    %2072 = vmatprep.subr.mxu0 %v473
    %2073 = vmatpush1.msra.mxu0 %v472
    %2074 = vmatprep.subr.mxu0 %v475
    %2075 = vmatpush1.msra.mxu0 %v474
    %2076 = vmatprep.subr.mxu0 %v477
    %2077 = vmatpush1.msra.mxu0 %v476
    %2078 = vmatprep.subr.mxu0 %v479
    %2079 = vmatpush1.msra.mxu0 %v478
    %2080 = vmatprep.subr.mxu0 0.0
    %2081 = vmatpush1.msra.mxu0 0.0
    %2082 = vmatprep.subr.mxu0 0.0
    %2083 = vmatpush1.msra.mxu0 0.0
    %2084 = vmatprep.subr.mxu0 0.0
    %2085 = vmatpush1.msra.mxu0 0.0
    %2086 = vmatprep.subr.mxu0 0.0
    %2087 = vmatpush1.msra.mxu0 0.0
    %2088 = vmatprep.subr.mxu0 0.0
    %2089 = vmatpush1.msra.mxu0 0.0
    %2090 = vmatprep.subr.mxu0 0.0
    %2091 = vmatpush1.msra.mxu0 0.0
    %2092 = vmatprep.subr.mxu0 0.0
    %2093 = vmatpush1.msra.mxu0 0.0
    %2094 = vmatprep.subr.mxu0 0.0
    %2095 = vmatpush1.msra.mxu0 0.0
    %2096 = vmatprep.subr.mxu0 0.0
    %2097 = vmatpush1.msra.mxu0 0.0
    %2098 = vmatprep.subr.mxu0 0.0
    %2099 = vmatpush1.msra.mxu0 0.0
    %2100 = vmatprep.subr.mxu0 0.0
    %2101 = vmatpush1.msra.mxu0 0.0
    %2102 = vmatprep.subr.mxu0 0.0
    %2103 = vmatpush1.msra.mxu0 0.0
    %2104 = vmatprep.subr.mxu0 0.0
    %2105 = vmatpush1.msra.mxu0 0.0
    %2106 = vmatprep.subr.mxu0 0.0
    %2107 = vmatpush1.msra.mxu0 0.0
    %2108 = vmatprep.subr.mxu0 0.0
    %2109 = vmatpush1.msra.mxu0 0.0
    %2110 = vmatprep.subr.mxu0 0.0
    %2111 = vmatpush1.msra.mxu0 0.0
    %2112 = vmatprep.subr.mxu0 0.0
    %2113 = vmatpush1.msra.mxu0 0.0
    %2114 = vmatprep.subr.mxu0 0.0
    %2115 = vmatpush1.msra.mxu0 0.0
    %2116 = vmatprep.subr.mxu0 0.0
    %2117 = vmatpush1.msra.mxu0 0.0
    %2118 = vmatprep.subr.mxu0 0.0
    %2119 = vmatpush1.msra.mxu0 0.0
    %2120 = vmatprep.subr.mxu0 0.0
    %2121 = vmatpush1.msra.mxu0 0.0
    %2122 = vmatprep.subr.mxu0 0.0
    %2123 = vmatpush1.msra.mxu0 0.0
    %2124 = vmatprep.subr.mxu0 0.0
    %2125 = vmatpush1.msra.mxu0 0.0
    %2126 = vmatprep.subr.mxu0 0.0
    %2127 = vmatpush1.msra.mxu0 0.0
    %2128 = vmatprep.mubr.f32.mxu0 0.0
    %2129 = vmatmul.mubr.f32.gmra.mrb[0].mxu0 %v2062
    %v2130 = vpop.f32.mrb[0].mxu0
    %v2131 = vadd.f32 0.0, %v2130
    %v2132 = vpop.f32.mrb[0].mxu0
    %v2133 = vadd.f32 0.0, %v2132
    %2134 = vdwg.mxu0
    %v2135 = vadd.f32 %v2057, %v2131
    %v2136 = vadd.f32 %v2058, %v2133
    %v2137 = vxor.u32 %v2135, 2147483648
    %v2138 = vxor.u32 %v2136, 2147483648
    %v2139 = vmul.f32 %v2137, 1.442695
    %v2140 = vpow.pop %v2139
    %v2141 = vmul.f32 %v2138, 1.442695
    %v2142 = vpow.pop %v2141
    %v2143 = vadd.f32 %v2140, 1.0
    %v2144 = vadd.f32 %v2142, 1.0
    %v2145 = vrcp.pop %v2143
    %v2146 = vmul.f32 1.0, %v2145
    %v2147 = vrcp.pop %v2144
    %v2148 = vmul.f32 1.0, %v2147
    %v2149 = vtanh.pop %v2136
    %v2150 = vmul.f32 %v2146, %v2051
    %v2151 = vmul.f32 %v2146, %v2149
    %2153 = vrot.lane.b32.xlu0 %v2151, 64
    %v2154 = vpop.permute.xlu0 %2153
    %v2156 = vadd.f32 %v2150, %v2154
    %v2157 = vtanh.pop %v2156
    %v2158 = vmul.f32 %v2148, %v2157
    %s2159 = smul.u32 16, 2
    %s2160 = smul.addr %s2159, 8
    %s2161 = scalar_lea.vmem [#allocation2], %s2160
    %v2162 = vld [vmem:[%s2161] sm:$0xff]
    %v2163 = vld [vmem:[%s2161 + $0x8] sm:$0xff]
    %2165 = vrot.lane.b32.xlu0 %v2158, 64
    %v2166 = vpop.permute.xlu0 %2165
    %v2167 = vsel %vm485, %v2166, 0
    %2169 = vmatprep.subr.mxu0 %v465
    %2170 = vmatpush1.msra.mxu0 %v464
    %2171 = vmatprep.subr.mxu0 %v467
    %2172 = vmatpush1.msra.mxu0 %v466
    %2173 = vmatprep.subr.mxu0 %v469
    %2174 = vmatpush1.msra.mxu0 %v468
    %2175 = vmatprep.subr.mxu0 %v471
    %2176 = vmatpush1.msra.mxu0 %v470
    %2177 = vmatprep.subr.mxu0 %v473
    %2178 = vmatpush1.msra.mxu0 %v472
    %2179 = vmatprep.subr.mxu0 %v475
    %2180 = vmatpush1.msra.mxu0 %v474
    %2181 = vmatprep.subr.mxu0 %v477
    %2182 = vmatpush1.msra.mxu0 %v476
    %2183 = vmatprep.subr.mxu0 %v479
    %2184 = vmatpush1.msra.mxu0 %v478
    %2185 = vmatprep.subr.mxu0 0.0
    %2186 = vmatpush1.msra.mxu0 0.0
    %2187 = vmatprep.subr.mxu0 0.0
    %2188 = vmatpush1.msra.mxu0 0.0
    %2189 = vmatprep.subr.mxu0 0.0
    %2190 = vmatpush1.msra.mxu0 0.0
    %2191 = vmatprep.subr.mxu0 0.0
    %2192 = vmatpush1.msra.mxu0 0.0
    %2193 = vmatprep.subr.mxu0 0.0
    %2194 = vmatpush1.msra.mxu0 0.0
    %2195 = vmatprep.subr.mxu0 0.0
    %2196 = vmatpush1.msra.mxu0 0.0
    %2197 = vmatprep.subr.mxu0 0.0
    %2198 = vmatpush1.msra.mxu0 0.0
    %2199 = vmatprep.subr.mxu0 0.0
    %2200 = vmatpush1.msra.mxu0 0.0
    %2201 = vmatprep.subr.mxu0 0.0
    %2202 = vmatpush1.msra.mxu0 0.0
    %2203 = vmatprep.subr.mxu0 0.0
    %2204 = vmatpush1.msra.mxu0 0.0
    %2205 = vmatprep.subr.mxu0 0.0
    %2206 = vmatpush1.msra.mxu0 0.0
    %2207 = vmatprep.subr.mxu0 0.0
    %2208 = vmatpush1.msra.mxu0 0.0
    %2209 = vmatprep.subr.mxu0 0.0
    %2210 = vmatpush1.msra.mxu0 0.0
    %2211 = vmatprep.subr.mxu0 0.0
    %2212 = vmatpush1.msra.mxu0 0.0
    %2213 = vmatprep.subr.mxu0 0.0
    %2214 = vmatpush1.msra.mxu0 0.0
    %2215 = vmatprep.subr.mxu0 0.0
    %2216 = vmatpush1.msra.mxu0 0.0
    %2217 = vmatprep.subr.mxu0 0.0
    %2218 = vmatpush1.msra.mxu0 0.0
    %2219 = vmatprep.subr.mxu0 0.0
    %2220 = vmatpush1.msra.mxu0 0.0
    %2221 = vmatprep.subr.mxu0 0.0
    %2222 = vmatpush1.msra.mxu0 0.0
    %2223 = vmatprep.subr.mxu0 0.0
    %2224 = vmatpush1.msra.mxu0 0.0
    %2225 = vmatprep.subr.mxu0 0.0
    %2226 = vmatpush1.msra.mxu0 0.0
    %2227 = vmatprep.subr.mxu0 0.0
    %2228 = vmatpush1.msra.mxu0 0.0
    %2229 = vmatprep.subr.mxu0 0.0
    %2230 = vmatpush1.msra.mxu0 0.0
    %2231 = vmatprep.subr.mxu0 0.0
    %2232 = vmatpush1.msra.mxu0 0.0
    %2233 = vmatprep.mubr.f32.mxu0 0.0
    %2234 = vmatmul.mubr.f32.gmra.mrb[0].mxu0 %v2167
    %v2235 = vpop.f32.mrb[0].mxu0
    %v2236 = vadd.f32 0.0, %v2235
    %v2237 = vpop.f32.mrb[0].mxu0
    %v2238 = vadd.f32 0.0, %v2237
    %2239 = vdwg.mxu0
    %v2240 = vadd.f32 %v2162, %v2236
    %v2241 = vadd.f32 %v2163, %v2238
    %v2242 = vxor.u32 %v2240, 2147483648
    %v2243 = vxor.u32 %v2241, 2147483648
    %v2244 = vmul.f32 %v2242, 1.442695
    %v2245 = vpow.pop %v2244
    %v2246 = vmul.f32 %v2243, 1.442695
    %v2247 = vpow.pop %v2246
    %v2248 = vadd.f32 %v2245, 1.0
    %v2249 = vadd.f32 %v2247, 1.0
    %v2250 = vrcp.pop %v2248
    %v2251 = vmul.f32 1.0, %v2250
    %v2252 = vrcp.pop %v2249
    %v2253 = vmul.f32 1.0, %v2252
    %v2254 = vtanh.pop %v2241
    %v2255 = vmul.f32 %v2251, %v2156
    %v2256 = vmul.f32 %v2251, %v2254
    %2258 = vrot.lane.b32.xlu0 %v2256, 64
    %v2259 = vpop.permute.xlu0 %2258
    %v2261 = vadd.f32 %v2255, %v2259
    %v2262 = vtanh.pop %v2261
    %v2263 = vmul.f32 %v2253, %v2262
    %s2264 = smul.u32 17, 2
    %s2265 = smul.addr %s2264, 8
    %s2266 = scalar_lea.vmem [#allocation2], %s2265
    %v2267 = vld [vmem:[%s2266] sm:$0xff]
    %v2268 = vld [vmem:[%s2266 + $0x8] sm:$0xff]
    %2270 = vrot.lane.b32.xlu0 %v2263, 64
    %v2271 = vpop.permute.xlu0 %2270
    %v2272 = vsel %vm485, %v2271, 0
    %2274 = vmatprep.subr.mxu0 %v465
    %2275 = vmatpush1.msra.mxu0 %v464
    %2276 = vmatprep.subr.mxu0 %v467
    %2277 = vmatpush1.msra.mxu0 %v466
    %2278 = vmatprep.subr.mxu0 %v469
    %2279 = vmatpush1.msra.mxu0 %v468
    %2280 = vmatprep.subr.mxu0 %v471
    %2281 = vmatpush1.msra.mxu0 %v470
    %2282 = vmatprep.subr.mxu0 %v473
    %2283 = vmatpush1.msra.mxu0 %v472
    %2284 = vmatprep.subr.mxu0 %v475
    %2285 = vmatpush1.msra.mxu0 %v474
    %2286 = vmatprep.subr.mxu0 %v477
    %2287 = vmatpush1.msra.mxu0 %v476
    %2288 = vmatprep.subr.mxu0 %v479
    %2289 = vmatpush1.msra.mxu0 %v478
    %2290 = vmatprep.subr.mxu0 0.0
    %2291 = vmatpush1.msra.mxu0 0.0
    %2292 = vmatprep.subr.mxu0 0.0
    %2293 = vmatpush1.msra.mxu0 0.0
    %2294 = vmatprep.subr.mxu0 0.0
    %2295 = vmatpush1.msra.mxu0 0.0
    %2296 = vmatprep.subr.mxu0 0.0
    %2297 = vmatpush1.msra.mxu0 0.0
    %2298 = vmatprep.subr.mxu0 0.0
    %2299 = vmatpush1.msra.mxu0 0.0
    %2300 = vmatprep.subr.mxu0 0.0
    %2301 = vmatpush1.msra.mxu0 0.0
    %2302 = vmatprep.subr.mxu0 0.0
    %2303 = vmatpush1.msra.mxu0 0.0
    %2304 = vmatprep.subr.mxu0 0.0
    %2305 = vmatpush1.msra.mxu0 0.0
    %2306 = vmatprep.subr.mxu0 0.0
    %2307 = vmatpush1.msra.mxu0 0.0
    %2308 = vmatprep.subr.mxu0 0.0
    %2309 = vmatpush1.msra.mxu0 0.0
    %2310 = vmatprep.subr.mxu0 0.0
    %2311 = vmatpush1.msra.mxu0 0.0
    %2312 = vmatprep.subr.mxu0 0.0
    %2313 = vmatpush1.msra.mxu0 0.0
    %2314 = vmatprep.subr.mxu0 0.0
    %2315 = vmatpush1.msra.mxu0 0.0
    %2316 = vmatprep.subr.mxu0 0.0
    %2317 = vmatpush1.msra.mxu0 0.0
    %2318 = vmatprep.subr.mxu0 0.0
    %2319 = vmatpush1.msra.mxu0 0.0
    %2320 = vmatprep.subr.mxu0 0.0
    %2321 = vmatpush1.msra.mxu0 0.0
    %2322 = vmatprep.subr.mxu0 0.0
    %2323 = vmatpush1.msra.mxu0 0.0
    %2324 = vmatprep.subr.mxu0 0.0
    %2325 = vmatpush1.msra.mxu0 0.0
    %2326 = vmatprep.subr.mxu0 0.0
    %2327 = vmatpush1.msra.mxu0 0.0
    %2328 = vmatprep.subr.mxu0 0.0
    %2329 = vmatpush1.msra.mxu0 0.0
    %2330 = vmatprep.subr.mxu0 0.0
    %2331 = vmatpush1.msra.mxu0 0.0
    %2332 = vmatprep.subr.mxu0 0.0
    %2333 = vmatpush1.msra.mxu0 0.0
    %2334 = vmatprep.subr.mxu0 0.0
    %2335 = vmatpush1.msra.mxu0 0.0
    %2336 = vmatprep.subr.mxu0 0.0
    %2337 = vmatpush1.msra.mxu0 0.0
    %2338 = vmatprep.mubr.f32.mxu0 0.0
    %2339 = vmatmul.mubr.f32.gmra.mrb[0].mxu0 %v2272
    %v2340 = vpop.f32.mrb[0].mxu0
    %v2341 = vadd.f32 0.0, %v2340
    %v2342 = vpop.f32.mrb[0].mxu0
    %v2343 = vadd.f32 0.0, %v2342
    %2344 = vdwg.mxu0
    %v2345 = vadd.f32 %v2267, %v2341
    %v2346 = vadd.f32 %v2268, %v2343
    %v2347 = vxor.u32 %v2345, 2147483648
    %v2348 = vxor.u32 %v2346, 2147483648
    %v2349 = vmul.f32 %v2347, 1.442695
    %v2350 = vpow.pop %v2349
    %v2351 = vmul.f32 %v2348, 1.442695
    %v2352 = vpow.pop %v2351
    %v2353 = vadd.f32 %v2350, 1.0
    %v2354 = vadd.f32 %v2352, 1.0
    %v2355 = vrcp.pop %v2353
    %v2356 = vmul.f32 1.0, %v2355
    %v2357 = vrcp.pop %v2354
    %v2358 = vmul.f32 1.0, %v2357
    %v2359 = vtanh.pop %v2346
    %v2360 = vmul.f32 %v2356, %v2261
    %v2361 = vmul.f32 %v2356, %v2359
    %2363 = vrot.lane.b32.xlu0 %v2361, 64
    %v2364 = vpop.permute.xlu0 %2363
    %v2366 = vadd.f32 %v2360, %v2364
    %v2367 = vtanh.pop %v2366
    %v2368 = vmul.f32 %v2358, %v2367
    %s2369 = smul.u32 18, 2
    %s2370 = smul.addr %s2369, 8
    %s2371 = scalar_lea.vmem [#allocation2], %s2370
    %v2372 = vld [vmem:[%s2371] sm:$0xff]
    %v2373 = vld [vmem:[%s2371 + $0x8] sm:$0xff]
    %2375 = vrot.lane.b32.xlu0 %v2368, 64
    %v2376 = vpop.permute.xlu0 %2375
    %v2377 = vsel %vm485, %v2376, 0
    %2379 = vmatprep.subr.mxu0 %v465
    %2380 = vmatpush1.msra.mxu0 %v464
    %2381 = vmatprep.subr.mxu0 %v467
    %2382 = vmatpush1.msra.mxu0 %v466
    %2383 = vmatprep.subr.mxu0 %v469
    %2384 = vmatpush1.msra.mxu0 %v468
    %2385 = vmatprep.subr.mxu0 %v471
    %2386 = vmatpush1.msra.mxu0 %v470
    %2387 = vmatprep.subr.mxu0 %v473
    %2388 = vmatpush1.msra.mxu0 %v472
    %2389 = vmatprep.subr.mxu0 %v475
    %2390 = vmatpush1.msra.mxu0 %v474
    %2391 = vmatprep.subr.mxu0 %v477
    %2392 = vmatpush1.msra.mxu0 %v476
    %2393 = vmatprep.subr.mxu0 %v479
    %2394 = vmatpush1.msra.mxu0 %v478
    %2395 = vmatprep.subr.mxu0 0.0
    %2396 = vmatpush1.msra.mxu0 0.0
    %2397 = vmatprep.subr.mxu0 0.0
    %2398 = vmatpush1.msra.mxu0 0.0
    %2399 = vmatprep.subr.mxu0 0.0
    %2400 = vmatpush1.msra.mxu0 0.0
    %2401 = vmatprep.subr.mxu0 0.0
    %2402 = vmatpush1.msra.mxu0 0.0
    %2403 = vmatprep.subr.mxu0 0.0
    %2404 = vmatpush1.msra.mxu0 0.0
    %2405 = vmatprep.subr.mxu0 0.0
    %2406 = vmatpush1.msra.mxu0 0.0
    %2407 = vmatprep.subr.mxu0 0.0
    %2408 = vmatpush1.msra.mxu0 0.0
    %2409 = vmatprep.subr.mxu0 0.0
    %2410 = vmatpush1.msra.mxu0 0.0
    %2411 = vmatprep.subr.mxu0 0.0
    %2412 = vmatpush1.msra.mxu0 0.0
    %2413 = vmatprep.subr.mxu0 0.0
    %2414 = vmatpush1.msra.mxu0 0.0
    %2415 = vmatprep.subr.mxu0 0.0
    %2416 = vmatpush1.msra.mxu0 0.0
    %2417 = vmatprep.subr.mxu0 0.0
    %2418 = vmatpush1.msra.mxu0 0.0
    %2419 = vmatprep.subr.mxu0 0.0
    %2420 = vmatpush1.msra.mxu0 0.0
    %2421 = vmatprep.subr.mxu0 0.0
    %2422 = vmatpush1.msra.mxu0 0.0
    %2423 = vmatprep.subr.mxu0 0.0
    %2424 = vmatpush1.msra.mxu0 0.0
    %2425 = vmatprep.subr.mxu0 0.0
    %2426 = vmatpush1.msra.mxu0 0.0
    %2427 = vmatprep.subr.mxu0 0.0
    %2428 = vmatpush1.msra.mxu0 0.0
    %2429 = vmatprep.subr.mxu0 0.0
    %2430 = vmatpush1.msra.mxu0 0.0
    %2431 = vmatprep.subr.mxu0 0.0
    %2432 = vmatpush1.msra.mxu0 0.0
    %2433 = vmatprep.subr.mxu0 0.0
    %2434 = vmatpush1.msra.mxu0 0.0
    %2435 = vmatprep.subr.mxu0 0.0
    %2436 = vmatpush1.msra.mxu0 0.0
    %2437 = vmatprep.subr.mxu0 0.0
    %2438 = vmatpush1.msra.mxu0 0.0
    %2439 = vmatprep.subr.mxu0 0.0
    %2440 = vmatpush1.msra.mxu0 0.0
    %2441 = vmatprep.subr.mxu0 0.0
    %2442 = vmatpush1.msra.mxu0 0.0
    %2443 = vmatprep.mubr.f32.mxu0 0.0
    %2444 = vmatmul.mubr.f32.gmra.mrb[0].mxu0 %v2377
    %v2445 = vpop.f32.mrb[0].mxu0
    %v2446 = vadd.f32 0.0, %v2445
    %v2447 = vpop.f32.mrb[0].mxu0
    %v2448 = vadd.f32 0.0, %v2447
    %2449 = vdwg.mxu0
    %v2450 = vadd.f32 %v2372, %v2446
    %v2451 = vadd.f32 %v2373, %v2448
    %v2452 = vxor.u32 %v2450, 2147483648
    %v2453 = vxor.u32 %v2451, 2147483648
    %v2454 = vmul.f32 %v2452, 1.442695
    %v2455 = vpow.pop %v2454
    %v2456 = vmul.f32 %v2453, 1.442695
    %v2457 = vpow.pop %v2456
    %v2458 = vadd.f32 %v2455, 1.0
    %v2459 = vadd.f32 %v2457, 1.0
    %v2460 = vrcp.pop %v2458
    %v2461 = vmul.f32 1.0, %v2460
    %v2462 = vrcp.pop %v2459
    %v2463 = vmul.f32 1.0, %v2462
    %v2464 = vtanh.pop %v2451
    %v2465 = vmul.f32 %v2461, %v2366
    %v2466 = vmul.f32 %v2461, %v2464
    %2468 = vrot.lane.b32.xlu0 %v2466, 64
    %v2469 = vpop.permute.xlu0 %2468
    %v2471 = vadd.f32 %v2465, %v2469
    %v2472 = vtanh.pop %v2471
    %v2473 = vmul.f32 %v2463, %v2472
    %s2474 = smul.u32 19, 2
    %s2475 = smul.addr %s2474, 8
    %s2476 = scalar_lea.vmem [#allocation2], %s2475
    %v2477 = vld [vmem:[%s2476] sm:$0xff]
    %v2478 = vld [vmem:[%s2476 + $0x8] sm:$0xff]
    %2480 = vrot.lane.b32.xlu0 %v2473, 64
    %v2481 = vpop.permute.xlu0 %2480
    %v2482 = vsel %vm485, %v2481, 0
    %2484 = vmatprep.subr.mxu0 %v465
    %2485 = vmatpush1.msra.mxu0 %v464
    %2486 = vmatprep.subr.mxu0 %v467
    %2487 = vmatpush1.msra.mxu0 %v466
    %2488 = vmatprep.subr.mxu0 %v469
    %2489 = vmatpush1.msra.mxu0 %v468
    %2490 = vmatprep.subr.mxu0 %v471
    %2491 = vmatpush1.msra.mxu0 %v470
    %2492 = vmatprep.subr.mxu0 %v473
    %2493 = vmatpush1.msra.mxu0 %v472
    %2494 = vmatprep.subr.mxu0 %v475
    %2495 = vmatpush1.msra.mxu0 %v474
    %2496 = vmatprep.subr.mxu0 %v477
    %2497 = vmatpush1.msra.mxu0 %v476
    %2498 = vmatprep.subr.mxu0 %v479
    %2499 = vmatpush1.msra.mxu0 %v478
    %2500 = vmatprep.subr.mxu0 0.0
    %2501 = vmatpush1.msra.mxu0 0.0
    %2502 = vmatprep.subr.mxu0 0.0
    %2503 = vmatpush1.msra.mxu0 0.0
    %2504 = vmatprep.subr.mxu0 0.0
    %2505 = vmatpush1.msra.mxu0 0.0
    %2506 = vmatprep.subr.mxu0 0.0
    %2507 = vmatpush1.msra.mxu0 0.0
    %2508 = vmatprep.subr.mxu0 0.0
    %2509 = vmatpush1.msra.mxu0 0.0
    %2510 = vmatprep.subr.mxu0 0.0
    %2511 = vmatpush1.msra.mxu0 0.0
    %2512 = vmatprep.subr.mxu0 0.0
    %2513 = vmatpush1.msra.mxu0 0.0
    %2514 = vmatprep.subr.mxu0 0.0
    %2515 = vmatpush1.msra.mxu0 0.0
    %2516 = vmatprep.subr.mxu0 0.0
    %2517 = vmatpush1.msra.mxu0 0.0
    %2518 = vmatprep.subr.mxu0 0.0
    %2519 = vmatpush1.msra.mxu0 0.0
    %2520 = vmatprep.subr.mxu0 0.0
    %2521 = vmatpush1.msra.mxu0 0.0
    %2522 = vmatprep.subr.mxu0 0.0
    %2523 = vmatpush1.msra.mxu0 0.0
    %2524 = vmatprep.subr.mxu0 0.0
    %2525 = vmatpush1.msra.mxu0 0.0
    %2526 = vmatprep.subr.mxu0 0.0
    %2527 = vmatpush1.msra.mxu0 0.0
    %2528 = vmatprep.subr.mxu0 0.0
    %2529 = vmatpush1.msra.mxu0 0.0
    %2530 = vmatprep.subr.mxu0 0.0
    %2531 = vmatpush1.msra.mxu0 0.0
    %2532 = vmatprep.subr.mxu0 0.0
    %2533 = vmatpush1.msra.mxu0 0.0
    %2534 = vmatprep.subr.mxu0 0.0
    %2535 = vmatpush1.msra.mxu0 0.0
    %2536 = vmatprep.subr.mxu0 0.0
    %2537 = vmatpush1.msra.mxu0 0.0
    %2538 = vmatprep.subr.mxu0 0.0
    %2539 = vmatpush1.msra.mxu0 0.0
    %2540 = vmatprep.subr.mxu0 0.0
    %2541 = vmatpush1.msra.mxu0 0.0
    %2542 = vmatprep.subr.mxu0 0.0
    %2543 = vmatpush1.msra.mxu0 0.0
    %2544 = vmatprep.subr.mxu0 0.0
    %2545 = vmatpush1.msra.mxu0 0.0
    %2546 = vmatprep.subr.mxu0 0.0
    %2547 = vmatpush1.msra.mxu0 0.0
    %2548 = vmatprep.mubr.f32.mxu0 0.0
    %2549 = vmatmul.mubr.f32.gmra.mrb[0].mxu0 %v2482
    %v2550 = vpop.f32.mrb[0].mxu0
    %v2551 = vadd.f32 0.0, %v2550
    %v2552 = vpop.f32.mrb[0].mxu0
    %v2553 = vadd.f32 0.0, %v2552
    %2554 = vdwg.mxu0
    %v2555 = vadd.f32 %v2477, %v2551
    %v2556 = vadd.f32 %v2478, %v2553
    %v2557 = vxor.u32 %v2555, 2147483648
    %v2558 = vxor.u32 %v2556, 2147483648
    %v2559 = vmul.f32 %v2557, 1.442695
    %v2560 = vpow.pop %v2559
    %v2561 = vmul.f32 %v2558, 1.442695
    %v2562 = vpow.pop %v2561
    %v2563 = vadd.f32 %v2560, 1.0
    %v2564 = vadd.f32 %v2562, 1.0
    %v2565 = vrcp.pop %v2563
    %v2566 = vmul.f32 1.0, %v2565
    %v2567 = vrcp.pop %v2564
    %v2568 = vmul.f32 1.0, %v2567
    %v2569 = vtanh.pop %v2556
    %v2570 = vmul.f32 %v2566, %v2471
    %v2571 = vmul.f32 %v2566, %v2569
    %2573 = vrot.lane.b32.xlu0 %v2571, 64
    %v2574 = vpop.permute.xlu0 %2573
    %v2576 = vadd.f32 %v2570, %v2574
    %v2577 = vtanh.pop %v2576
    %v2578 = vmul.f32 %v2568, %v2577
    %s2579 = smul.u32 20, 2
    %s2580 = smul.addr %s2579, 8
    %s2581 = scalar_lea.vmem [#allocation2], %s2580
    %v2582 = vld [vmem:[%s2581] sm:$0xff]
    %v2583 = vld [vmem:[%s2581 + $0x8] sm:$0xff]
    %2585 = vrot.lane.b32.xlu0 %v2578, 64
    %v2586 = vpop.permute.xlu0 %2585
    %v2587 = vsel %vm485, %v2586, 0
    %2589 = vmatprep.subr.mxu0 %v465
    %2590 = vmatpush1.msra.mxu0 %v464
    %2591 = vmatprep.subr.mxu0 %v467
    %2592 = vmatpush1.msra.mxu0 %v466
    %2593 = vmatprep.subr.mxu0 %v469
    %2594 = vmatpush1.msra.mxu0 %v468
    %2595 = vmatprep.subr.mxu0 %v471
    %2596 = vmatpush1.msra.mxu0 %v470
    %2597 = vmatprep.subr.mxu0 %v473
    %2598 = vmatpush1.msra.mxu0 %v472
    %2599 = vmatprep.subr.mxu0 %v475
    %2600 = vmatpush1.msra.mxu0 %v474
    %2601 = vmatprep.subr.mxu0 %v477
    %2602 = vmatpush1.msra.mxu0 %v476
    %2603 = vmatprep.subr.mxu0 %v479
    %2604 = vmatpush1.msra.mxu0 %v478
    %2605 = vmatprep.subr.mxu0 0.0
    %2606 = vmatpush1.msra.mxu0 0.0
    %2607 = vmatprep.subr.mxu0 0.0
    %2608 = vmatpush1.msra.mxu0 0.0
    %2609 = vmatprep.subr.mxu0 0.0
    %2610 = vmatpush1.msra.mxu0 0.0
    %2611 = vmatprep.subr.mxu0 0.0
    %2612 = vmatpush1.msra.mxu0 0.0
    %2613 = vmatprep.subr.mxu0 0.0
    %2614 = vmatpush1.msra.mxu0 0.0
    %2615 = vmatprep.subr.mxu0 0.0
    %2616 = vmatpush1.msra.mxu0 0.0
    %2617 = vmatprep.subr.mxu0 0.0
    %2618 = vmatpush1.msra.mxu0 0.0
    %2619 = vmatprep.subr.mxu0 0.0
    %2620 = vmatpush1.msra.mxu0 0.0
    %2621 = vmatprep.subr.mxu0 0.0
    %2622 = vmatpush1.msra.mxu0 0.0
    %2623 = vmatprep.subr.mxu0 0.0
    %2624 = vmatpush1.msra.mxu0 0.0
    %2625 = vmatprep.subr.mxu0 0.0
    %2626 = vmatpush1.msra.mxu0 0.0
    %2627 = vmatprep.subr.mxu0 0.0
    %2628 = vmatpush1.msra.mxu0 0.0
    %2629 = vmatprep.subr.mxu0 0.0
    %2630 = vmatpush1.msra.mxu0 0.0
    %2631 = vmatprep.subr.mxu0 0.0
    %2632 = vmatpush1.msra.mxu0 0.0
    %2633 = vmatprep.subr.mxu0 0.0
    %2634 = vmatpush1.msra.mxu0 0.0
    %2635 = vmatprep.subr.mxu0 0.0
    %2636 = vmatpush1.msra.mxu0 0.0
    %2637 = vmatprep.subr.mxu0 0.0
    %2638 = vmatpush1.msra.mxu0 0.0
    %2639 = vmatprep.subr.mxu0 0.0
    %2640 = vmatpush1.msra.mxu0 0.0
    %2641 = vmatprep.subr.mxu0 0.0
    %2642 = vmatpush1.msra.mxu0 0.0
    %2643 = vmatprep.subr.mxu0 0.0
    %2644 = vmatpush1.msra.mxu0 0.0
    %2645 = vmatprep.subr.mxu0 0.0
    %2646 = vmatpush1.msra.mxu0 0.0
    %2647 = vmatprep.subr.mxu0 0.0
    %2648 = vmatpush1.msra.mxu0 0.0
    %2649 = vmatprep.subr.mxu0 0.0
    %2650 = vmatpush1.msra.mxu0 0.0
    %2651 = vmatprep.subr.mxu0 0.0
    %2652 = vmatpush1.msra.mxu0 0.0
    %2653 = vmatprep.mubr.f32.mxu0 0.0
    %2654 = vmatmul.mubr.f32.gmra.mrb[0].mxu0 %v2587
    %v2655 = vpop.f32.mrb[0].mxu0
    %v2656 = vadd.f32 0.0, %v2655
    %v2657 = vpop.f32.mrb[0].mxu0
    %v2658 = vadd.f32 0.0, %v2657
    %2659 = vdwg.mxu0
    %v2660 = vadd.f32 %v2582, %v2656
    %v2661 = vadd.f32 %v2583, %v2658
    %v2662 = vxor.u32 %v2660, 2147483648
    %v2663 = vxor.u32 %v2661, 2147483648
    %v2664 = vmul.f32 %v2662, 1.442695
    %v2665 = vpow.pop %v2664
    %v2666 = vmul.f32 %v2663, 1.442695
    %v2667 = vpow.pop %v2666
    %v2668 = vadd.f32 %v2665, 1.0
    %v2669 = vadd.f32 %v2667, 1.0
    %v2670 = vrcp.pop %v2668
    %v2671 = vmul.f32 1.0, %v2670
    %v2672 = vrcp.pop %v2669
    %v2673 = vmul.f32 1.0, %v2672
    %v2674 = vtanh.pop %v2661
    %v2675 = vmul.f32 %v2671, %v2576
    %v2676 = vmul.f32 %v2671, %v2674
    %2678 = vrot.lane.b32.xlu0 %v2676, 64
    %v2679 = vpop.permute.xlu0 %2678
    %v2681 = vadd.f32 %v2675, %v2679
    %v2682 = vtanh.pop %v2681
    %v2683 = vmul.f32 %v2673, %v2682
    %s2684 = smul.u32 21, 2
    %s2685 = smul.addr %s2684, 8
    %s2686 = scalar_lea.vmem [#allocation2], %s2685
    %v2687 = vld [vmem:[%s2686] sm:$0xff]
    %v2688 = vld [vmem:[%s2686 + $0x8] sm:$0xff]
    %2690 = vrot.lane.b32.xlu0 %v2683, 64
    %v2691 = vpop.permute.xlu0 %2690
    %v2692 = vsel %vm485, %v2691, 0
    %2694 = vmatprep.subr.mxu0 %v465
    %2695 = vmatpush1.msra.mxu0 %v464
    %2696 = vmatprep.subr.mxu0 %v467
    %2697 = vmatpush1.msra.mxu0 %v466
    %2698 = vmatprep.subr.mxu0 %v469
    %2699 = vmatpush1.msra.mxu0 %v468
    %2700 = vmatprep.subr.mxu0 %v471
    %2701 = vmatpush1.msra.mxu0 %v470
    %2702 = vmatprep.subr.mxu0 %v473
    %2703 = vmatpush1.msra.mxu0 %v472
    %2704 = vmatprep.subr.mxu0 %v475
    %2705 = vmatpush1.msra.mxu0 %v474
    %2706 = vmatprep.subr.mxu0 %v477
    %2707 = vmatpush1.msra.mxu0 %v476
    %2708 = vmatprep.subr.mxu0 %v479
    %2709 = vmatpush1.msra.mxu0 %v478
    %2710 = vmatprep.subr.mxu0 0.0
    %2711 = vmatpush1.msra.mxu0 0.0
    %2712 = vmatprep.subr.mxu0 0.0
    %2713 = vmatpush1.msra.mxu0 0.0
    %2714 = vmatprep.subr.mxu0 0.0
    %2715 = vmatpush1.msra.mxu0 0.0
    %2716 = vmatprep.subr.mxu0 0.0
    %2717 = vmatpush1.msra.mxu0 0.0
    %2718 = vmatprep.subr.mxu0 0.0
    %2719 = vmatpush1.msra.mxu0 0.0
    %2720 = vmatprep.subr.mxu0 0.0
    %2721 = vmatpush1.msra.mxu0 0.0
    %2722 = vmatprep.subr.mxu0 0.0
    %2723 = vmatpush1.msra.mxu0 0.0
    %2724 = vmatprep.subr.mxu0 0.0
    %2725 = vmatpush1.msra.mxu0 0.0
    %2726 = vmatprep.subr.mxu0 0.0
    %2727 = vmatpush1.msra.mxu0 0.0
    %2728 = vmatprep.subr.mxu0 0.0
    %2729 = vmatpush1.msra.mxu0 0.0
    %2730 = vmatprep.subr.mxu0 0.0
    %2731 = vmatpush1.msra.mxu0 0.0
    %2732 = vmatprep.subr.mxu0 0.0
    %2733 = vmatpush1.msra.mxu0 0.0
    %2734 = vmatprep.subr.mxu0 0.0
    %2735 = vmatpush1.msra.mxu0 0.0
    %2736 = vmatprep.subr.mxu0 0.0
    %2737 = vmatpush1.msra.mxu0 0.0
    %2738 = vmatprep.subr.mxu0 0.0
    %2739 = vmatpush1.msra.mxu0 0.0
    %2740 = vmatprep.subr.mxu0 0.0
    %2741 = vmatpush1.msra.mxu0 0.0
    %2742 = vmatprep.subr.mxu0 0.0
    %2743 = vmatpush1.msra.mxu0 0.0
    %2744 = vmatprep.subr.mxu0 0.0
    %2745 = vmatpush1.msra.mxu0 0.0
    %2746 = vmatprep.subr.mxu0 0.0
    %2747 = vmatpush1.msra.mxu0 0.0
    %2748 = vmatprep.subr.mxu0 0.0
    %2749 = vmatpush1.msra.mxu0 0.0
    %2750 = vmatprep.subr.mxu0 0.0
    %2751 = vmatpush1.msra.mxu0 0.0
    %2752 = vmatprep.subr.mxu0 0.0
    %2753 = vmatpush1.msra.mxu0 0.0
    %2754 = vmatprep.subr.mxu0 0.0
    %2755 = vmatpush1.msra.mxu0 0.0
    %2756 = vmatprep.subr.mxu0 0.0
    %2757 = vmatpush1.msra.mxu0 0.0
    %2758 = vmatprep.mubr.f32.mxu0 0.0
    %2759 = vmatmul.mubr.f32.gmra.mrb[0].mxu0 %v2692
    %v2760 = vpop.f32.mrb[0].mxu0
    %v2761 = vadd.f32 0.0, %v2760
    %v2762 = vpop.f32.mrb[0].mxu0
    %v2763 = vadd.f32 0.0, %v2762
    %2764 = vdwg.mxu0
    %v2765 = vadd.f32 %v2687, %v2761
    %v2766 = vadd.f32 %v2688, %v2763
    %v2767 = vxor.u32 %v2765, 2147483648
    %v2768 = vxor.u32 %v2766, 2147483648
    %v2769 = vmul.f32 %v2767, 1.442695
    %v2770 = vpow.pop %v2769
    %v2771 = vmul.f32 %v2768, 1.442695
    %v2772 = vpow.pop %v2771
    %v2773 = vadd.f32 %v2770, 1.0
    %v2774 = vadd.f32 %v2772, 1.0
    %v2775 = vrcp.pop %v2773
    %v2776 = vmul.f32 1.0, %v2775
    %v2777 = vrcp.pop %v2774
    %v2778 = vmul.f32 1.0, %v2777
    %v2779 = vtanh.pop %v2766
    %v2780 = vmul.f32 %v2776, %v2681
    %v2781 = vmul.f32 %v2776, %v2779
    %2783 = vrot.lane.b32.xlu0 %v2781, 64
    %v2784 = vpop.permute.xlu0 %2783
    %v2786 = vadd.f32 %v2780, %v2784
    %v2787 = vtanh.pop %v2786
    %v2788 = vmul.f32 %v2778, %v2787
    %s2789 = smul.u32 22, 2
    %s2790 = smul.addr %s2789, 8
    %s2791 = scalar_lea.vmem [#allocation2], %s2790
    %v2792 = vld [vmem:[%s2791] sm:$0xff]
    %v2793 = vld [vmem:[%s2791 + $0x8] sm:$0xff]
    %2795 = vrot.lane.b32.xlu0 %v2788, 64
    %v2796 = vpop.permute.xlu0 %2795
    %v2797 = vsel %vm485, %v2796, 0
    %2799 = vmatprep.subr.mxu0 %v465
    %2800 = vmatpush1.msra.mxu0 %v464
    %2801 = vmatprep.subr.mxu0 %v467
    %2802 = vmatpush1.msra.mxu0 %v466
    %2803 = vmatprep.subr.mxu0 %v469
    %2804 = vmatpush1.msra.mxu0 %v468
    %2805 = vmatprep.subr.mxu0 %v471
    %2806 = vmatpush1.msra.mxu0 %v470
    %2807 = vmatprep.subr.mxu0 %v473
    %2808 = vmatpush1.msra.mxu0 %v472
    %2809 = vmatprep.subr.mxu0 %v475
    %2810 = vmatpush1.msra.mxu0 %v474
    %2811 = vmatprep.subr.mxu0 %v477
    %2812 = vmatpush1.msra.mxu0 %v476
    %2813 = vmatprep.subr.mxu0 %v479
    %2814 = vmatpush1.msra.mxu0 %v478
    %2815 = vmatprep.subr.mxu0 0.0
    %2816 = vmatpush1.msra.mxu0 0.0
    %2817 = vmatprep.subr.mxu0 0.0
    %2818 = vmatpush1.msra.mxu0 0.0
    %2819 = vmatprep.subr.mxu0 0.0
    %2820 = vmatpush1.msra.mxu0 0.0
    %2821 = vmatprep.subr.mxu0 0.0
    %2822 = vmatpush1.msra.mxu0 0.0
    %2823 = vmatprep.subr.mxu0 0.0
    %2824 = vmatpush1.msra.mxu0 0.0
    %2825 = vmatprep.subr.mxu0 0.0
    %2826 = vmatpush1.msra.mxu0 0.0
    %2827 = vmatprep.subr.mxu0 0.0
    %2828 = vmatpush1.msra.mxu0 0.0
    %2829 = vmatprep.subr.mxu0 0.0
    %2830 = vmatpush1.msra.mxu0 0.0
    %2831 = vmatprep.subr.mxu0 0.0
    %2832 = vmatpush1.msra.mxu0 0.0
    %2833 = vmatprep.subr.mxu0 0.0
    %2834 = vmatpush1.msra.mxu0 0.0
    %2835 = vmatprep.subr.mxu0 0.0
    %2836 = vmatpush1.msra.mxu0 0.0
    %2837 = vmatprep.subr.mxu0 0.0
    %2838 = vmatpush1.msra.mxu0 0.0
    %2839 = vmatprep.subr.mxu0 0.0
    %2840 = vmatpush1.msra.mxu0 0.0
    %2841 = vmatprep.subr.mxu0 0.0
    %2842 = vmatpush1.msra.mxu0 0.0
    %2843 = vmatprep.subr.mxu0 0.0
    %2844 = vmatpush1.msra.mxu0 0.0
    %2845 = vmatprep.subr.mxu0 0.0
    %2846 = vmatpush1.msra.mxu0 0.0
    %2847 = vmatprep.subr.mxu0 0.0
    %2848 = vmatpush1.msra.mxu0 0.0
    %2849 = vmatprep.subr.mxu0 0.0
    %2850 = vmatpush1.msra.mxu0 0.0
    %2851 = vmatprep.subr.mxu0 0.0
    %2852 = vmatpush1.msra.mxu0 0.0
    %2853 = vmatprep.subr.mxu0 0.0
    %2854 = vmatpush1.msra.mxu0 0.0
    %2855 = vmatprep.subr.mxu0 0.0
    %2856 = vmatpush1.msra.mxu0 0.0
    %2857 = vmatprep.subr.mxu0 0.0
    %2858 = vmatpush1.msra.mxu0 0.0
    %2859 = vmatprep.subr.mxu0 0.0
    %2860 = vmatpush1.msra.mxu0 0.0
    %2861 = vmatprep.subr.mxu0 0.0
    %2862 = vmatpush1.msra.mxu0 0.0
    %2863 = vmatprep.mubr.f32.mxu0 0.0
    %2864 = vmatmul.mubr.f32.gmra.mrb[0].mxu0 %v2797
    %v2865 = vpop.f32.mrb[0].mxu0
    %v2866 = vadd.f32 0.0, %v2865
    %v2867 = vpop.f32.mrb[0].mxu0
    %v2868 = vadd.f32 0.0, %v2867
    %2869 = vdwg.mxu0
    %v2870 = vadd.f32 %v2792, %v2866
    %v2871 = vadd.f32 %v2793, %v2868
    %v2872 = vxor.u32 %v2870, 2147483648
    %v2873 = vxor.u32 %v2871, 2147483648
    %v2874 = vmul.f32 %v2872, 1.442695
    %v2875 = vpow.pop %v2874
    %v2876 = vmul.f32 %v2873, 1.442695
    %v2877 = vpow.pop %v2876
    %v2878 = vadd.f32 %v2875, 1.0
    %v2879 = vadd.f32 %v2877, 1.0
    %v2880 = vrcp.pop %v2878
    %v2881 = vmul.f32 1.0, %v2880
    %v2882 = vrcp.pop %v2879
    %v2883 = vmul.f32 1.0, %v2882
    %v2884 = vtanh.pop %v2871
    %v2885 = vmul.f32 %v2881, %v2786
    %v2886 = vmul.f32 %v2881, %v2884
    %2888 = vrot.lane.b32.xlu0 %v2886, 64
    %v2889 = vpop.permute.xlu0 %2888
    %v2891 = vadd.f32 %v2885, %v2889
    %v2892 = vtanh.pop %v2891
    %v2893 = vmul.f32 %v2883, %v2892
    %s2894 = smul.u32 23, 2
    %s2895 = smul.addr %s2894, 8
    %s2896 = scalar_lea.vmem [#allocation2], %s2895
    %v2897 = vld [vmem:[%s2896] sm:$0xff]
    %v2898 = vld [vmem:[%s2896 + $0x8] sm:$0xff]
    %2900 = vrot.lane.b32.xlu0 %v2893, 64
    %v2901 = vpop.permute.xlu0 %2900
    %v2902 = vsel %vm485, %v2901, 0
    %2904 = vmatprep.subr.mxu0 %v465
    %2905 = vmatpush1.msra.mxu0 %v464
    %2906 = vmatprep.subr.mxu0 %v467
    %2907 = vmatpush1.msra.mxu0 %v466
    %2908 = vmatprep.subr.mxu0 %v469
    %2909 = vmatpush1.msra.mxu0 %v468
    %2910 = vmatprep.subr.mxu0 %v471
    %2911 = vmatpush1.msra.mxu0 %v470
    %2912 = vmatprep.subr.mxu0 %v473
    %2913 = vmatpush1.msra.mxu0 %v472
    %2914 = vmatprep.subr.mxu0 %v475
    %2915 = vmatpush1.msra.mxu0 %v474
    %2916 = vmatprep.subr.mxu0 %v477
    %2917 = vmatpush1.msra.mxu0 %v476
    %2918 = vmatprep.subr.mxu0 %v479
    %2919 = vmatpush1.msra.mxu0 %v478
    %2920 = vmatprep.subr.mxu0 0.0
    %2921 = vmatpush1.msra.mxu0 0.0
    %2922 = vmatprep.subr.mxu0 0.0
    %2923 = vmatpush1.msra.mxu0 0.0
    %2924 = vmatprep.subr.mxu0 0.0
    %2925 = vmatpush1.msra.mxu0 0.0
    %2926 = vmatprep.subr.mxu0 0.0
    %2927 = vmatpush1.msra.mxu0 0.0
    %2928 = vmatprep.subr.mxu0 0.0
    %2929 = vmatpush1.msra.mxu0 0.0
    %2930 = vmatprep.subr.mxu0 0.0
    %2931 = vmatpush1.msra.mxu0 0.0
    %2932 = vmatprep.subr.mxu0 0.0
    %2933 = vmatpush1.msra.mxu0 0.0
    %2934 = vmatprep.subr.mxu0 0.0
    %2935 = vmatpush1.msra.mxu0 0.0
    %2936 = vmatprep.subr.mxu0 0.0
    %2937 = vmatpush1.msra.mxu0 0.0
    %2938 = vmatprep.subr.mxu0 0.0
    %2939 = vmatpush1.msra.mxu0 0.0
    %2940 = vmatprep.subr.mxu0 0.0
    %2941 = vmatpush1.msra.mxu0 0.0
    %2942 = vmatprep.subr.mxu0 0.0
    %2943 = vmatpush1.msra.mxu0 0.0
    %2944 = vmatprep.subr.mxu0 0.0
    %2945 = vmatpush1.msra.mxu0 0.0
    %2946 = vmatprep.subr.mxu0 0.0
    %2947 = vmatpush1.msra.mxu0 0.0
    %2948 = vmatprep.subr.mxu0 0.0
    %2949 = vmatpush1.msra.mxu0 0.0
    %2950 = vmatprep.subr.mxu0 0.0
    %2951 = vmatpush1.msra.mxu0 0.0
    %2952 = vmatprep.subr.mxu0 0.0
    %2953 = vmatpush1.msra.mxu0 0.0
    %2954 = vmatprep.subr.mxu0 0.0
    %2955 = vmatpush1.msra.mxu0 0.0
    %2956 = vmatprep.subr.mxu0 0.0
    %2957 = vmatpush1.msra.mxu0 0.0
    %2958 = vmatprep.subr.mxu0 0.0
    %2959 = vmatpush1.msra.mxu0 0.0
    %2960 = vmatprep.subr.mxu0 0.0
    %2961 = vmatpush1.msra.mxu0 0.0
    %2962 = vmatprep.subr.mxu0 0.0
    %2963 = vmatpush1.msra.mxu0 0.0
    %2964 = vmatprep.subr.mxu0 0.0
    %2965 = vmatpush1.msra.mxu0 0.0
    %2966 = vmatprep.subr.mxu0 0.0
    %2967 = vmatpush1.msra.mxu0 0.0
    %2968 = vmatprep.mubr.f32.mxu0 0.0
    %2969 = vmatmul.mubr.f32.gmra.mrb[0].mxu0 %v2902
    %v2970 = vpop.f32.mrb[0].mxu0
    %v2971 = vadd.f32 0.0, %v2970
    %v2972 = vpop.f32.mrb[0].mxu0
    %v2973 = vadd.f32 0.0, %v2972
    %2974 = vdwg.mxu0
    %v2975 = vadd.f32 %v2897, %v2971
    %v2976 = vadd.f32 %v2898, %v2973
    %v2977 = vxor.u32 %v2975, 2147483648
    %v2978 = vxor.u32 %v2976, 2147483648
    %v2979 = vmul.f32 %v2977, 1.442695
    %v2980 = vpow.pop %v2979
    %v2981 = vmul.f32 %v2978, 1.442695
    %v2982 = vpow.pop %v2981
    %v2983 = vadd.f32 %v2980, 1.0
    %v2984 = vadd.f32 %v2982, 1.0
    %v2985 = vrcp.pop %v2983
    %v2986 = vmul.f32 1.0, %v2985
    %v2987 = vrcp.pop %v2984
    %v2988 = vmul.f32 1.0, %v2987
    %v2989 = vtanh.pop %v2976
    %v2990 = vmul.f32 %v2986, %v2891
    %v2991 = vmul.f32 %v2986, %v2989
    %2993 = vrot.lane.b32.xlu0 %v2991, 64
    %v2994 = vpop.permute.xlu0 %2993
    %v2996 = vadd.f32 %v2990, %v2994
    %v2997 = vtanh.pop %v2996
    %v2998 = vmul.f32 %v2988, %v2997
    %s2999 = smul.u32 24, 2
    %s3000 = smul.addr %s2999, 8
    %s3001 = scalar_lea.vmem [#allocation2], %s3000
    %v3002 = vld [vmem:[%s3001] sm:$0xff]
    %v3003 = vld [vmem:[%s3001 + $0x8] sm:$0xff]
    %3005 = vrot.lane.b32.xlu0 %v2998, 64
    %v3006 = vpop.permute.xlu0 %3005
    %v3007 = vsel %vm485, %v3006, 0
    %3009 = vmatprep.subr.mxu0 %v465
    %3010 = vmatpush1.msra.mxu0 %v464
    %3011 = vmatprep.subr.mxu0 %v467
    %3012 = vmatpush1.msra.mxu0 %v466
    %3013 = vmatprep.subr.mxu0 %v469
    %3014 = vmatpush1.msra.mxu0 %v468
    %3015 = vmatprep.subr.mxu0 %v471
    %3016 = vmatpush1.msra.mxu0 %v470
    %3017 = vmatprep.subr.mxu0 %v473
    %3018 = vmatpush1.msra.mxu0 %v472
    %3019 = vmatprep.subr.mxu0 %v475
    %3020 = vmatpush1.msra.mxu0 %v474
    %3021 = vmatprep.subr.mxu0 %v477
    %3022 = vmatpush1.msra.mxu0 %v476
    %3023 = vmatprep.subr.mxu0 %v479
    %3024 = vmatpush1.msra.mxu0 %v478
    %3025 = vmatprep.subr.mxu0 0.0
    %3026 = vmatpush1.msra.mxu0 0.0
    %3027 = vmatprep.subr.mxu0 0.0
    %3028 = vmatpush1.msra.mxu0 0.0
    %3029 = vmatprep.subr.mxu0 0.0
    %3030 = vmatpush1.msra.mxu0 0.0
    %3031 = vmatprep.subr.mxu0 0.0
    %3032 = vmatpush1.msra.mxu0 0.0
    %3033 = vmatprep.subr.mxu0 0.0
    %3034 = vmatpush1.msra.mxu0 0.0
    %3035 = vmatprep.subr.mxu0 0.0
    %3036 = vmatpush1.msra.mxu0 0.0
    %3037 = vmatprep.subr.mxu0 0.0
    %3038 = vmatpush1.msra.mxu0 0.0
    %3039 = vmatprep.subr.mxu0 0.0
    %3040 = vmatpush1.msra.mxu0 0.0
    %3041 = vmatprep.subr.mxu0 0.0
    %3042 = vmatpush1.msra.mxu0 0.0
    %3043 = vmatprep.subr.mxu0 0.0
    %3044 = vmatpush1.msra.mxu0 0.0
    %3045 = vmatprep.subr.mxu0 0.0
    %3046 = vmatpush1.msra.mxu0 0.0
    %3047 = vmatprep.subr.mxu0 0.0
    %3048 = vmatpush1.msra.mxu0 0.0
    %3049 = vmatprep.subr.mxu0 0.0
    %3050 = vmatpush1.msra.mxu0 0.0
    %3051 = vmatprep.subr.mxu0 0.0
    %3052 = vmatpush1.msra.mxu0 0.0
    %3053 = vmatprep.subr.mxu0 0.0
    %3054 = vmatpush1.msra.mxu0 0.0
    %3055 = vmatprep.subr.mxu0 0.0
    %3056 = vmatpush1.msra.mxu0 0.0
    %3057 = vmatprep.subr.mxu0 0.0
    %3058 = vmatpush1.msra.mxu0 0.0
    %3059 = vmatprep.subr.mxu0 0.0
    %3060 = vmatpush1.msra.mxu0 0.0
    %3061 = vmatprep.subr.mxu0 0.0
    %3062 = vmatpush1.msra.mxu0 0.0
    %3063 = vmatprep.subr.mxu0 0.0
    %3064 = vmatpush1.msra.mxu0 0.0
    %3065 = vmatprep.subr.mxu0 0.0
    %3066 = vmatpush1.msra.mxu0 0.0
    %3067 = vmatprep.subr.mxu0 0.0
    %3068 = vmatpush1.msra.mxu0 0.0
    %3069 = vmatprep.subr.mxu0 0.0
    %3070 = vmatpush1.msra.mxu0 0.0
    %3071 = vmatprep.subr.mxu0 0.0
    %3072 = vmatpush1.msra.mxu0 0.0
    %3073 = vmatprep.mubr.f32.mxu0 0.0
    %3074 = vmatmul.mubr.f32.gmra.mrb[0].mxu0 %v3007
    %v3075 = vpop.f32.mrb[0].mxu0
    %v3076 = vadd.f32 0.0, %v3075
    %v3077 = vpop.f32.mrb[0].mxu0
    %v3078 = vadd.f32 0.0, %v3077
    %3079 = vdwg.mxu0
    %v3080 = vadd.f32 %v3002, %v3076
    %v3081 = vadd.f32 %v3003, %v3078
    %v3082 = vxor.u32 %v3080, 2147483648
    %v3083 = vxor.u32 %v3081, 2147483648
    %v3084 = vmul.f32 %v3082, 1.442695
    %v3085 = vpow.pop %v3084
    %v3086 = vmul.f32 %v3083, 1.442695
    %v3087 = vpow.pop %v3086
    %v3088 = vadd.f32 %v3085, 1.0
    %v3089 = vadd.f32 %v3087, 1.0
    %v3090 = vrcp.pop %v3088
    %v3091 = vmul.f32 1.0, %v3090
    %v3092 = vrcp.pop %v3089
    %v3093 = vmul.f32 1.0, %v3092
    %v3094 = vtanh.pop %v3081
    %v3095 = vmul.f32 %v3091, %v2996
    %v3096 = vmul.f32 %v3091, %v3094
    %3098 = vrot.lane.b32.xlu0 %v3096, 64
    %v3099 = vpop.permute.xlu0 %3098
    %v3101 = vadd.f32 %v3095, %v3099
    %v3102 = vtanh.pop %v3101
    %v3103 = vmul.f32 %v3093, %v3102
    %s3104 = smul.u32 25, 2
    %s3105 = smul.addr %s3104, 8
    %s3106 = scalar_lea.vmem [#allocation2], %s3105
    %v3107 = vld [vmem:[%s3106] sm:$0xff]
    %v3108 = vld [vmem:[%s3106 + $0x8] sm:$0xff]
    %3110 = vrot.lane.b32.xlu0 %v3103, 64
    %v3111 = vpop.permute.xlu0 %3110
    %v3112 = vsel %vm485, %v3111, 0
    %3114 = vmatprep.subr.mxu0 %v465
    %3115 = vmatpush1.msra.mxu0 %v464
    %3116 = vmatprep.subr.mxu0 %v467
    %3117 = vmatpush1.msra.mxu0 %v466
    %3118 = vmatprep.subr.mxu0 %v469
    %3119 = vmatpush1.msra.mxu0 %v468
    %3120 = vmatprep.subr.mxu0 %v471
    %3121 = vmatpush1.msra.mxu0 %v470
    %3122 = vmatprep.subr.mxu0 %v473
    %3123 = vmatpush1.msra.mxu0 %v472
    %3124 = vmatprep.subr.mxu0 %v475
    %3125 = vmatpush1.msra.mxu0 %v474
    %3126 = vmatprep.subr.mxu0 %v477
    %3127 = vmatpush1.msra.mxu0 %v476
    %3128 = vmatprep.subr.mxu0 %v479
    %3129 = vmatpush1.msra.mxu0 %v478
    %3130 = vmatprep.subr.mxu0 0.0
    %3131 = vmatpush1.msra.mxu0 0.0
    %3132 = vmatprep.subr.mxu0 0.0
    %3133 = vmatpush1.msra.mxu0 0.0
    %3134 = vmatprep.subr.mxu0 0.0
    %3135 = vmatpush1.msra.mxu0 0.0
    %3136 = vmatprep.subr.mxu0 0.0
    %3137 = vmatpush1.msra.mxu0 0.0
    %3138 = vmatprep.subr.mxu0 0.0
    %3139 = vmatpush1.msra.mxu0 0.0
    %3140 = vmatprep.subr.mxu0 0.0
    %3141 = vmatpush1.msra.mxu0 0.0
    %3142 = vmatprep.subr.mxu0 0.0
    %3143 = vmatpush1.msra.mxu0 0.0
    %3144 = vmatprep.subr.mxu0 0.0
    %3145 = vmatpush1.msra.mxu0 0.0
    %3146 = vmatprep.subr.mxu0 0.0
    %3147 = vmatpush1.msra.mxu0 0.0
    %3148 = vmatprep.subr.mxu0 0.0
    %3149 = vmatpush1.msra.mxu0 0.0
    %3150 = vmatprep.subr.mxu0 0.0
    %3151 = vmatpush1.msra.mxu0 0.0
    %3152 = vmatprep.subr.mxu0 0.0
    %3153 = vmatpush1.msra.mxu0 0.0
    %3154 = vmatprep.subr.mxu0 0.0
    %3155 = vmatpush1.msra.mxu0 0.0
    %3156 = vmatprep.subr.mxu0 0.0
    %3157 = vmatpush1.msra.mxu0 0.0
    %3158 = vmatprep.subr.mxu0 0.0
    %3159 = vmatpush1.msra.mxu0 0.0
    %3160 = vmatprep.subr.mxu0 0.0
    %3161 = vmatpush1.msra.mxu0 0.0
    %3162 = vmatprep.subr.mxu0 0.0
    %3163 = vmatpush1.msra.mxu0 0.0
    %3164 = vmatprep.subr.mxu0 0.0
    %3165 = vmatpush1.msra.mxu0 0.0
    %3166 = vmatprep.subr.mxu0 0.0
    %3167 = vmatpush1.msra.mxu0 0.0
    %3168 = vmatprep.subr.mxu0 0.0
    %3169 = vmatpush1.msra.mxu0 0.0
    %3170 = vmatprep.subr.mxu0 0.0
    %3171 = vmatpush1.msra.mxu0 0.0
    %3172 = vmatprep.subr.mxu0 0.0
    %3173 = vmatpush1.msra.mxu0 0.0
    %3174 = vmatprep.subr.mxu0 0.0
    %3175 = vmatpush1.msra.mxu0 0.0
    %3176 = vmatprep.subr.mxu0 0.0
    %3177 = vmatpush1.msra.mxu0 0.0
    %3178 = vmatprep.mubr.f32.mxu0 0.0
    %3179 = vmatmul.mubr.f32.gmra.mrb[0].mxu0 %v3112
    %v3180 = vpop.f32.mrb[0].mxu0
    %v3181 = vadd.f32 0.0, %v3180
    %v3182 = vpop.f32.mrb[0].mxu0
    %v3183 = vadd.f32 0.0, %v3182
    %3184 = vdwg.mxu0
    %v3185 = vadd.f32 %v3107, %v3181
    %v3186 = vadd.f32 %v3108, %v3183
    %v3187 = vxor.u32 %v3185, 2147483648
    %v3188 = vxor.u32 %v3186, 2147483648
    %v3189 = vmul.f32 %v3187, 1.442695
    %v3190 = vpow.pop %v3189
    %v3191 = vmul.f32 %v3188, 1.442695
    %v3192 = vpow.pop %v3191
    %v3193 = vadd.f32 %v3190, 1.0
    %v3194 = vadd.f32 %v3192, 1.0
    %v3195 = vrcp.pop %v3193
    %v3196 = vmul.f32 1.0, %v3195
    %v3197 = vrcp.pop %v3194
    %v3198 = vmul.f32 1.0, %v3197
    %v3199 = vtanh.pop %v3186
    %v3200 = vmul.f32 %v3196, %v3101
    %v3201 = vmul.f32 %v3196, %v3199
    %3203 = vrot.lane.b32.xlu0 %v3201, 64
    %v3204 = vpop.permute.xlu0 %3203
    %v3206 = vadd.f32 %v3200, %v3204
    %v3207 = vtanh.pop %v3206
    %v3208 = vmul.f32 %v3198, %v3207
    %s3209 = smul.u32 26, 2
    %s3210 = smul.addr %s3209, 8
    %s3211 = scalar_lea.vmem [#allocation2], %s3210
    %v3212 = vld [vmem:[%s3211] sm:$0xff]
    %v3213 = vld [vmem:[%s3211 + $0x8] sm:$0xff]
    %3215 = vrot.lane.b32.xlu0 %v3208, 64
    %v3216 = vpop.permute.xlu0 %3215
    %v3217 = vsel %vm485, %v3216, 0
    %3219 = vmatprep.subr.mxu0 %v465
    %3220 = vmatpush1.msra.mxu0 %v464
    %3221 = vmatprep.subr.mxu0 %v467
    %3222 = vmatpush1.msra.mxu0 %v466
    %3223 = vmatprep.subr.mxu0 %v469
    %3224 = vmatpush1.msra.mxu0 %v468
    %3225 = vmatprep.subr.mxu0 %v471
    %3226 = vmatpush1.msra.mxu0 %v470
    %3227 = vmatprep.subr.mxu0 %v473
    %3228 = vmatpush1.msra.mxu0 %v472
    %3229 = vmatprep.subr.mxu0 %v475
    %3230 = vmatpush1.msra.mxu0 %v474
    %3231 = vmatprep.subr.mxu0 %v477
    %3232 = vmatpush1.msra.mxu0 %v476
    %3233 = vmatprep.subr.mxu0 %v479
    %3234 = vmatpush1.msra.mxu0 %v478
    %3235 = vmatprep.subr.mxu0 0.0
    %3236 = vmatpush1.msra.mxu0 0.0
    %3237 = vmatprep.subr.mxu0 0.0
    %3238 = vmatpush1.msra.mxu0 0.0
    %3239 = vmatprep.subr.mxu0 0.0
    %3240 = vmatpush1.msra.mxu0 0.0
    %3241 = vmatprep.subr.mxu0 0.0
    %3242 = vmatpush1.msra.mxu0 0.0
    %3243 = vmatprep.subr.mxu0 0.0
    %3244 = vmatpush1.msra.mxu0 0.0
    %3245 = vmatprep.subr.mxu0 0.0
    %3246 = vmatpush1.msra.mxu0 0.0
    %3247 = vmatprep.subr.mxu0 0.0
    %3248 = vmatpush1.msra.mxu0 0.0
    %3249 = vmatprep.subr.mxu0 0.0
    %3250 = vmatpush1.msra.mxu0 0.0
    %3251 = vmatprep.subr.mxu0 0.0
    %3252 = vmatpush1.msra.mxu0 0.0
    %3253 = vmatprep.subr.mxu0 0.0
    %3254 = vmatpush1.msra.mxu0 0.0
    %3255 = vmatprep.subr.mxu0 0.0
    %3256 = vmatpush1.msra.mxu0 0.0
    %3257 = vmatprep.subr.mxu0 0.0
    %3258 = vmatpush1.msra.mxu0 0.0
    %3259 = vmatprep.subr.mxu0 0.0
    %3260 = vmatpush1.msra.mxu0 0.0
    %3261 = vmatprep.subr.mxu0 0.0
    %3262 = vmatpush1.msra.mxu0 0.0
    %3263 = vmatprep.subr.mxu0 0.0
    %3264 = vmatpush1.msra.mxu0 0.0
    %3265 = vmatprep.subr.mxu0 0.0
    %3266 = vmatpush1.msra.mxu0 0.0
    %3267 = vmatprep.subr.mxu0 0.0
    %3268 = vmatpush1.msra.mxu0 0.0
    %3269 = vmatprep.subr.mxu0 0.0
    %3270 = vmatpush1.msra.mxu0 0.0
    %3271 = vmatprep.subr.mxu0 0.0
    %3272 = vmatpush1.msra.mxu0 0.0
    %3273 = vmatprep.subr.mxu0 0.0
    %3274 = vmatpush1.msra.mxu0 0.0
    %3275 = vmatprep.subr.mxu0 0.0
    %3276 = vmatpush1.msra.mxu0 0.0
    %3277 = vmatprep.subr.mxu0 0.0
    %3278 = vmatpush1.msra.mxu0 0.0
    %3279 = vmatprep.subr.mxu0 0.0
    %3280 = vmatpush1.msra.mxu0 0.0
    %3281 = vmatprep.subr.mxu0 0.0
    %3282 = vmatpush1.msra.mxu0 0.0
    %3283 = vmatprep.mubr.f32.mxu0 0.0
    %3284 = vmatmul.mubr.f32.gmra.mrb[0].mxu0 %v3217
    %v3285 = vpop.f32.mrb[0].mxu0
    %v3286 = vadd.f32 0.0, %v3285
    %v3287 = vpop.f32.mrb[0].mxu0
    %v3288 = vadd.f32 0.0, %v3287
    %3289 = vdwg.mxu0
    %v3290 = vadd.f32 %v3212, %v3286
    %v3291 = vadd.f32 %v3213, %v3288
    %v3292 = vxor.u32 %v3290, 2147483648
    %v3293 = vxor.u32 %v3291, 2147483648
    %v3294 = vmul.f32 %v3292, 1.442695
    %v3295 = vpow.pop %v3294
    %v3296 = vmul.f32 %v3293, 1.442695
    %v3297 = vpow.pop %v3296
    %v3298 = vadd.f32 %v3295, 1.0
    %v3299 = vadd.f32 %v3297, 1.0
    %v3300 = vrcp.pop %v3298
    %v3301 = vmul.f32 1.0, %v3300
    %v3302 = vrcp.pop %v3299
    %v3303 = vmul.f32 1.0, %v3302
    %v3304 = vtanh.pop %v3291
    %v3305 = vmul.f32 %v3301, %v3206
    %v3306 = vmul.f32 %v3301, %v3304
    %3308 = vrot.lane.b32.xlu0 %v3306, 64
    %v3309 = vpop.permute.xlu0 %3308
    %v3311 = vadd.f32 %v3305, %v3309
    %v3312 = vtanh.pop %v3311
    %v3313 = vmul.f32 %v3303, %v3312
    %s3314 = smul.u32 27, 2
    %s3315 = smul.addr %s3314, 8
    %s3316 = scalar_lea.vmem [#allocation2], %s3315
    %v3317 = vld [vmem:[%s3316] sm:$0xff]
    %v3318 = vld [vmem:[%s3316 + $0x8] sm:$0xff]
    %3320 = vrot.lane.b32.xlu0 %v3313, 64
    %v3321 = vpop.permute.xlu0 %3320
    %v3322 = vsel %vm485, %v3321, 0
    %3324 = vmatprep.subr.mxu0 %v465
    %3325 = vmatpush1.msra.mxu0 %v464
    %3326 = vmatprep.subr.mxu0 %v467
    %3327 = vmatpush1.msra.mxu0 %v466
    %3328 = vmatprep.subr.mxu0 %v469
    %3329 = vmatpush1.msra.mxu0 %v468
    %3330 = vmatprep.subr.mxu0 %v471
    %3331 = vmatpush1.msra.mxu0 %v470
    %3332 = vmatprep.subr.mxu0 %v473
    %3333 = vmatpush1.msra.mxu0 %v472
    %3334 = vmatprep.subr.mxu0 %v475
    %3335 = vmatpush1.msra.mxu0 %v474
    %3336 = vmatprep.subr.mxu0 %v477
    %3337 = vmatpush1.msra.mxu0 %v476
    %3338 = vmatprep.subr.mxu0 %v479
    %3339 = vmatpush1.msra.mxu0 %v478
    %3340 = vmatprep.subr.mxu0 0.0
    %3341 = vmatpush1.msra.mxu0 0.0
    %3342 = vmatprep.subr.mxu0 0.0
    %3343 = vmatpush1.msra.mxu0 0.0
    %3344 = vmatprep.subr.mxu0 0.0
    %3345 = vmatpush1.msra.mxu0 0.0
    %3346 = vmatprep.subr.mxu0 0.0
    %3347 = vmatpush1.msra.mxu0 0.0
    %3348 = vmatprep.subr.mxu0 0.0
    %3349 = vmatpush1.msra.mxu0 0.0
    %3350 = vmatprep.subr.mxu0 0.0
    %3351 = vmatpush1.msra.mxu0 0.0
    %3352 = vmatprep.subr.mxu0 0.0
    %3353 = vmatpush1.msra.mxu0 0.0
    %3354 = vmatprep.subr.mxu0 0.0
    %3355 = vmatpush1.msra.mxu0 0.0
    %3356 = vmatprep.subr.mxu0 0.0
    %3357 = vmatpush1.msra.mxu0 0.0
    %3358 = vmatprep.subr.mxu0 0.0
    %3359 = vmatpush1.msra.mxu0 0.0
    %3360 = vmatprep.subr.mxu0 0.0
    %3361 = vmatpush1.msra.mxu0 0.0
    %3362 = vmatprep.subr.mxu0 0.0
    %3363 = vmatpush1.msra.mxu0 0.0
    %3364 = vmatprep.subr.mxu0 0.0
    %3365 = vmatpush1.msra.mxu0 0.0
    %3366 = vmatprep.subr.mxu0 0.0
    %3367 = vmatpush1.msra.mxu0 0.0
    %3368 = vmatprep.subr.mxu0 0.0
    %3369 = vmatpush1.msra.mxu0 0.0
    %3370 = vmatprep.subr.mxu0 0.0
    %3371 = vmatpush1.msra.mxu0 0.0
    %3372 = vmatprep.subr.mxu0 0.0
    %3373 = vmatpush1.msra.mxu0 0.0
    %3374 = vmatprep.subr.mxu0 0.0
    %3375 = vmatpush1.msra.mxu0 0.0
    %3376 = vmatprep.subr.mxu0 0.0
    %3377 = vmatpush1.msra.mxu0 0.0
    %3378 = vmatprep.subr.mxu0 0.0
    %3379 = vmatpush1.msra.mxu0 0.0
    %3380 = vmatprep.subr.mxu0 0.0
    %3381 = vmatpush1.msra.mxu0 0.0
    %3382 = vmatprep.subr.mxu0 0.0
    %3383 = vmatpush1.msra.mxu0 0.0
    %3384 = vmatprep.subr.mxu0 0.0
    %3385 = vmatpush1.msra.mxu0 0.0
    %3386 = vmatprep.subr.mxu0 0.0
    %3387 = vmatpush1.msra.mxu0 0.0
    %3388 = vmatprep.mubr.f32.mxu0 0.0
    %3389 = vmatmul.mubr.f32.gmra.mrb[0].mxu0 %v3322
    %v3390 = vpop.f32.mrb[0].mxu0
    %v3391 = vadd.f32 0.0, %v3390
    %v3392 = vpop.f32.mrb[0].mxu0
    %v3393 = vadd.f32 0.0, %v3392
    %3394 = vdwg.mxu0
    %v3395 = vadd.f32 %v3317, %v3391
    %v3396 = vadd.f32 %v3318, %v3393
    %v3397 = vxor.u32 %v3395, 2147483648
    %v3398 = vxor.u32 %v3396, 2147483648
    %v3399 = vmul.f32 %v3397, 1.442695
    %v3400 = vpow.pop %v3399
    %v3401 = vmul.f32 %v3398, 1.442695
    %v3402 = vpow.pop %v3401
    %v3403 = vadd.f32 %v3400, 1.0
    %v3404 = vadd.f32 %v3402, 1.0
    %v3405 = vrcp.pop %v3403
    %v3406 = vmul.f32 1.0, %v3405
    %v3407 = vrcp.pop %v3404
    %v3408 = vmul.f32 1.0, %v3407
    %v3409 = vtanh.pop %v3396
    %v3410 = vmul.f32 %v3406, %v3311
    %v3411 = vmul.f32 %v3406, %v3409
    %3413 = vrot.lane.b32.xlu0 %v3411, 64
    %v3414 = vpop.permute.xlu0 %3413
    %v3416 = vadd.f32 %v3410, %v3414
    %v3417 = vtanh.pop %v3416
    %v3418 = vmul.f32 %v3408, %v3417
    %v3419 = vld [vmem:[%s4] sm:$0x1]
    %v3421 = vlaneseq
    %v3422 = vshrl.u32 %v3421, 7
    %v3423 = vsub.s32 0, %v3422
    %v3424 = vrot.slane %v3419, %v3423
    %3425 = vrot.lane.b32.xlu0 %v3424, 64
    %v3426 = vpop.permute.xlu0 %3425
    %v3428 = vmul.f32 %v3418, %v3426
    %v3429 = vld [vmem:[%s5] sm:$0x1]
    %v3431 = vlaneseq
    %v3432 = vshrl.u32 %v3431, 7
    %v3433 = vsub.s32 0, %v3432
    %v3434 = vrot.slane %v3429, %v3433
    %3435 = vrot.lane.b32.xlu0 %v3434, 64
    %v3436 = vpop.permute.xlu0 %3435
    %v3438 = vadd.f32 %v3428, %v3436
    %v3439 = vld [vmem:[%s6] sm:$0xff]
    %v3440 = vld [vmem:[%s6 + $0x8] sm:$0xff]
    %v3441 = vld [vmem:[%s6 + $0x10] sm:$0xff]
    %v3442 = vld [vmem:[%s6 + $0x18] sm:$0xff]
    %v3443 = vld [vmem:[%s6 + $0x20] sm:$0xff]
    %v3444 = vld [vmem:[%s6 + $0x28] sm:$0xff]
    %v3445 = vld [vmem:[%s6 + $0x30] sm:$0xff]
    %v3446 = vld [vmem:[%s6 + $0x38] sm:$0xff]
    %v3447 = vld [vmem:[%s7] sm:$0x1]
    %v3449 = vlaneseq
    %v3450 = vshrl.u32 %v3449, 7
    %v3451 = vsub.s32 0, %v3450
    %v3452 = vrot.slane %v3447, %v3451
    %3455 = vrot.lane.b32.xlu0 %v3438, 64
    %v3456 = vpop.permute.xlu0 %3455
    %v3457 = vsel %vm485, %v3456, 0
    %3459 = vmatprep.subr.mxu0 0.0
    %3460 = vmatpush1.msra.mxu0 %v3439
    %3461 = vmatprep.subr.mxu0 0.0
    %3462 = vmatpush1.msra.mxu0 %v3440
    %3463 = vmatprep.subr.mxu0 0.0
    %3464 = vmatpush1.msra.mxu0 %v3441
    %3465 = vmatprep.subr.mxu0 0.0
    %3466 = vmatpush1.msra.mxu0 %v3442
    %3467 = vmatprep.subr.mxu0 0.0
    %3468 = vmatpush1.msra.mxu0 %v3443
    %3469 = vmatprep.subr.mxu0 0.0
    %3470 = vmatpush1.msra.mxu0 %v3444
    %3471 = vmatprep.subr.mxu0 0.0
    %3472 = vmatpush1.msra.mxu0 %v3445
    %3473 = vmatprep.subr.mxu0 0.0
    %3474 = vmatpush1.msra.mxu0 %v3446
    %3475 = vmatprep.subr.mxu0 0.0
    %3476 = vmatpush1.msra.mxu0 0.0
    %3477 = vmatprep.subr.mxu0 0.0
    %3478 = vmatpush1.msra.mxu0 0.0
    %3479 = vmatprep.subr.mxu0 0.0
    %3480 = vmatpush1.msra.mxu0 0.0
    %3481 = vmatprep.subr.mxu0 0.0
    %3482 = vmatpush1.msra.mxu0 0.0
    %3483 = vmatprep.subr.mxu0 0.0
    %3484 = vmatpush1.msra.mxu0 0.0
    %3485 = vmatprep.subr.mxu0 0.0
    %3486 = vmatpush1.msra.mxu0 0.0
    %3487 = vmatprep.subr.mxu0 0.0
    %3488 = vmatpush1.msra.mxu0 0.0
    %3489 = vmatprep.subr.mxu0 0.0
    %3490 = vmatpush1.msra.mxu0 0.0
    %3491 = vmatprep.subr.mxu0 0.0
    %3492 = vmatpush1.msra.mxu0 0.0
    %3493 = vmatprep.subr.mxu0 0.0
    %3494 = vmatpush1.msra.mxu0 0.0
    %3495 = vmatprep.subr.mxu0 0.0
    %3496 = vmatpush1.msra.mxu0 0.0
    %3497 = vmatprep.subr.mxu0 0.0
    %3498 = vmatpush1.msra.mxu0 0.0
    %3499 = vmatprep.subr.mxu0 0.0
    %3500 = vmatpush1.msra.mxu0 0.0
    %3501 = vmatprep.subr.mxu0 0.0
    %3502 = vmatpush1.msra.mxu0 0.0
    %3503 = vmatprep.subr.mxu0 0.0
    %3504 = vmatpush1.msra.mxu0 0.0
    %3505 = vmatprep.subr.mxu0 0.0
    %3506 = vmatpush1.msra.mxu0 0.0
    %3507 = vmatprep.subr.mxu0 0.0
    %3508 = vmatpush1.msra.mxu0 0.0
    %3509 = vmatprep.subr.mxu0 0.0
    %3510 = vmatpush1.msra.mxu0 0.0
    %3511 = vmatprep.subr.mxu0 0.0
    %3512 = vmatpush1.msra.mxu0 0.0
    %3513 = vmatprep.subr.mxu0 0.0
    %3514 = vmatpush1.msra.mxu0 0.0
    %3515 = vmatprep.subr.mxu0 0.0
    %3516 = vmatpush1.msra.mxu0 0.0
    %3517 = vmatprep.subr.mxu0 0.0
    %3518 = vmatpush1.msra.mxu0 0.0
    %3519 = vmatprep.subr.mxu0 0.0
    %3520 = vmatpush1.msra.mxu0 0.0
    %3521 = vmatprep.subr.mxu0 0.0
    %3522 = vmatpush1.msra.mxu0 0.0
    %3523 = vmatprep.mubr.f32.mxu0 0.0
    %3524 = vmatmul.mubr.f32.gmra.mrb[0].mxu0 %v3457
    %v3525 = vpop.f32.mrb[0].mxu0
    %v3526 = vadd.f32 %v3452, %v3525
    %v3527 = vpop.f32.mrb[0].mxu0
    %3528 = vdwg.mxu0
    %v3529 = vmul.f32 %v3526, 0.5
    %v3530 = vmul.f32 %v3526, 0.70710677
    %v3531 = verf.f32.pop %v3530
    %v3532 = vadd.f32 %v3531, 1.0
    %v3533 = vmul.f32 %v3529, %v3532
    %v3534 = vld [vmem:[%s8] sm:$0xff]
    %v3535 = vld [vmem:[%s8 + $0x8] sm:$0xff]
    %v3536 = vld [vmem:[%s8 + $0x10] sm:$0xff]
    %v3537 = vld [vmem:[%s8 + $0x18] sm:$0xff]
    %v3538 = vld [vmem:[%s8 + $0x20] sm:$0xff]
    %v3539 = vld [vmem:[%s8 + $0x28] sm:$0xff]
    %v3540 = vld [vmem:[%s8 + $0x30] sm:$0xff]
    %v3541 = vld [vmem:[%s8 + $0x38] sm:$0xff]
    %v3542 = vld [vmem:[%s9] sm:$0x1]
    %v3544 = vlaneseq
    %v3545 = vshrl.u32 %v3544, 7
    %v3546 = vsub.s32 0, %v3545
    %v3547 = vrot.slane %v3542, %v3546
    %v3550 = vsel %vm485, %v3533, 0
    %3552 = vmatprep.subr.mxu0 0.0
    %3553 = vmatpush1.msra.mxu0 %v3534
    %3554 = vmatprep.subr.mxu0 0.0
    %3555 = vmatpush1.msra.mxu0 %v3535
    %3556 = vmatprep.subr.mxu0 0.0
    %3557 = vmatpush1.msra.mxu0 %v3536
    %3558 = vmatprep.subr.mxu0 0.0
    %3559 = vmatpush1.msra.mxu0 %v3537
    %3560 = vmatprep.subr.mxu0 0.0
    %3561 = vmatpush1.msra.mxu0 %v3538
    %3562 = vmatprep.subr.mxu0 0.0
    %3563 = vmatpush1.msra.mxu0 %v3539
    %3564 = vmatprep.subr.mxu0 0.0
    %3565 = vmatpush1.msra.mxu0 %v3540
    %3566 = vmatprep.subr.mxu0 0.0
    %3567 = vmatpush1.msra.mxu0 %v3541
    %3568 = vmatprep.subr.mxu0 0.0
    %3569 = vmatpush1.msra.mxu0 0.0
    %3570 = vmatprep.subr.mxu0 0.0
    %3571 = vmatpush1.msra.mxu0 0.0
    %3572 = vmatprep.subr.mxu0 0.0
    %3573 = vmatpush1.msra.mxu0 0.0
    %3574 = vmatprep.subr.mxu0 0.0
    %3575 = vmatpush1.msra.mxu0 0.0
    %3576 = vmatprep.subr.mxu0 0.0
    %3577 = vmatpush1.msra.mxu0 0.0
    %3578 = vmatprep.subr.mxu0 0.0
    %3579 = vmatpush1.msra.mxu0 0.0
    %3580 = vmatprep.subr.mxu0 0.0
    %3581 = vmatpush1.msra.mxu0 0.0
    %3582 = vmatprep.subr.mxu0 0.0
    %3583 = vmatpush1.msra.mxu0 0.0
    %3584 = vmatprep.subr.mxu0 0.0
    %3585 = vmatpush1.msra.mxu0 0.0
    %3586 = vmatprep.subr.mxu0 0.0
    %3587 = vmatpush1.msra.mxu0 0.0
    %3588 = vmatprep.subr.mxu0 0.0
    %3589 = vmatpush1.msra.mxu0 0.0
    %3590 = vmatprep.subr.mxu0 0.0
    %3591 = vmatpush1.msra.mxu0 0.0
    %3592 = vmatprep.subr.mxu0 0.0
    %3593 = vmatpush1.msra.mxu0 0.0
    %3594 = vmatprep.subr.mxu0 0.0
    %3595 = vmatpush1.msra.mxu0 0.0
    %3596 = vmatprep.subr.mxu0 0.0
    %3597 = vmatpush1.msra.mxu0 0.0
    %3598 = vmatprep.subr.mxu0 0.0
    %3599 = vmatpush1.msra.mxu0 0.0
    %3600 = vmatprep.subr.mxu0 0.0
    %3601 = vmatpush1.msra.mxu0 0.0
    %3602 = vmatprep.subr.mxu0 0.0
    %3603 = vmatpush1.msra.mxu0 0.0
    %3604 = vmatprep.subr.mxu0 0.0
    %3605 = vmatpush1.msra.mxu0 0.0
    %3606 = vmatprep.subr.mxu0 0.0
    %3607 = vmatpush1.msra.mxu0 0.0
    %3608 = vmatprep.subr.mxu0 0.0
    %3609 = vmatpush1.msra.mxu0 0.0
    %3610 = vmatprep.subr.mxu0 0.0
    %3611 = vmatpush1.msra.mxu0 0.0
    %3612 = vmatprep.subr.mxu0 0.0
    %3613 = vmatpush1.msra.mxu0 0.0
    %3614 = vmatprep.subr.mxu0 0.0
    %3615 = vmatpush1.msra.mxu0 0.0
    %3616 = vmatprep.mubr.f32.mxu0 0.0
    %3617 = vmatmul.mubr.f32.gmra.mrb[0].mxu0 %v3550
    %v3618 = vpop.f32.mrb[0].mxu0
    %v3619 = vadd.f32 %v3547, %v3618
    %v3620 = vpop.f32.mrb[0].mxu0
    %3621 = vdwg.mxu0
    %3622 = vmax.xlane.f32.xlu0 %v3619
    %v3623 = vpop.xlane.xlu0 %3622
    %v3624 = vsub.f32 %v3619, %v3623
    %v3625 = vmul.f32 %v3624, 1.442695
    %v3626 = vpow.pop %v3625
    %3627 = vadd.xlane.f32.xlu0 %v3626
    %v3628 = vpop.xlane.xlu0 %3627
    %v3629 = vlog2.pop %v3628
    %v3630 = vmul.f32 %v3629, 0.6931472
    %v3631 = vadd.f32 %v3623, %v3630
    %v3632 = vsub.f32 %v3619, %v3631
    %3633 = vst [vmem:[#allocation3] sm:$0xff] %v3632
    // Predicated region
    $region42: #{model_forward.1} parent=1 // pred_check
      _
    $region43: #{model_forward.1} parent=1 // pred_check_branch
      %3635 = sbr.rel (0) target = $region45
    $region44: #{model_forward.1} parent=1 // pred_region
      %s3637 = ssub.s32 128, 128
      %3638 = vsyncadd [#allocation4], %s3637
      %s3640 = sshll.u32 [#allocation3], 4
      %s3641 = int_to_ptr.vmem [resolvable:$true] %s3640
      %3643 = dma.vmem_to_hbm [thread:$0]  %s3641, 128, %s10, [#allocation4]
    $region45: #{model_forward.1} parent=1 // pred_fallthru
      _
    // Predicated region
    $region46: #{model_forward.1} parent=1 // pred_check
      _
    $region47: #{model_forward.1} parent=1 // pred_check_branch
      %3645 = sbr.rel (0) target = $region49
    $region48: #{model_forward.1} parent=1 // pred_region
      %3646 = dma.done [#allocation4], 128
    $region49: #{model_forward.1} parent=1 // pred_fallthru
      _
    %3647 = vsyncpa [#allocation4], 1

</llo_original>
